<compile_context>
chip_gen: v6e
topology: v6e:2x2x1
jax: 0.10.0
libtpu: 0.0.40
codegen_flags: <defaults>
</compile_context>

<pallas_src>
import jax
import jax.numpy as jnp
from jax.experimental import pallas as pl
from jax.experimental.pallas import tpu as pltpu


def critic_kernel(s_ref, a_ref,
                  w1_ref, b1_ref,
                  w2s_ref, w2a_ref, b2_ref,
                  w3_ref, b3_ref,
                  w4_ref, b4_ref,
                  out_ref):
    # MXU operand dtype follows the (bf16 by default) matmul weights; the
    # accumulator / elementwise path stays float32.
    mm_dtype = w2s_ref.dtype

    # ---- layer1: Linear(state_size, 128) + ReLU ----------------------------
    # K = state_size is tiny (e.g. 8): VPU broadcast FMAs instead of an MXU
    # matmul whose K would be padded to 128 (v5e) / 256 (v6e/v7x).
    s = s_ref[...].astype(jnp.float32)                # (TB, S)
    w1 = w1_ref[...]                                  # (S, 128), f32
    S = s.shape[1]
    x1 = s[:, 0:1] * w1[0:1, :]
    for k in range(1, S):                             # unrolled at trace time
        x1 = x1 + s[:, k:k + 1] * w1[k:k + 1, :]
    x1 = jnp.maximum(x1 + b1_ref[...], 0.0)           # (TB, 128), f32

    # ---- layer2: Linear(130, 128) + ReLU ------------------------------------
    # cat([x, action]) @ W2 == x @ W2[:128] (MXU) + action @ W2[128:] (VPU, K=2)
    a = a_ref[...].astype(jnp.float32)                # (TB, 2)
    w2a = w2a_ref[...]                                # (2, 128), f32
    act_term = a[:, 0:1] * w2a[0:1, :] + a[:, 1:2] * w2a[1:2, :]
    x2 = jnp.dot(x1.astype(mm_dtype), w2s_ref[...],
                 preferred_element_type=jnp.float32)
    x2 = jnp.maximum(x2 + act_term + b2_ref[...], 0.0)

    # ---- layer3: Linear(128, 128) + ReLU ------------------------------------
    x3 = jnp.dot(x2.astype(mm_dtype), w3_ref[...],
                 preferred_element_type=jnp.float32)
    x3 = jnp.maximum(x3 + b3_ref[...], 0.0)

    # ---- layer4: Linear(128, 1) ---------------------------------------------
    # N = 1: VPU multiply + lane reduction, avoiding a 1-useful-lane MXU push.
    q = jnp.sum(x3 * w4_ref[...], axis=-1, keepdims=True) + b4_ref[...]
    out_ref[...] = q.astype(out_ref.dtype)


def _round_up(x, m):
    return -(-x // m) * m


def _default_tile_b(B):
    """Batch tile: big enough to amortize per-step overhead, but keep >= 2
    grid steps when B allows so ("parallel",) shards across v7x's 2 TCs."""
    if B <= 256:
        return B                                   # single full-extent block
    return min(1024, _round_up(pl.cdiv(B, 2), 256))


def critic_forward(state, action, params, *, tile_b=None):
    """state: (B, state_size), action: (B, 2) -> (B, 1) Q-values."""
    (w1, b1, w2s, w2a, b2, w3, b3, w4_row, b4) = params
    B, state_size = state.shape
    action_size = action.shape[1]
    assert 128 + action_size == 130, "Linear(130, 128) implies action_size == 2"

    TB = _default_tile_b(B) if tile_b is None else tile_b
    num_tiles = pl.cdiv(B, TB)

    def batch_spec(feat):
        return pl.BlockSpec((TB, feat), lambda i: (i, 0))

    def const_spec(arr):
        return pl.BlockSpec(arr.shape, lambda i: (0, 0))

    flops = 2 * B * (state_size * 128 + 130 * 128 + 128 * 128 + 128)
    param_bytes = sum(int(p.size) * p.dtype.itemsize
                      for p in (w1, b1, w2s, w2a, b2, w3, b3, w4_row, b4))
    bytes_accessed = (B * (state_size + action_size) * state.dtype.itemsize
                      + B * 4 + param_bytes)

    # No wrapper-side pad/slice: the partial last batch block is handled by
    # Pallas (rows are independent; OOB output writes are clipped).
    return pl.pallas_call(
        critic_kernel,
        out_shape=jax.ShapeDtypeStruct((B, 1), jnp.float32),
        grid=(num_tiles,),
        in_specs=[
            batch_spec(state_size),      # state tile
            batch_spec(action_size),     # action tile
            const_spec(w1),              # weights/biases: resident in VMEM
            const_spec(b1),
            const_spec(w2s),
            const_spec(w2a),
            const_spec(b2),
            const_spec(w3),
            const_spec(b3),
            const_spec(w4_row),
            const_spec(b4),
        ],
        out_specs=pl.BlockSpec((TB, 1), lambda i: (i, 0)),
        compiler_params=pltpu.CompilerParams(
            dimension_semantics=("parallel",)),
        cost_estimate=pl.CostEstimate(
            flops=flops, transcendentals=0, bytes_accessed=bytes_accessed),
    )(state, action, w1, b1, w2s, w2a, b2, w3, b3, w4_row, b4)


def init_params(key, state_size, action_size, *, matmul_dtype=jnp.bfloat16):
    """PyTorch-style uniform(-1/sqrt(fan_in), 1/sqrt(fan_in)) init.

    Weights are stored pre-transposed (fan_in, fan_out); biases as (1, fan_out).
    W2 is split into state rows (128x128) and action rows (2x128) so the concat
    is fused away.  The MXU weights (W2_state, W3) are cast ONCE here to
    `matmul_dtype` (bf16 default, native on all MXU generations); the VPU-path
    weights (W1, W2_action, W4 row) and all biases stay float32.
    """
    def linear(key, fan_in, fan_out):
        kw, kb = jax.random.split(key)
        bound = 1.0 / jnp.sqrt(float(fan_in))
        w = jax.random.uniform(kw, (fan_in, fan_out), jnp.float32, -bound, bound)
        b = jax.random.uniform(kb, (1, fan_out), jnp.float32, -bound, bound)
        return w, b

    k1, k2, k3, k4 = jax.random.split(key, 4)
    w1, b1 = linear(k1, state_size, 128)
    w2, b2 = linear(k2, 128 + action_size, 128)      # Linear(130, 128)
    w3, b3 = linear(k3, 128, 128)
    w4, b4 = linear(k4, 128, 1)

    w2s = w2[:128, :].astype(matmul_dtype)           # MXU operand
    w2a = w2[128:, :]                                 # VPU operand (K=2), f32
    w3 = w3.astype(matmul_dtype)                      # MXU operand
    w4_row = w4.T                                     # (1, 128), VPU reduce, f32
    return (w1, b1, w2s, w2a, b2, w3, b3, w4_row, b4)


def critic_reference(state, action, params):
    """Plain-JAX reference: the PyTorch forward with the same operand dtypes as
    the kernel (bf16 MXU operands, f32 accumulation / bias / ReLU)."""
    (w1, b1, w2s, w2a, b2, w3, b3, w4_row, b4) = params
    mm = w2s.dtype
    hi = jax.lax.Precision.HIGHEST
    x = jnp.maximum(jnp.dot(state, w1, precision=hi) + b1, 0.0)
    x2 = jnp.dot(x.astype(mm), w2s, preferred_element_type=jnp.float32)
    x2 = jnp.maximum(x2 + jnp.dot(action, w2a, precision=hi) + b2, 0.0)
    x3 = jnp.dot(x2.astype(mm), w3, preferred_element_type=jnp.float32)
    x3 = jnp.maximum(x3 + b3, 0.0)
    return jnp.sum(x3 * w4_row, axis=-1, keepdims=True) + b4


if __name__ == "__main__":
    state_size = 8
    action_size = 2     # forced by Linear(130, 128): 128 + action_size == 130
    batch = 500         # 2 grid steps, partial last block (no wrapper padding)

    key = jax.random.PRNGKey(0)
    k_params, k_state, k_action = jax.random.split(key, 3)

    params = init_params(k_params, state_size, action_size)   # bf16 MXU weights
    state = jax.random.normal(k_state, (batch, state_size), jnp.float32)
    action = jax.random.normal(k_action, (batch, action_size), jnp.float32)

    q = critic_forward(state, action, params)
    q = jax.block_until_ready(q)

    q_ref = critic_reference(state, action, params)
    assert q.shape == (batch, 1), q.shape
    assert bool(jnp.all(jnp.isfinite(q))), "non-finite Q values"
    assert jnp.allclose(q, q_ref, atol=5e-3, rtol=5e-3), (
        "max abs diff = %g" % float(jnp.max(jnp.abs(q - q_ref))))

    print("KERNEL_OK")
</pallas_src>

<mosaic_0001>
module attributes {stable_mosaic.version = 11 : i64} {
  func.func @critic_kernel(%arg0: i32, %arg1: memref<256x8xf32, #tpu.memory_space<vmem>>, %arg2: memref<256x2xf32, #tpu.memory_space<vmem>>, %arg3: memref<8x128xf32, #tpu.memory_space<vmem>>, %arg4: memref<1x128xf32, #tpu.memory_space<vmem>>, %arg5: memref<128x128xbf16, #tpu.memory_space<vmem>>, %arg6: memref<2x128xf32, #tpu.memory_space<vmem>>, %arg7: memref<1x128xf32, #tpu.memory_space<vmem>>, %arg8: memref<128x128xbf16, #tpu.memory_space<vmem>>, %arg9: memref<1x128xf32, #tpu.memory_space<vmem>>, %arg10: memref<1x128xf32, #tpu.memory_space<vmem>>, %arg11: memref<1x1xf32, #tpu.memory_space<vmem>>, %arg12: memref<256x1xf32, #tpu.memory_space<vmem>>) attributes {dimension_semantics = [#tpu.dimension_semantics<parallel>], iteration_bounds = array<i64: 2>, scalar_prefetch = 0 : i64, scratch_operands = 0 : i64, tpu.core_type = #tpu.core_type<tc>, window_params = [{transform_indices = @transform_0, window_bounds = array<i64: 256, 8>}, {transform_indices = @transform_1, window_bounds = array<i64: 256, 2>}, {pipeline_mode = #tpu.pipeline_mode<synchronous>, transform_indices = @transform_2, window_bounds = array<i64: 8, 128>}, {pipeline_mode = #tpu.pipeline_mode<synchronous>, transform_indices = @transform_3, window_bounds = array<i64: 1, 128>}, {pipeline_mode = #tpu.pipeline_mode<synchronous>, transform_indices = @transform_4, window_bounds = array<i64: 128, 128>}, {pipeline_mode = #tpu.pipeline_mode<synchronous>, transform_indices = @transform_5, window_bounds = array<i64: 2, 128>}, {pipeline_mode = #tpu.pipeline_mode<synchronous>, transform_indices = @transform_6, window_bounds = array<i64: 1, 128>}, {pipeline_mode = #tpu.pipeline_mode<synchronous>, transform_indices = @transform_7, window_bounds = array<i64: 128, 128>}, {pipeline_mode = #tpu.pipeline_mode<synchronous>, transform_indices = @transform_8, window_bounds = array<i64: 1, 128>}, {pipeline_mode = #tpu.pipeline_mode<synchronous>, transform_indices = @transform_9, window_bounds = array<i64: 1, 128>}, {pipeline_mode = #tpu.pipeline_mode<synchronous>, transform_indices = @transform_10, window_bounds = array<i64: 1, 1>}, {transform_indices = @transform_11, window_bounds = array<i64: 256, 1>}]} {
    %c0 = arith.constant 0 : index
    %c0_0 = arith.constant 0 : index
    %0 = vector.load %arg1[%c0, %c0_0] : memref<256x8xf32, #tpu.memory_space<vmem>>, vector<256x8xf32>
    %c0_1 = arith.constant 0 : index
    %c0_2 = arith.constant 0 : index
    %1 = vector.load %arg3[%c0_1, %c0_2] : memref<8x128xf32, #tpu.memory_space<vmem>>, vector<8x128xf32>
    %2 = vector.extract_strided_slice %0 {offsets = [0, 0], sizes = [256, 1], strides = [1, 1]} : vector<256x8xf32> to vector<256x1xf32>
    %3 = vector.extract_strided_slice %1 {offsets = [0, 0], sizes = [1, 128], strides = [1, 1]} : vector<8x128xf32> to vector<1x128xf32>
    %4 = vector.broadcast %2 : vector<256x1xf32> to vector<256x128xf32>
    %5 = vector.broadcast %3 : vector<1x128xf32> to vector<256x128xf32>
    %6 = arith.mulf %4, %5 : vector<256x128xf32>
    %7 = vector.extract_strided_slice %0 {offsets = [0, 1], sizes = [256, 1], strides = [1, 1]} : vector<256x8xf32> to vector<256x1xf32>
    %8 = vector.extract_strided_slice %1 {offsets = [1, 0], sizes = [1, 128], strides = [1, 1]} : vector<8x128xf32> to vector<1x128xf32>
    %9 = vector.broadcast %7 : vector<256x1xf32> to vector<256x128xf32>
    %10 = vector.broadcast %8 : vector<1x128xf32> to vector<256x128xf32>
    %11 = arith.mulf %9, %10 : vector<256x128xf32>
    %12 = arith.addf %6, %11 : vector<256x128xf32>
    %13 = vector.extract_strided_slice %0 {offsets = [0, 2], sizes = [256, 1], strides = [1, 1]} : vector<256x8xf32> to vector<256x1xf32>
    %14 = vector.extract_strided_slice %1 {offsets = [2, 0], sizes = [1, 128], strides = [1, 1]} : vector<8x128xf32> to vector<1x128xf32>
    %15 = vector.broadcast %13 : vector<256x1xf32> to vector<256x128xf32>
    %16 = vector.broadcast %14 : vector<1x128xf32> to vector<256x128xf32>
    %17 = arith.mulf %15, %16 : vector<256x128xf32>
    %18 = arith.addf %12, %17 : vector<256x128xf32>
    %19 = vector.extract_strided_slice %0 {offsets = [0, 3], sizes = [256, 1], strides = [1, 1]} : vector<256x8xf32> to vector<256x1xf32>
    %20 = vector.extract_strided_slice %1 {offsets = [3, 0], sizes = [1, 128], strides = [1, 1]} : vector<8x128xf32> to vector<1x128xf32>
    %21 = vector.broadcast %19 : vector<256x1xf32> to vector<256x128xf32>
    %22 = vector.broadcast %20 : vector<1x128xf32> to vector<256x128xf32>
    %23 = arith.mulf %21, %22 : vector<256x128xf32>
    %24 = arith.addf %18, %23 : vector<256x128xf32>
    %25 = vector.extract_strided_slice %0 {offsets = [0, 4], sizes = [256, 1], strides = [1, 1]} : vector<256x8xf32> to vector<256x1xf32>
    %26 = vector.extract_strided_slice %1 {offsets = [4, 0], sizes = [1, 128], strides = [1, 1]} : vector<8x128xf32> to vector<1x128xf32>
    %27 = vector.broadcast %25 : vector<256x1xf32> to vector<256x128xf32>
    %28 = vector.broadcast %26 : vector<1x128xf32> to vector<256x128xf32>
    %29 = arith.mulf %27, %28 : vector<256x128xf32>
    %30 = arith.addf %24, %29 : vector<256x128xf32>
    %31 = vector.extract_strided_slice %0 {offsets = [0, 5], sizes = [256, 1], strides = [1, 1]} : vector<256x8xf32> to vector<256x1xf32>
    %32 = vector.extract_strided_slice %1 {offsets = [5, 0], sizes = [1, 128], strides = [1, 1]} : vector<8x128xf32> to vector<1x128xf32>
    %33 = vector.broadcast %31 : vector<256x1xf32> to vector<256x128xf32>
    %34 = vector.broadcast %32 : vector<1x128xf32> to vector<256x128xf32>
    %35 = arith.mulf %33, %34 : vector<256x128xf32>
    %36 = arith.addf %30, %35 : vector<256x128xf32>
    %37 = vector.extract_strided_slice %0 {offsets = [0, 6], sizes = [256, 1], strides = [1, 1]} : vector<256x8xf32> to vector<256x1xf32>
    %38 = vector.extract_strided_slice %1 {offsets = [6, 0], sizes = [1, 128], strides = [1, 1]} : vector<8x128xf32> to vector<1x128xf32>
    %39 = vector.broadcast %37 : vector<256x1xf32> to vector<256x128xf32>
    %40 = vector.broadcast %38 : vector<1x128xf32> to vector<256x128xf32>
    %41 = arith.mulf %39, %40 : vector<256x128xf32>
    %42 = arith.addf %36, %41 : vector<256x128xf32>
    %43 = vector.extract_strided_slice %0 {offsets = [0, 7], sizes = [256, 1], strides = [1, 1]} : vector<256x8xf32> to vector<256x1xf32>
    %44 = vector.extract_strided_slice %1 {offsets = [7, 0], sizes = [1, 128], strides = [1, 1]} : vector<8x128xf32> to vector<1x128xf32>
    %45 = vector.broadcast %43 : vector<256x1xf32> to vector<256x128xf32>
    %46 = vector.broadcast %44 : vector<1x128xf32> to vector<256x128xf32>
    %47 = arith.mulf %45, %46 : vector<256x128xf32>
    %48 = arith.addf %42, %47 : vector<256x128xf32>
    %c0_3 = arith.constant 0 : index
    %c0_4 = arith.constant 0 : index
    %49 = vector.load %arg4[%c0_3, %c0_4] : memref<1x128xf32, #tpu.memory_space<vmem>>, vector<1x128xf32>
    %50 = vector.broadcast %49 : vector<1x128xf32> to vector<256x128xf32>
    %51 = arith.addf %48, %50 : vector<256x128xf32>
    %cst = arith.constant 0.000000e+00 : f32
    %52 = vector.broadcast %cst : f32 to vector<256x128xf32>
    %53 = arith.maximumf %51, %52 : vector<256x128xf32>
    %c0_5 = arith.constant 0 : index
    %c0_6 = arith.constant 0 : index
    %54 = vector.load %arg2[%c0_5, %c0_6] : memref<256x2xf32, #tpu.memory_space<vmem>>, vector<256x2xf32>
    %c0_7 = arith.constant 0 : index
    %c0_8 = arith.constant 0 : index
    %55 = vector.load %arg6[%c0_7, %c0_8] : memref<2x128xf32, #tpu.memory_space<vmem>>, vector<2x128xf32>
    %56 = vector.extract_strided_slice %54 {offsets = [0, 0], sizes = [256, 1], strides = [1, 1]} : vector<256x2xf32> to vector<256x1xf32>
    %57 = vector.extract_strided_slice %55 {offsets = [0, 0], sizes = [1, 128], strides = [1, 1]} : vector<2x128xf32> to vector<1x128xf32>
    %58 = vector.broadcast %56 : vector<256x1xf32> to vector<256x128xf32>
    %59 = vector.broadcast %57 : vector<1x128xf32> to vector<256x128xf32>
    %60 = arith.mulf %58, %59 : vector<256x128xf32>
    %61 = vector.extract_strided_slice %54 {offsets = [0, 1], sizes = [256, 1], strides = [1, 1]} : vector<256x2xf32> to vector<256x1xf32>
    %62 = vector.extract_strided_slice %55 {offsets = [1, 0], sizes = [1, 128], strides = [1, 1]} : vector<2x128xf32> to vector<1x128xf32>
    %63 = vector.broadcast %61 : vector<256x1xf32> to vector<256x128xf32>
    %64 = vector.broadcast %62 : vector<1x128xf32> to vector<256x128xf32>
    %65 = arith.mulf %63, %64 : vector<256x128xf32>
    %66 = arith.addf %60, %65 : vector<256x128xf32>
    %67 = arith.truncf %53 : vector<256x128xf32> to vector<256x128xbf16>
    %c0_9 = arith.constant 0 : index
    %c0_10 = arith.constant 0 : index
    %68 = vector.load %arg5[%c0_9, %c0_10] : memref<128x128xbf16, #tpu.memory_space<vmem>>, vector<128x128xbf16>
    %cst_11 = arith.constant dense<0.000000e+00> : vector<256x128xf32>
    %69 = tpu.matmul %67, %68, %cst_11 {dimension_numbers = #tpu.dot_dimension_numbers<[1], [0], [0], [1], [0, 0, 1, 1], [], []>} : vector<256x128xbf16>, vector<128x128xbf16>, vector<256x128xf32> -> vector<256x128xf32>
    %70 = arith.addf %69, %66 : vector<256x128xf32>
    %c0_12 = arith.constant 0 : index
    %c0_13 = arith.constant 0 : index
    %71 = vector.load %arg7[%c0_12, %c0_13] : memref<1x128xf32, #tpu.memory_space<vmem>>, vector<1x128xf32>
    %72 = vector.broadcast %71 : vector<1x128xf32> to vector<256x128xf32>
    %73 = arith.addf %70, %72 : vector<256x128xf32>
    %cst_14 = arith.constant 0.000000e+00 : f32
    %74 = vector.broadcast %cst_14 : f32 to vector<256x128xf32>
    %75 = arith.maximumf %73, %74 : vector<256x128xf32>
    %76 = arith.truncf %75 : vector<256x128xf32> to vector<256x128xbf16>
    %c0_15 = arith.constant 0 : index
    %c0_16 = arith.constant 0 : index
    %77 = vector.load %arg8[%c0_15, %c0_16] : memref<128x128xbf16, #tpu.memory_space<vmem>>, vector<128x128xbf16>
    %cst_17 = arith.constant dense<0.000000e+00> : vector<256x128xf32>
    %78 = tpu.matmul %76, %77, %cst_17 {dimension_numbers = #tpu.dot_dimension_numbers<[1], [0], [0], [1], [0, 0, 1, 1], [], []>} : vector<256x128xbf16>, vector<128x128xbf16>, vector<256x128xf32> -> vector<256x128xf32>
    %c0_18 = arith.constant 0 : index
    %c0_19 = arith.constant 0 : index
    %79 = vector.load %arg9[%c0_18, %c0_19] : memref<1x128xf32, #tpu.memory_space<vmem>>, vector<1x128xf32>
    %80 = vector.broadcast %79 : vector<1x128xf32> to vector<256x128xf32>
    %81 = arith.addf %78, %80 : vector<256x128xf32>
    %cst_20 = arith.constant 0.000000e+00 : f32
    %82 = vector.broadcast %cst_20 : f32 to vector<256x128xf32>
    %83 = arith.maximumf %81, %82 : vector<256x128xf32>
    %c0_21 = arith.constant 0 : index
    %c0_22 = arith.constant 0 : index
    %84 = vector.load %arg10[%c0_21, %c0_22] : memref<1x128xf32, #tpu.memory_space<vmem>>, vector<1x128xf32>
    %85 = vector.broadcast %84 : vector<1x128xf32> to vector<256x128xf32>
    %86 = arith.mulf %83, %85 : vector<256x128xf32>
    %cst_23 = arith.constant dense<0.000000e+00> : vector<256xf32>
    %87 = vector.multi_reduction <add>, %86, %cst_23 [1] : vector<256x128xf32> to vector<256xf32>
    %88 = vector.shape_cast %87 : vector<256xf32> to vector<256x1xf32>
    %c0_24 = arith.constant 0 : index
    %c0_25 = arith.constant 0 : index
    %89 = vector.load %arg11[%c0_24, %c0_25] : memref<1x1xf32, #tpu.memory_space<vmem>>, vector<1x1xf32>
    %90 = vector.broadcast %89 : vector<1x1xf32> to vector<256x1xf32>
    %91 = arith.addf %88, %90 : vector<256x1xf32>
    %c0_26 = arith.constant 0 : index
    %c0_27 = arith.constant 0 : index
    %92 = vector.load %arg12[%c0_26, %c0_27] : memref<256x1xf32, #tpu.memory_space<vmem>>, vector<256x1xf32>
    tpu.vector_store %arg12[%c0_26, %c0_27], %91 {strides = array<i32>} : memref<256x1xf32, #tpu.memory_space<vmem>>, vector<256x1xf32>,
    return
  }
  func.func @transform_0(%arg0: i32) -> (i32, i32) {
    %c0_i32 = arith.constant 0 : i32
    %c0_i32_0 = arith.constant 0 : i32
    return %arg0, %c0_i32 : i32, i32
  }
  func.func @transform_1(%arg0: i32) -> (i32, i32) {
    %c0_i32 = arith.constant 0 : i32
    %c0_i32_0 = arith.constant 0 : i32
    return %arg0, %c0_i32 : i32, i32
  }
  func.func @transform_2(%arg0: i32) -> (i32, i32) {
    %c0_i32 = arith.constant 0 : i32
    %c0_i32_0 = arith.constant 0 : i32
    %c0_i32_1 = arith.constant 0 : i32
    return %c0_i32, %c0_i32_0 : i32, i32
  }
  func.func @transform_3(%arg0: i32) -> (i32, i32) {
    %c0_i32 = arith.constant 0 : i32
    %c0_i32_0 = arith.constant 0 : i32
    %c0_i32_1 = arith.constant 0 : i32
    return %c0_i32, %c0_i32_0 : i32, i32
  }
  func.func @transform_4(%arg0: i32) -> (i32, i32) {
    %c0_i32 = arith.constant 0 : i32
    %c0_i32_0 = arith.constant 0 : i32
    %c0_i32_1 = arith.constant 0 : i32
    return %c0_i32, %c0_i32_0 : i32, i32
  }
  func.func @transform_5(%arg0: i32) -> (i32, i32) {
    %c0_i32 = arith.constant 0 : i32
    %c0_i32_0 = arith.constant 0 : i32
    %c0_i32_1 = arith.constant 0 : i32
    return %c0_i32, %c0_i32_0 : i32, i32
  }
  func.func @transform_6(%arg0: i32) -> (i32, i32) {
    %c0_i32 = arith.constant 0 : i32
    %c0_i32_0 = arith.constant 0 : i32
    %c0_i32_1 = arith.constant 0 : i32
    return %c0_i32, %c0_i32_0 : i32, i32
  }
  func.func @transform_7(%arg0: i32) -> (i32, i32) {
    %c0_i32 = arith.constant 0 : i32
    %c0_i32_0 = arith.constant 0 : i32
    %c0_i32_1 = arith.constant 0 : i32
    return %c0_i32, %c0_i32_0 : i32, i32
  }
  func.func @transform_8(%arg0: i32) -> (i32, i32) {
    %c0_i32 = arith.constant 0 : i32
    %c0_i32_0 = arith.constant 0 : i32
    %c0_i32_1 = arith.constant 0 : i32
    return %c0_i32, %c0_i32_0 : i32, i32
  }
  func.func @transform_9(%arg0: i32) -> (i32, i32) {
    %c0_i32 = arith.constant 0 : i32
    %c0_i32_0 = arith.constant 0 : i32
    %c0_i32_1 = arith.constant 0 : i32
    return %c0_i32, %c0_i32_0 : i32, i32
  }
  func.func @transform_10(%arg0: i32) -> (i32, i32) {
    %c0_i32 = arith.constant 0 : i32
    %c0_i32_0 = arith.constant 0 : i32
    %c0_i32_1 = arith.constant 0 : i32
    return %c0_i32, %c0_i32_0 : i32, i32
  }
  func.func @transform_11(%arg0: i32) -> (i32, i32) {
    %c0_i32 = arith.constant 0 : i32
    %c0_i32_0 = arith.constant 0 : i32
    return %arg0, %c0_i32 : i32, i32
  }
}

</mosaic_0001>

<llo_original>
// kernel: tpu_custom_call.1
$region0: #{tpu_custom_call.1}
  #allocation0 [shape = 'u32[]', space=smem, size = 0x4, offset = 0x4, fixed_abs, tag = 'smem constant byte address 0x4 - core index']
  #allocation1 [shape = 'u32[144,128]{1,0:T(1,128)}', space=vmem, size = 0x12000, scoped, tag = 'internal scratch']
  #allocation2 [shape = 'f32[1,1]{1,0:T(1,128)S(1)}', space=vmem, size = 0x200, scoped, tag = 'scoped memory for tpu_custom_call.1']
  %s0 = inlined_call_operand.vmem [shape: f32[500,8], index: 0, kind: input, shape index: {}]
  %s1 = inlined_call_operand.vmem [shape: f32[500,2], index: 1, kind: input, shape index: {}]
  %s2 = inlined_call_operand.vmem [shape: f32[8,128], index: 2, kind: input, shape index: {}]
  %s3 = inlined_call_operand.vmem [shape: f32[1,128], index: 3, kind: input, shape index: {}]
  %s4 = inlined_call_operand.vmem [shape: bf16[128,128], index: 4, kind: input, shape index: {}]
  %s5 = inlined_call_operand.vmem [shape: f32[2,128], index: 5, kind: input, shape index: {}]
  %s6 = inlined_call_operand.vmem [shape: f32[1,128], index: 6, kind: input, shape index: {}]
  %s7 = inlined_call_operand.vmem [shape: bf16[128,128], index: 7, kind: input, shape index: {}]
  %s8 = inlined_call_operand.vmem [shape: f32[1,128], index: 8, kind: input, shape index: {}]
  %s9 = inlined_call_operand.vmem [shape: f32[1,128], index: 9, kind: input, shape index: {}]
  %s10 = inlined_call_operand.<no memory space> [shape: f32[1,1], index: 10, kind: input, shape index: {}]
  %s11 = inlined_call_operand.vmem [shape: f32[500,1], index: 11, kind: output, shape index: {}]
  %s12 = sld [smem:[#allocation0]]
  $region125: #{tpu_custom_call.1} parent=0
    _
  %s14 = ssub.s32 1, %s12
  %s15 = scalar_select 0, %s14, %s12
  %v16 = vstv %s10
  %17 = vst [vmem:[#allocation2] sm:$0x1] %v16
  $region1: #{tpu_custom_call.1} parent=0
    #allocation3 [shape = 'u8[262144]{0}', space=vmem, size = 0x40000, scoped, tag = 'output window, operand 0']
    loop: start=0, step=1, limit=4
    $region2: #{tpu_custom_call.1} parent=1 // loop_pre_header
      _
    $region3: #{tpu_custom_call.1} parent=1 // loop_header
      %s19 = sphi 0, %s23
      %p20 = scmp.ge.s32.totalorder %s19, 4
      %s29 = sphi 0, %s31
      %s32 = sphi 0, %s29
      %s33 = sphi 0, %s32
      %s49 = sphi 0, %s33
      %s55 = sphi 0, %s57
      %s58 = sphi 0, %s55
      %s59 = sphi 0, %s58
      %s75 = sphi 0, %s59
      %s79 = sphi 0, %s79
      %s81 = sphi 0, %s79
      %s82 = sphi 0, %s81
      %s96 = sphi 0, %s82
      %s100 = sphi 0, %s100
      %s102 = sphi 0, %s100
      %s103 = sphi 0, %s102
      %s117 = sphi 0, %s103
      %s121 = sphi 0, %s121
      %s123 = sphi 0, %s121
      %s124 = sphi 0, %s123
      %s138 = sphi 0, %s124
      %s142 = sphi 0, %s142
      %s144 = sphi 0, %s142
      %s145 = sphi 0, %s144
      %s159 = sphi 0, %s145
      %s163 = sphi 0, %s163
      %s165 = sphi 0, %s163
      %s166 = sphi 0, %s165
      %s180 = sphi 0, %s166
      %s184 = sphi 0, %s184
      %s186 = sphi 0, %s184
      %s187 = sphi 0, %s186
      %s201 = sphi 0, %s187
      %s205 = sphi 0, %s205
      %s207 = sphi 0, %s205
      %s208 = sphi 0, %s207
      %s222 = sphi 0, %s208
      %s226 = sphi 0, %s226
      %s228 = sphi 0, %s226
      %s229 = sphi 0, %s228
      %s243 = sphi 0, %s229
      %s247 = sphi 0, %s247
      %s249 = sphi 0, %s247
      %s250 = sphi 0, %s249
      %s264 = sphi 0, %s250
      %s270 = sphi 0, %s272
      %s273 = sphi 0, %s270
      %s274 = sphi 0, %s273
      %s290 = sphi 0, %s274
    $region4: #{tpu_custom_call.1} parent=1 // loop_header_branch
      %22 = sbr.rel (%p20) target = $region8
    $region5: #{tpu_custom_call.1} parent=1 // loop_body
      %s24 = ssub.s32 %s19, 1
      %s25 = ssub.s32 %s19, 2
      %s26 = sadd.s32 %s19, 1
      %s27 = ssub.s32 %s19, %s26
      %p28 = scmp.eq.s32.totalorder %s27, 0
      %s30 = sadd.s32 %s29, 1
      %s31 = scalar_select %p28, %s29, %s30
      %p34 = pneg %p28
      %p35 = scmp.eq.s32.totalorder %s19, 1
      %p36 = por %p34, %p35
      %p37 = scmp.ne.s32.totalorder %s29, %s32
      %p38 = scmp.eq.s32.totalorder %s19, 0
      %p39 = por %p37, %p38
      %p40 = scmp.ne.s32.totalorder %s29, %s32
      %p41 = scmp.eq.s32.totalorder %s24, 1
      %p42 = por %p40, %p41
      %p43 = scmp.ne.s32.totalorder %s32, %s33
      %p44 = scmp.eq.s32.totalorder %s24, 0
      %p45 = por %p43, %p44
      %p46 = scmp.ne.s32.totalorder %s32, %s33
      %p47 = scmp.eq.s32.totalorder %s25, 1
      %p48 = por %p46, %p47
      %p50 = scmp.ne.s32.totalorder %s33, %s49
      %p51 = scmp.eq.s32.totalorder %s25, 0
      %p52 = por %p50, %p51
      %s53 = ssub.s32 %s19, %s26
      %p54 = scmp.eq.s32.totalorder %s53, 0
      %s56 = sadd.s32 %s55, 1
      %s57 = scalar_select %p54, %s55, %s56
      %p60 = pneg %p54
      %p61 = scmp.eq.s32.totalorder %s19, 1
      %p62 = por %p60, %p61
      %p63 = scmp.ne.s32.totalorder %s55, %s58
      %p64 = scmp.eq.s32.totalorder %s19, 0
      %p65 = por %p63, %p64
      %p66 = scmp.ne.s32.totalorder %s55, %s58
      %p67 = scmp.eq.s32.totalorder %s24, 1
      %p68 = por %p66, %p67
      %p69 = scmp.ne.s32.totalorder %s58, %s59
      %p70 = scmp.eq.s32.totalorder %s24, 0
      %p71 = por %p69, %p70
      %p72 = scmp.ne.s32.totalorder %s58, %s59
      %p73 = scmp.eq.s32.totalorder %s25, 1
      %p74 = por %p72, %p73
      %p76 = scmp.ne.s32.totalorder %s59, %s75
      %p77 = scmp.eq.s32.totalorder %s25, 0
      %p78 = por %p76, %p77
      %s80 = sadd.s32 %s79, 1
      %p83 = scmp.eq.s32.totalorder %s19, 1
      %p84 = scmp.ne.s32.totalorder %s79, %s81
      %p85 = scmp.eq.s32.totalorder %s19, 0
      %p86 = por %p84, %p85
      %p87 = scmp.ne.s32.totalorder %s79, %s81
      %p88 = scmp.eq.s32.totalorder %s24, 1
      %p89 = por %p87, %p88
      %p90 = scmp.ne.s32.totalorder %s81, %s82
      %p91 = scmp.eq.s32.totalorder %s24, 0
      %p92 = por %p90, %p91
      %p93 = scmp.ne.s32.totalorder %s81, %s82
      %p94 = scmp.eq.s32.totalorder %s25, 1
      %p95 = por %p93, %p94
      %p97 = scmp.ne.s32.totalorder %s82, %s96
      %p98 = scmp.eq.s32.totalorder %s25, 0
      %p99 = por %p97, %p98
      %s101 = sadd.s32 %s100, 1
      %p104 = scmp.eq.s32.totalorder %s19, 1
      %p105 = scmp.ne.s32.totalorder %s100, %s102
      %p106 = scmp.eq.s32.totalorder %s19, 0
      %p107 = por %p105, %p106
      %p108 = scmp.ne.s32.totalorder %s100, %s102
      %p109 = scmp.eq.s32.totalorder %s24, 1
      %p110 = por %p108, %p109
      %p111 = scmp.ne.s32.totalorder %s102, %s103
      %p112 = scmp.eq.s32.totalorder %s24, 0
      %p113 = por %p111, %p112
      %p114 = scmp.ne.s32.totalorder %s102, %s103
      %p115 = scmp.eq.s32.totalorder %s25, 1
      %p116 = por %p114, %p115
      %p118 = scmp.ne.s32.totalorder %s103, %s117
      %p119 = scmp.eq.s32.totalorder %s25, 0
      %p120 = por %p118, %p119
      %s122 = sadd.s32 %s121, 1
      %p125 = scmp.eq.s32.totalorder %s19, 1
      %p126 = scmp.ne.s32.totalorder %s121, %s123
      %p127 = scmp.eq.s32.totalorder %s19, 0
      %p128 = por %p126, %p127
      %p129 = scmp.ne.s32.totalorder %s121, %s123
      %p130 = scmp.eq.s32.totalorder %s24, 1
      %p131 = por %p129, %p130
      %p132 = scmp.ne.s32.totalorder %s123, %s124
      %p133 = scmp.eq.s32.totalorder %s24, 0
      %p134 = por %p132, %p133
      %p135 = scmp.ne.s32.totalorder %s123, %s124
      %p136 = scmp.eq.s32.totalorder %s25, 1
      %p137 = por %p135, %p136
      %p139 = scmp.ne.s32.totalorder %s124, %s138
      %p140 = scmp.eq.s32.totalorder %s25, 0
      %p141 = por %p139, %p140
      %s143 = sadd.s32 %s142, 1
      %p146 = scmp.eq.s32.totalorder %s19, 1
      %p147 = scmp.ne.s32.totalorder %s142, %s144
      %p148 = scmp.eq.s32.totalorder %s19, 0
      %p149 = por %p147, %p148
      %p150 = scmp.ne.s32.totalorder %s142, %s144
      %p151 = scmp.eq.s32.totalorder %s24, 1
      %p152 = por %p150, %p151
      %p153 = scmp.ne.s32.totalorder %s144, %s145
      %p154 = scmp.eq.s32.totalorder %s24, 0
      %p155 = por %p153, %p154
      %p156 = scmp.ne.s32.totalorder %s144, %s145
      %p157 = scmp.eq.s32.totalorder %s25, 1
      %p158 = por %p156, %p157
      %p160 = scmp.ne.s32.totalorder %s145, %s159
      %p161 = scmp.eq.s32.totalorder %s25, 0
      %p162 = por %p160, %p161
      %s164 = sadd.s32 %s163, 1
      %p167 = scmp.eq.s32.totalorder %s19, 1
      %p168 = scmp.ne.s32.totalorder %s163, %s165
      %p169 = scmp.eq.s32.totalorder %s19, 0
      %p170 = por %p168, %p169
      %p171 = scmp.ne.s32.totalorder %s163, %s165
      %p172 = scmp.eq.s32.totalorder %s24, 1
      %p173 = por %p171, %p172
      %p174 = scmp.ne.s32.totalorder %s165, %s166
      %p175 = scmp.eq.s32.totalorder %s24, 0
      %p176 = por %p174, %p175
      %p177 = scmp.ne.s32.totalorder %s165, %s166
      %p178 = scmp.eq.s32.totalorder %s25, 1
      %p179 = por %p177, %p178
      %p181 = scmp.ne.s32.totalorder %s166, %s180
      %p182 = scmp.eq.s32.totalorder %s25, 0
      %p183 = por %p181, %p182
      %s185 = sadd.s32 %s184, 1
      %p188 = scmp.eq.s32.totalorder %s19, 1
      %p189 = scmp.ne.s32.totalorder %s184, %s186
      %p190 = scmp.eq.s32.totalorder %s19, 0
      %p191 = por %p189, %p190
      %p192 = scmp.ne.s32.totalorder %s184, %s186
      %p193 = scmp.eq.s32.totalorder %s24, 1
      %p194 = por %p192, %p193
      %p195 = scmp.ne.s32.totalorder %s186, %s187
      %p196 = scmp.eq.s32.totalorder %s24, 0
      %p197 = por %p195, %p196
      %p198 = scmp.ne.s32.totalorder %s186, %s187
      %p199 = scmp.eq.s32.totalorder %s25, 1
      %p200 = por %p198, %p199
      %p202 = scmp.ne.s32.totalorder %s187, %s201
      %p203 = scmp.eq.s32.totalorder %s25, 0
      %p204 = por %p202, %p203
      %s206 = sadd.s32 %s205, 1
      %p209 = scmp.eq.s32.totalorder %s19, 1
      %p210 = scmp.ne.s32.totalorder %s205, %s207
      %p211 = scmp.eq.s32.totalorder %s19, 0
      %p212 = por %p210, %p211
      %p213 = scmp.ne.s32.totalorder %s205, %s207
      %p214 = scmp.eq.s32.totalorder %s24, 1
      %p215 = por %p213, %p214
      %p216 = scmp.ne.s32.totalorder %s207, %s208
      %p217 = scmp.eq.s32.totalorder %s24, 0
      %p218 = por %p216, %p217
      %p219 = scmp.ne.s32.totalorder %s207, %s208
      %p220 = scmp.eq.s32.totalorder %s25, 1
      %p221 = por %p219, %p220
      %p223 = scmp.ne.s32.totalorder %s208, %s222
      %p224 = scmp.eq.s32.totalorder %s25, 0
      %p225 = por %p223, %p224
      %s227 = sadd.s32 %s226, 1
      %p230 = scmp.eq.s32.totalorder %s19, 1
      %p231 = scmp.ne.s32.totalorder %s226, %s228
      %p232 = scmp.eq.s32.totalorder %s19, 0
      %p233 = por %p231, %p232
      %p234 = scmp.ne.s32.totalorder %s226, %s228
      %p235 = scmp.eq.s32.totalorder %s24, 1
      %p236 = por %p234, %p235
      %p237 = scmp.ne.s32.totalorder %s228, %s229
      %p238 = scmp.eq.s32.totalorder %s24, 0
      %p239 = por %p237, %p238
      %p240 = scmp.ne.s32.totalorder %s228, %s229
      %p241 = scmp.eq.s32.totalorder %s25, 1
      %p242 = por %p240, %p241
      %p244 = scmp.ne.s32.totalorder %s229, %s243
      %p245 = scmp.eq.s32.totalorder %s25, 0
      %p246 = por %p244, %p245
      %s248 = sadd.s32 %s247, 1
      %p251 = scmp.eq.s32.totalorder %s19, 1
      %p252 = scmp.ne.s32.totalorder %s247, %s249
      %p253 = scmp.eq.s32.totalorder %s19, 0
      %p254 = por %p252, %p253
      %p255 = scmp.ne.s32.totalorder %s247, %s249
      %p256 = scmp.eq.s32.totalorder %s24, 1
      %p257 = por %p255, %p256
      %p258 = scmp.ne.s32.totalorder %s249, %s250
      %p259 = scmp.eq.s32.totalorder %s24, 0
      %p260 = por %p258, %p259
      %p261 = scmp.ne.s32.totalorder %s249, %s250
      %p262 = scmp.eq.s32.totalorder %s25, 1
      %p263 = por %p261, %p262
      %p265 = scmp.ne.s32.totalorder %s250, %s264
      %p266 = scmp.eq.s32.totalorder %s25, 0
      %p267 = por %p265, %p266
      %s268 = ssub.s32 %s19, %s26
      %p269 = scmp.eq.s32.totalorder %s268, 0
      %s271 = sadd.s32 %s270, 1
      %s272 = scalar_select %p269, %s270, %s271
      %p275 = pneg %p269
      %p276 = scmp.eq.s32.totalorder %s19, 1
      %p277 = por %p275, %p276
      %p278 = scmp.ne.s32.totalorder %s270, %s273
      %p279 = scmp.eq.s32.totalorder %s19, 0
      %p280 = por %p278, %p279
      %p281 = scmp.ne.s32.totalorder %s270, %s273
      %p282 = scmp.eq.s32.totalorder %s24, 1
      %p283 = por %p281, %p282
      %p284 = scmp.ne.s32.totalorder %s273, %s274
      %p285 = scmp.eq.s32.totalorder %s24, 0
      %p286 = por %p284, %p285
      %p287 = scmp.ne.s32.totalorder %s273, %s274
      %p288 = scmp.eq.s32.totalorder %s25, 1
      %p289 = por %p287, %p288
      %p291 = scmp.ne.s32.totalorder %s274, %s290
      %p292 = scmp.eq.s32.totalorder %s25, 0
      %p293 = por %p291, %p292
      %p294 = scmp.le.s32.totalorder 1, %s19
      %p295 = scmp.lt.s32.totalorder %s19, 3
      %p296 = pnand %p294, %p295
      %p297 = pneg %p296
      // Predicated region
      $region9: #{tpu_custom_call.1} parent=5 // pred_check
        _
      $region10: #{tpu_custom_call.1} parent=5 // pred_check_branch
        %299 = sbr.rel (%p296) target = $region12
      $region11: #{tpu_custom_call.1} parent=5 // pred_region
        %s300 = ssub.s32 %s19, 1
        // Predicated region
        $region13: #{tpu_custom_call.1} parent=11 // pred_check
          %p301 = pneg %p92
        $region14: #{tpu_custom_call.1} parent=11 // pred_check_branch
          %303 = sbr.rel (%p301) target = $region16
        $region15: #{tpu_custom_call.1} parent=11 // pred_region
          _
        $region16: #{tpu_custom_call.1} parent=11 // pred_fallthru
          _
        // Predicated region
        $region17: #{tpu_custom_call.1} parent=11 // pred_check
          %p304 = pneg %p113
        $region18: #{tpu_custom_call.1} parent=11 // pred_check_branch
          %306 = sbr.rel (%p304) target = $region20
        $region19: #{tpu_custom_call.1} parent=11 // pred_region
          _
        $region20: #{tpu_custom_call.1} parent=11 // pred_fallthru
          _
        // Predicated region
        $region21: #{tpu_custom_call.1} parent=11 // pred_check
          %p307 = pneg %p134
        $region22: #{tpu_custom_call.1} parent=11 // pred_check_branch
          %309 = sbr.rel (%p307) target = $region24
        $region23: #{tpu_custom_call.1} parent=11 // pred_region
          _
        $region24: #{tpu_custom_call.1} parent=11 // pred_fallthru
          _
        // Predicated region
        $region25: #{tpu_custom_call.1} parent=11 // pred_check
          %p310 = pneg %p155
        $region26: #{tpu_custom_call.1} parent=11 // pred_check_branch
          %312 = sbr.rel (%p310) target = $region28
        $region27: #{tpu_custom_call.1} parent=11 // pred_region
          _
        $region28: #{tpu_custom_call.1} parent=11 // pred_fallthru
          _
        // Predicated region
        $region29: #{tpu_custom_call.1} parent=11 // pred_check
          %p313 = pneg %p176
        $region30: #{tpu_custom_call.1} parent=11 // pred_check_branch
          %315 = sbr.rel (%p313) target = $region32
        $region31: #{tpu_custom_call.1} parent=11 // pred_region
          _
        $region32: #{tpu_custom_call.1} parent=11 // pred_fallthru
          _
        // Predicated region
        $region33: #{tpu_custom_call.1} parent=11 // pred_check
          %p316 = pneg %p197
        $region34: #{tpu_custom_call.1} parent=11 // pred_check_branch
          %318 = sbr.rel (%p316) target = $region36
        $region35: #{tpu_custom_call.1} parent=11 // pred_region
          _
        $region36: #{tpu_custom_call.1} parent=11 // pred_fallthru
          _
        // Predicated region
        $region37: #{tpu_custom_call.1} parent=11 // pred_check
          %p319 = pneg %p218
        $region38: #{tpu_custom_call.1} parent=11 // pred_check_branch
          %321 = sbr.rel (%p319) target = $region40
        $region39: #{tpu_custom_call.1} parent=11 // pred_region
          _
        $region40: #{tpu_custom_call.1} parent=11 // pred_fallthru
          _
        // Predicated region
        $region41: #{tpu_custom_call.1} parent=11 // pred_check
          %p322 = pneg %p239
        $region42: #{tpu_custom_call.1} parent=11 // pred_check_branch
          %324 = sbr.rel (%p322) target = $region44
        $region43: #{tpu_custom_call.1} parent=11 // pred_region
          _
        $region44: #{tpu_custom_call.1} parent=11 // pred_fallthru
          _
        // Predicated region
        $region45: #{tpu_custom_call.1} parent=11 // pred_check
          %p325 = pneg %p260
        $region46: #{tpu_custom_call.1} parent=11 // pred_check_branch
          %327 = sbr.rel (%p325) target = $region48
        $region47: #{tpu_custom_call.1} parent=11 // pred_region
          _
        $region48: #{tpu_custom_call.1} parent=11 // pred_fallthru
          _
      $region12: #{tpu_custom_call.1} parent=5 // pred_fallthru
        _
      %p328 = scmp.lt.s32.totalorder %s19, 2
      // Predicated region
      $region49: #{tpu_custom_call.1} parent=5 // pred_check
        %p329 = pneg %p328
      $region50: #{tpu_custom_call.1} parent=5 // pred_check_branch
        %331 = sbr.rel (%p329) target = $region52
      $region51: #{tpu_custom_call.1} parent=5 // pred_region
        // Predicated region
        $region53: #{tpu_custom_call.1} parent=51 // pred_check
          %p332 = pneg %p39
        $region54: #{tpu_custom_call.1} parent=51 // pred_check_branch
          %334 = sbr.rel (%p332) target = $region56
        $region55: #{tpu_custom_call.1} parent=51 // pred_region
          %s335 = smul.u32 32, %s19
          %s336 = ssub.s32 63, %s335
          %p337 = scmp.lt.s32.totalorder %s336, 32
          %s338 = scalar_select %p337, %s336, 32
          %s339 = smul.u32 128, %s338
          %p340 = scmp.lt.s32.totalorder %s335, 62
          %s341 = scalar_select %p340, %s335, 62
          %s342 = smul.addr %s341, 8
          %s343 = scalar_lea.vmem %s0, %s342
          %s344 = smul.u32 32, %s19
          %s345 = ssub.s32 63, %s344
          %p346 = scmp.lt.s32.totalorder %s345, 32
          %s347 = scalar_select %p346, %s345, 32
          %s348 = smul.u32 128, %s347
        $region56: #{tpu_custom_call.1} parent=51 // pred_fallthru
          _
        // Predicated region
        $region57: #{tpu_custom_call.1} parent=51 // pred_check
          %p349 = pneg %p65
        $region58: #{tpu_custom_call.1} parent=51 // pred_check_branch
          %351 = sbr.rel (%p349) target = $region60
        $region59: #{tpu_custom_call.1} parent=51 // pred_region
          %s352 = smul.u32 32, %s19
          %s353 = ssub.s32 63, %s352
          %p354 = scmp.lt.s32.totalorder %s353, 32
          %s355 = scalar_select %p354, %s353, 32
          %s356 = smul.u32 128, %s355
          %p357 = scmp.lt.s32.totalorder %s352, 62
          %s358 = scalar_select %p357, %s352, 62
          %s359 = smul.addr %s358, 8
          %s360 = scalar_lea.vmem %s1, %s359
          %s361 = smul.u32 32, %s19
          %s362 = ssub.s32 63, %s361
          %p363 = scmp.lt.s32.totalorder %s362, 32
          %s364 = scalar_select %p363, %s362, 32
          %s365 = smul.u32 128, %s364
        $region60: #{tpu_custom_call.1} parent=51 // pred_fallthru
          _
      $region52: #{tpu_custom_call.1} parent=5 // pred_fallthru
        _
      %p366 = scmp.le.s32.totalorder 1, %s19
      %p367 = scmp.lt.s32.totalorder %s19, 3
      %p368 = pnand %p366, %p367
      %p369 = pneg %p368
      // Predicated region
      $region61: #{tpu_custom_call.1} parent=5 // pred_check
        _
      $region62: #{tpu_custom_call.1} parent=5 // pred_check_branch
        %371 = sbr.rel (%p368) target = $region64
      $region63: #{tpu_custom_call.1} parent=5 // pred_region
        %s372 = ssub.s32 %s19, 1
        %s373 = smul.u32 32, %s24
        %s374 = ssub.s32 63, %s373
        %p375 = scmp.lt.s32.totalorder %s374, 32
        %s376 = scalar_select %p375, %s374, 32
        %s377 = smul.u32 128, %s376
        %p378 = scmp.lt.s32.totalorder %s373, 62
        %s379 = scalar_select %p378, %s373, 62
        %s380 = smul.addr %s379, 8
        %s381 = scalar_lea.vmem %s0, %s380
        %p382 = pneg %p45
        %p383 = pneg %p42
        %s384 = smul.u32 32, %s24
        %s385 = ssub.s32 63, %s384
        %p386 = scmp.lt.s32.totalorder %s385, 32
        %s387 = scalar_select %p386, %s385, 32
        %s388 = smul.u32 128, %s387
        %p389 = scmp.lt.s32.totalorder %s384, 62
        %s390 = scalar_select %p389, %s384, 62
        %s391 = smul.addr %s390, 8
        %s392 = scalar_lea.vmem %s1, %s391
        %p393 = pneg %p71
        %p394 = pneg %p68
        %p395 = pneg %p92
        %p396 = pneg %p89
        %p397 = pneg %p113
        %p398 = pneg %p110
        %p399 = pneg %p134
        %p400 = pneg %p131
        %p401 = pneg %p155
        %p402 = pneg %p152
        %p403 = pneg %p176
        %p404 = pneg %p173
        %p405 = pneg %p197
        %p406 = pneg %p194
        %p407 = pneg %p218
        %p408 = pneg %p215
        %p409 = pneg %p239
        %p410 = pneg %p236
        %p411 = pneg %p260
        %p412 = pneg %p257
        %p413 = pneg %p286
        %p414 = pneg %p283
        %s415 = sand.u32 %s273, 1
        %s416 = sand.u32 %s273, 1
        %s417 = smul.addr %s416, 256
        %s418 = scalar_lea.vmem [#allocation3], %s417
        %s419 = smul.u32 32, %s24
        %s420 = ssub.s32 63, %s419
        %p421 = scmp.lt.s32.totalorder %s420, 32
        %s422 = scalar_select %p421, %s420, 32
        %s423 = smul.u32 128, %s422
        %p424 = scmp.lt.s32.totalorder %s419, 62
        %s425 = scalar_select %p424, %s419, 62
        %s426 = smul.addr %s425, 8
        %s427 = scalar_lea.vmem %s0, %s426
        %s428 = smul.u32 32, %s24
        %s429 = ssub.s32 63, %s428
        %p430 = scmp.lt.s32.totalorder %s429, 32
        %s431 = scalar_select %p430, %s429, 32
        %s432 = smul.u32 128, %s431
        %s433 = smul.u32 32, %s24
        %s434 = ssub.s32 63, %s433
        %p435 = scmp.lt.s32.totalorder %s434, 32
        %s436 = scalar_select %p435, %s434, 32
        %s437 = smul.u32 128, %s436
        %p438 = scmp.lt.s32.totalorder %s433, 62
        %s439 = scalar_select %p438, %s433, 62
        %s440 = smul.addr %s439, 8
        %s441 = scalar_lea.vmem %s1, %s440
        %s442 = smul.u32 32, %s24
        %s443 = ssub.s32 63, %s442
        %p444 = scmp.lt.s32.totalorder %s443, 32
        %s445 = scalar_select %p444, %s443, 32
        %s446 = smul.u32 128, %s445
        %s447 = smul.u32 32, %s24
        %s448 = ssub.s32 63, %s447
        %p449 = scmp.lt.s32.totalorder %s448, 32
        %s450 = scalar_select %p449, %s448, 32
        %s451 = smul.u32 128, %s450
        %v453 = vld [vmem:[%s427] sm:$0xff]
        %v454 = vld [vmem:[%s427 + $0x8] sm:$0xff]
        %v455 = vld [vmem:[%s427 + $0x10] sm:$0xff]
        %v456 = vld [vmem:[%s427 + $0x18] sm:$0xff]
        %v457 = vld [vmem:[%s427 + $0x20] sm:$0xff]
        %v458 = vld [vmem:[%s427 + $0x28] sm:$0xff]
        %v459 = vld [vmem:[%s427 + $0x30] sm:$0xff]
        %v460 = vld [vmem:[%s427 + $0x38] sm:$0xff]
        %v461 = vld [vmem:[%s427 + $0x40] sm:$0xff]
        %v462 = vld [vmem:[%s427 + $0x48] sm:$0xff]
        %v463 = vld [vmem:[%s427 + $0x50] sm:$0xff]
        %v464 = vld [vmem:[%s427 + $0x58] sm:$0xff]
        %v465 = vld [vmem:[%s427 + $0x60] sm:$0xff]
        %v466 = vld [vmem:[%s427 + $0x68] sm:$0xff]
        %v467 = vld [vmem:[%s427 + $0x70] sm:$0xff]
        %v468 = vld [vmem:[%s427 + $0x78] sm:$0xff]
        %v469 = vld [vmem:[%s427 + $0x80] sm:$0xff]
        %v470 = vld [vmem:[%s427 + $0x88] sm:$0xff]
        %v471 = vld [vmem:[%s427 + $0x90] sm:$0xff]
        %v472 = vld [vmem:[%s427 + $0x98] sm:$0xff]
        %v473 = vld [vmem:[%s427 + $0xa0] sm:$0xff]
        %v474 = vld [vmem:[%s427 + $0xa8] sm:$0xff]
        %v475 = vld [vmem:[%s427 + $0xb0] sm:$0xff]
        %v476 = vld [vmem:[%s427 + $0xb8] sm:$0xff]
        %v477 = vld [vmem:[%s427 + $0xc0] sm:$0xff]
        %v478 = vld [vmem:[%s427 + $0xc8] sm:$0xff]
        %v479 = vld [vmem:[%s427 + $0xd0] sm:$0xff]
        %v480 = vld [vmem:[%s427 + $0xd8] sm:$0xff]
        %v481 = vld [vmem:[%s427 + $0xe0] sm:$0xff]
        %v482 = vld [vmem:[%s427 + $0xe8] sm:$0xff]
        %v483 = vld [vmem:[%s427 + $0xf0] sm:$0xff]
        %v484 = vld [vmem:[%s427 + $0xf8] sm:$0xff]
        %v485 = vld [vmem:[%s2] sm:$0xff]
        %487 = vset.pattern.permute.xlu0 0
        %488 = vperm.xlu0 %487, %v453
        %v489 = vpop.permute.xlu0 %488
        %492 = vset.pattern.permute.xlu0 0
        %493 = vperm.xlu0 %492, %v454
        %v494 = vpop.permute.xlu0 %493
        %497 = vset.pattern.permute.xlu0 0
        %498 = vperm.xlu0 %497, %v455
        %v499 = vpop.permute.xlu0 %498
        %502 = vset.pattern.permute.xlu0 0
        %503 = vperm.xlu0 %502, %v456
        %v504 = vpop.permute.xlu0 %503
        %507 = vset.pattern.permute.xlu0 0
        %508 = vperm.xlu0 %507, %v457
        %v509 = vpop.permute.xlu0 %508
        %512 = vset.pattern.permute.xlu0 0
        %513 = vperm.xlu0 %512, %v458
        %v514 = vpop.permute.xlu0 %513
        %517 = vset.pattern.permute.xlu0 0
        %518 = vperm.xlu0 %517, %v459
        %v519 = vpop.permute.xlu0 %518
        %522 = vset.pattern.permute.xlu0 0
        %523 = vperm.xlu0 %522, %v460
        %v524 = vpop.permute.xlu0 %523
        %527 = vset.pattern.permute.xlu0 0
        %528 = vperm.xlu0 %527, %v461
        %v529 = vpop.permute.xlu0 %528
        %532 = vset.pattern.permute.xlu0 0
        %533 = vperm.xlu0 %532, %v462
        %v534 = vpop.permute.xlu0 %533
        %537 = vset.pattern.permute.xlu0 0
        %538 = vperm.xlu0 %537, %v463
        %v539 = vpop.permute.xlu0 %538
        %542 = vset.pattern.permute.xlu0 0
        %543 = vperm.xlu0 %542, %v464
        %v544 = vpop.permute.xlu0 %543
        %547 = vset.pattern.permute.xlu0 0
        %548 = vperm.xlu0 %547, %v465
        %v549 = vpop.permute.xlu0 %548
        %552 = vset.pattern.permute.xlu0 0
        %553 = vperm.xlu0 %552, %v466
        %v554 = vpop.permute.xlu0 %553
        %557 = vset.pattern.permute.xlu0 0
        %558 = vperm.xlu0 %557, %v467
        %v559 = vpop.permute.xlu0 %558
        %562 = vset.pattern.permute.xlu0 0
        %563 = vperm.xlu0 %562, %v468
        %v564 = vpop.permute.xlu0 %563
        %567 = vset.pattern.permute.xlu0 0
        %568 = vperm.xlu0 %567, %v469
        %v569 = vpop.permute.xlu0 %568
        %572 = vset.pattern.permute.xlu0 0
        %573 = vperm.xlu0 %572, %v470
        %v574 = vpop.permute.xlu0 %573
        %577 = vset.pattern.permute.xlu0 0
        %578 = vperm.xlu0 %577, %v471
        %v579 = vpop.permute.xlu0 %578
        %582 = vset.pattern.permute.xlu0 0
        %583 = vperm.xlu0 %582, %v472
        %v584 = vpop.permute.xlu0 %583
        %587 = vset.pattern.permute.xlu0 0
        %588 = vperm.xlu0 %587, %v473
        %v589 = vpop.permute.xlu0 %588
        %592 = vset.pattern.permute.xlu0 0
        %593 = vperm.xlu0 %592, %v474
        %v594 = vpop.permute.xlu0 %593
        %597 = vset.pattern.permute.xlu0 0
        %598 = vperm.xlu0 %597, %v475
        %v599 = vpop.permute.xlu0 %598
        %602 = vset.pattern.permute.xlu0 0
        %603 = vperm.xlu0 %602, %v476
        %v604 = vpop.permute.xlu0 %603
        %607 = vset.pattern.permute.xlu0 0
        %608 = vperm.xlu0 %607, %v477
        %v609 = vpop.permute.xlu0 %608
        %612 = vset.pattern.permute.xlu0 0
        %613 = vperm.xlu0 %612, %v478
        %v614 = vpop.permute.xlu0 %613
        %617 = vset.pattern.permute.xlu0 0
        %618 = vperm.xlu0 %617, %v479
        %v619 = vpop.permute.xlu0 %618
        %622 = vset.pattern.permute.xlu0 0
        %623 = vperm.xlu0 %622, %v480
        %v624 = vpop.permute.xlu0 %623
        %627 = vset.pattern.permute.xlu0 0
        %628 = vperm.xlu0 %627, %v481
        %v629 = vpop.permute.xlu0 %628
        %632 = vset.pattern.permute.xlu0 0
        %633 = vperm.xlu0 %632, %v482
        %v634 = vpop.permute.xlu0 %633
        %637 = vset.pattern.permute.xlu0 0
        %638 = vperm.xlu0 %637, %v483
        %v639 = vpop.permute.xlu0 %638
        %642 = vset.pattern.permute.xlu0 0
        %643 = vperm.xlu0 %642, %v484
        %v644 = vpop.permute.xlu0 %643
        %v646 = vlaneseq
        %v647 = vshrl.u32 %v646, 7
        %v648 = vsub.s32 0, %v647
        %v649 = vrot.slane %v485, %v648
        %v650 = vmul.f32 %v489, %v649
        %v651 = vmul.f32 %v494, %v649
        %v652 = vmul.f32 %v499, %v649
        %v653 = vmul.f32 %v504, %v649
        %v654 = vmul.f32 %v509, %v649
        %v655 = vmul.f32 %v514, %v649
        %v656 = vmul.f32 %v519, %v649
        %v657 = vmul.f32 %v524, %v649
        %v658 = vmul.f32 %v529, %v649
        %v659 = vmul.f32 %v534, %v649
        %v660 = vmul.f32 %v539, %v649
        %v661 = vmul.f32 %v544, %v649
        %v662 = vmul.f32 %v549, %v649
        %v663 = vmul.f32 %v554, %v649
        %v664 = vmul.f32 %v559, %v649
        %v665 = vmul.f32 %v564, %v649
        %v666 = vmul.f32 %v569, %v649
        %v667 = vmul.f32 %v574, %v649
        %v668 = vmul.f32 %v579, %v649
        %v669 = vmul.f32 %v584, %v649
        %v670 = vmul.f32 %v589, %v649
        %v671 = vmul.f32 %v594, %v649
        %v672 = vmul.f32 %v599, %v649
        %v673 = vmul.f32 %v604, %v649
        %v674 = vmul.f32 %v609, %v649
        %v675 = vmul.f32 %v614, %v649
        %v676 = vmul.f32 %v619, %v649
        %v677 = vmul.f32 %v624, %v649
        %v678 = vmul.f32 %v629, %v649
        %v679 = vmul.f32 %v634, %v649
        %v680 = vmul.f32 %v639, %v649
        %v681 = vmul.f32 %v644, %v649
        %682 = vset.pattern.permute.xlu0 1
        %683 = vperm.xlu0 %682, %v453
        %v684 = vpop.permute.xlu0 %683
        %686 = vset.pattern.permute.xlu0 1
        %687 = vperm.xlu0 %686, %v454
        %v688 = vpop.permute.xlu0 %687
        %690 = vset.pattern.permute.xlu0 1
        %691 = vperm.xlu0 %690, %v455
        %v692 = vpop.permute.xlu0 %691
        %694 = vset.pattern.permute.xlu0 1
        %695 = vperm.xlu0 %694, %v456
        %v696 = vpop.permute.xlu0 %695
        %698 = vset.pattern.permute.xlu0 1
        %699 = vperm.xlu0 %698, %v457
        %v700 = vpop.permute.xlu0 %699
        %702 = vset.pattern.permute.xlu0 1
        %703 = vperm.xlu0 %702, %v458
        %v704 = vpop.permute.xlu0 %703
        %706 = vset.pattern.permute.xlu0 1
        %707 = vperm.xlu0 %706, %v459
        %v708 = vpop.permute.xlu0 %707
        %710 = vset.pattern.permute.xlu0 1
        %711 = vperm.xlu0 %710, %v460
        %v712 = vpop.permute.xlu0 %711
        %714 = vset.pattern.permute.xlu0 1
        %715 = vperm.xlu0 %714, %v461
        %v716 = vpop.permute.xlu0 %715
        %718 = vset.pattern.permute.xlu0 1
        %719 = vperm.xlu0 %718, %v462
        %v720 = vpop.permute.xlu0 %719
        %722 = vset.pattern.permute.xlu0 1
        %723 = vperm.xlu0 %722, %v463
        %v724 = vpop.permute.xlu0 %723
        %726 = vset.pattern.permute.xlu0 1
        %727 = vperm.xlu0 %726, %v464
        %v728 = vpop.permute.xlu0 %727
        %730 = vset.pattern.permute.xlu0 1
        %731 = vperm.xlu0 %730, %v465
        %v732 = vpop.permute.xlu0 %731
        %734 = vset.pattern.permute.xlu0 1
        %735 = vperm.xlu0 %734, %v466
        %v736 = vpop.permute.xlu0 %735
        %738 = vset.pattern.permute.xlu0 1
        %739 = vperm.xlu0 %738, %v467
        %v740 = vpop.permute.xlu0 %739
        %742 = vset.pattern.permute.xlu0 1
        %743 = vperm.xlu0 %742, %v468
        %v744 = vpop.permute.xlu0 %743
        %746 = vset.pattern.permute.xlu0 1
        %747 = vperm.xlu0 %746, %v469
        %v748 = vpop.permute.xlu0 %747
        %750 = vset.pattern.permute.xlu0 1
        %751 = vperm.xlu0 %750, %v470
        %v752 = vpop.permute.xlu0 %751
        %754 = vset.pattern.permute.xlu0 1
        %755 = vperm.xlu0 %754, %v471
        %v756 = vpop.permute.xlu0 %755
        %758 = vset.pattern.permute.xlu0 1
        %759 = vperm.xlu0 %758, %v472
        %v760 = vpop.permute.xlu0 %759
        %762 = vset.pattern.permute.xlu0 1
        %763 = vperm.xlu0 %762, %v473
        %v764 = vpop.permute.xlu0 %763
        %766 = vset.pattern.permute.xlu0 1
        %767 = vperm.xlu0 %766, %v474
        %v768 = vpop.permute.xlu0 %767
        %770 = vset.pattern.permute.xlu0 1
        %771 = vperm.xlu0 %770, %v475
        %v772 = vpop.permute.xlu0 %771
        %774 = vset.pattern.permute.xlu0 1
        %775 = vperm.xlu0 %774, %v476
        %v776 = vpop.permute.xlu0 %775
        %778 = vset.pattern.permute.xlu0 1
        %779 = vperm.xlu0 %778, %v477
        %v780 = vpop.permute.xlu0 %779
        %782 = vset.pattern.permute.xlu0 1
        %783 = vperm.xlu0 %782, %v478
        %v784 = vpop.permute.xlu0 %783
        %786 = vset.pattern.permute.xlu0 1
        %787 = vperm.xlu0 %786, %v479
        %v788 = vpop.permute.xlu0 %787
        %790 = vset.pattern.permute.xlu0 1
        %791 = vperm.xlu0 %790, %v480
        %v792 = vpop.permute.xlu0 %791
        %794 = vset.pattern.permute.xlu0 1
        %795 = vperm.xlu0 %794, %v481
        %v796 = vpop.permute.xlu0 %795
        %798 = vset.pattern.permute.xlu0 1
        %799 = vperm.xlu0 %798, %v482
        %v800 = vpop.permute.xlu0 %799
        %802 = vset.pattern.permute.xlu0 1
        %803 = vperm.xlu0 %802, %v483
        %v804 = vpop.permute.xlu0 %803
        %806 = vset.pattern.permute.xlu0 1
        %807 = vperm.xlu0 %806, %v484
        %v808 = vpop.permute.xlu0 %807
        %v810 = vlaneseq
        %v811 = vshrl.u32 %v810, 7
        %v812 = vsub.s32 1, %v811
        %v813 = vrot.slane %v485, %v812
        %v814 = vmul.f32 %v684, %v813
        %v815 = vmul.f32 %v688, %v813
        %v816 = vmul.f32 %v692, %v813
        %v817 = vmul.f32 %v696, %v813
        %v818 = vmul.f32 %v700, %v813
        %v819 = vmul.f32 %v704, %v813
        %v820 = vmul.f32 %v708, %v813
        %v821 = vmul.f32 %v712, %v813
        %v822 = vmul.f32 %v716, %v813
        %v823 = vmul.f32 %v720, %v813
        %v824 = vmul.f32 %v724, %v813
        %v825 = vmul.f32 %v728, %v813
        %v826 = vmul.f32 %v732, %v813
        %v827 = vmul.f32 %v736, %v813
        %v828 = vmul.f32 %v740, %v813
        %v829 = vmul.f32 %v744, %v813
        %v830 = vmul.f32 %v748, %v813
        %v831 = vmul.f32 %v752, %v813
        %v832 = vmul.f32 %v756, %v813
        %v833 = vmul.f32 %v760, %v813
        %v834 = vmul.f32 %v764, %v813
        %v835 = vmul.f32 %v768, %v813
        %v836 = vmul.f32 %v772, %v813
        %v837 = vmul.f32 %v776, %v813
        %v838 = vmul.f32 %v780, %v813
        %v839 = vmul.f32 %v784, %v813
        %v840 = vmul.f32 %v788, %v813
        %v841 = vmul.f32 %v792, %v813
        %v842 = vmul.f32 %v796, %v813
        %v843 = vmul.f32 %v800, %v813
        %v844 = vmul.f32 %v804, %v813
        %v845 = vmul.f32 %v808, %v813
        %v846 = vadd.f32 %v650, %v814
        %v847 = vadd.f32 %v651, %v815
        %v848 = vadd.f32 %v652, %v816
        %v849 = vadd.f32 %v653, %v817
        %v850 = vadd.f32 %v654, %v818
        %v851 = vadd.f32 %v655, %v819
        %v852 = vadd.f32 %v656, %v820
        %v853 = vadd.f32 %v657, %v821
        %v854 = vadd.f32 %v658, %v822
        %v855 = vadd.f32 %v659, %v823
        %v856 = vadd.f32 %v660, %v824
        %v857 = vadd.f32 %v661, %v825
        %v858 = vadd.f32 %v662, %v826
        %v859 = vadd.f32 %v663, %v827
        %v860 = vadd.f32 %v664, %v828
        %v861 = vadd.f32 %v665, %v829
        %v862 = vadd.f32 %v666, %v830
        %v863 = vadd.f32 %v667, %v831
        %v864 = vadd.f32 %v668, %v832
        %v865 = vadd.f32 %v669, %v833
        %v866 = vadd.f32 %v670, %v834
        %v867 = vadd.f32 %v671, %v835
        %v868 = vadd.f32 %v672, %v836
        %v869 = vadd.f32 %v673, %v837
        %v870 = vadd.f32 %v674, %v838
        %v871 = vadd.f32 %v675, %v839
        %v872 = vadd.f32 %v676, %v840
        %v873 = vadd.f32 %v677, %v841
        %v874 = vadd.f32 %v678, %v842
        %v875 = vadd.f32 %v679, %v843
        %v876 = vadd.f32 %v680, %v844
        %v877 = vadd.f32 %v681, %v845
        %878 = vset.pattern.permute.xlu0 2
        %879 = vperm.xlu0 %878, %v453
        %v880 = vpop.permute.xlu0 %879
        %882 = vset.pattern.permute.xlu0 2
        %883 = vperm.xlu0 %882, %v454
        %v884 = vpop.permute.xlu0 %883
        %886 = vset.pattern.permute.xlu0 2
        %887 = vperm.xlu0 %886, %v455
        %v888 = vpop.permute.xlu0 %887
        %890 = vset.pattern.permute.xlu0 2
        %891 = vperm.xlu0 %890, %v456
        %v892 = vpop.permute.xlu0 %891
        %894 = vset.pattern.permute.xlu0 2
        %895 = vperm.xlu0 %894, %v457
        %v896 = vpop.permute.xlu0 %895
        %898 = vset.pattern.permute.xlu0 2
        %899 = vperm.xlu0 %898, %v458
        %v900 = vpop.permute.xlu0 %899
        %902 = vset.pattern.permute.xlu0 2
        %903 = vperm.xlu0 %902, %v459
        %v904 = vpop.permute.xlu0 %903
        %906 = vset.pattern.permute.xlu0 2
        %907 = vperm.xlu0 %906, %v460
        %v908 = vpop.permute.xlu0 %907
        %910 = vset.pattern.permute.xlu0 2
        %911 = vperm.xlu0 %910, %v461
        %v912 = vpop.permute.xlu0 %911
        %914 = vset.pattern.permute.xlu0 2
        %915 = vperm.xlu0 %914, %v462
        %v916 = vpop.permute.xlu0 %915
        %918 = vset.pattern.permute.xlu0 2
        %919 = vperm.xlu0 %918, %v463
        %v920 = vpop.permute.xlu0 %919
        %922 = vset.pattern.permute.xlu0 2
        %923 = vperm.xlu0 %922, %v464
        %v924 = vpop.permute.xlu0 %923
        %926 = vset.pattern.permute.xlu0 2
        %927 = vperm.xlu0 %926, %v465
        %v928 = vpop.permute.xlu0 %927
        %930 = vset.pattern.permute.xlu0 2
        %931 = vperm.xlu0 %930, %v466
        %v932 = vpop.permute.xlu0 %931
        %934 = vset.pattern.permute.xlu0 2
        %935 = vperm.xlu0 %934, %v467
        %v936 = vpop.permute.xlu0 %935
        %938 = vset.pattern.permute.xlu0 2
        %939 = vperm.xlu0 %938, %v468
        %v940 = vpop.permute.xlu0 %939
        %942 = vset.pattern.permute.xlu0 2
        %943 = vperm.xlu0 %942, %v469
        %v944 = vpop.permute.xlu0 %943
        %946 = vset.pattern.permute.xlu0 2
        %947 = vperm.xlu0 %946, %v470
        %v948 = vpop.permute.xlu0 %947
        %950 = vset.pattern.permute.xlu0 2
        %951 = vperm.xlu0 %950, %v471
        %v952 = vpop.permute.xlu0 %951
        %954 = vset.pattern.permute.xlu0 2
        %955 = vperm.xlu0 %954, %v472
        %v956 = vpop.permute.xlu0 %955
        %958 = vset.pattern.permute.xlu0 2
        %959 = vperm.xlu0 %958, %v473
        %v960 = vpop.permute.xlu0 %959
        %962 = vset.pattern.permute.xlu0 2
        %963 = vperm.xlu0 %962, %v474
        %v964 = vpop.permute.xlu0 %963
        %966 = vset.pattern.permute.xlu0 2
        %967 = vperm.xlu0 %966, %v475
        %v968 = vpop.permute.xlu0 %967
        %970 = vset.pattern.permute.xlu0 2
        %971 = vperm.xlu0 %970, %v476
        %v972 = vpop.permute.xlu0 %971
        %974 = vset.pattern.permute.xlu0 2
        %975 = vperm.xlu0 %974, %v477
        %v976 = vpop.permute.xlu0 %975
        %978 = vset.pattern.permute.xlu0 2
        %979 = vperm.xlu0 %978, %v478
        %v980 = vpop.permute.xlu0 %979
        %982 = vset.pattern.permute.xlu0 2
        %983 = vperm.xlu0 %982, %v479
        %v984 = vpop.permute.xlu0 %983
        %986 = vset.pattern.permute.xlu0 2
        %987 = vperm.xlu0 %986, %v480
        %v988 = vpop.permute.xlu0 %987
        %990 = vset.pattern.permute.xlu0 2
        %991 = vperm.xlu0 %990, %v481
        %v992 = vpop.permute.xlu0 %991
        %994 = vset.pattern.permute.xlu0 2
        %995 = vperm.xlu0 %994, %v482
        %v996 = vpop.permute.xlu0 %995
        %998 = vset.pattern.permute.xlu0 2
        %999 = vperm.xlu0 %998, %v483
        %v1000 = vpop.permute.xlu0 %999
        %1002 = vset.pattern.permute.xlu0 2
        %1003 = vperm.xlu0 %1002, %v484
        %v1004 = vpop.permute.xlu0 %1003
        %v1006 = vlaneseq
        %v1007 = vshrl.u32 %v1006, 7
        %v1008 = vsub.s32 2, %v1007
        %v1009 = vrot.slane %v485, %v1008
        %v1010 = vmul.f32 %v880, %v1009
        %v1011 = vmul.f32 %v884, %v1009
        %v1012 = vmul.f32 %v888, %v1009
        %v1013 = vmul.f32 %v892, %v1009
        %v1014 = vmul.f32 %v896, %v1009
        %v1015 = vmul.f32 %v900, %v1009
        %v1016 = vmul.f32 %v904, %v1009
        %v1017 = vmul.f32 %v908, %v1009
        %v1018 = vmul.f32 %v912, %v1009
        %v1019 = vmul.f32 %v916, %v1009
        %v1020 = vmul.f32 %v920, %v1009
        %v1021 = vmul.f32 %v924, %v1009
        %v1022 = vmul.f32 %v928, %v1009
        %v1023 = vmul.f32 %v932, %v1009
        %v1024 = vmul.f32 %v936, %v1009
        %v1025 = vmul.f32 %v940, %v1009
        %v1026 = vmul.f32 %v944, %v1009
        %v1027 = vmul.f32 %v948, %v1009
        %v1028 = vmul.f32 %v952, %v1009
        %v1029 = vmul.f32 %v956, %v1009
        %v1030 = vmul.f32 %v960, %v1009
        %v1031 = vmul.f32 %v964, %v1009
        %v1032 = vmul.f32 %v968, %v1009
        %v1033 = vmul.f32 %v972, %v1009
        %v1034 = vmul.f32 %v976, %v1009
        %v1035 = vmul.f32 %v980, %v1009
        %v1036 = vmul.f32 %v984, %v1009
        %v1037 = vmul.f32 %v988, %v1009
        %v1038 = vmul.f32 %v992, %v1009
        %v1039 = vmul.f32 %v996, %v1009
        %v1040 = vmul.f32 %v1000, %v1009
        %v1041 = vmul.f32 %v1004, %v1009
        %v1042 = vadd.f32 %v846, %v1010
        %v1043 = vadd.f32 %v847, %v1011
        %v1044 = vadd.f32 %v848, %v1012
        %v1045 = vadd.f32 %v849, %v1013
        %v1046 = vadd.f32 %v850, %v1014
        %v1047 = vadd.f32 %v851, %v1015
        %v1048 = vadd.f32 %v852, %v1016
        %v1049 = vadd.f32 %v853, %v1017
        %v1050 = vadd.f32 %v854, %v1018
        %v1051 = vadd.f32 %v855, %v1019
        %v1052 = vadd.f32 %v856, %v1020
        %v1053 = vadd.f32 %v857, %v1021
        %v1054 = vadd.f32 %v858, %v1022
        %v1055 = vadd.f32 %v859, %v1023
        %v1056 = vadd.f32 %v860, %v1024
        %v1057 = vadd.f32 %v861, %v1025
        %v1058 = vadd.f32 %v862, %v1026
        %v1059 = vadd.f32 %v863, %v1027
        %v1060 = vadd.f32 %v864, %v1028
        %v1061 = vadd.f32 %v865, %v1029
        %v1062 = vadd.f32 %v866, %v1030
        %v1063 = vadd.f32 %v867, %v1031
        %v1064 = vadd.f32 %v868, %v1032
        %v1065 = vadd.f32 %v869, %v1033
        %v1066 = vadd.f32 %v870, %v1034
        %v1067 = vadd.f32 %v871, %v1035
        %v1068 = vadd.f32 %v872, %v1036
        %v1069 = vadd.f32 %v873, %v1037
        %v1070 = vadd.f32 %v874, %v1038
        %v1071 = vadd.f32 %v875, %v1039
        %v1072 = vadd.f32 %v876, %v1040
        %v1073 = vadd.f32 %v877, %v1041
        %1074 = vset.pattern.permute.xlu0 3
        %1075 = vperm.xlu0 %1074, %v453
        %v1076 = vpop.permute.xlu0 %1075
        %1078 = vset.pattern.permute.xlu0 3
        %1079 = vperm.xlu0 %1078, %v454
        %v1080 = vpop.permute.xlu0 %1079
        %1082 = vset.pattern.permute.xlu0 3
        %1083 = vperm.xlu0 %1082, %v455
        %v1084 = vpop.permute.xlu0 %1083
        %1086 = vset.pattern.permute.xlu0 3
        %1087 = vperm.xlu0 %1086, %v456
        %v1088 = vpop.permute.xlu0 %1087
        %1090 = vset.pattern.permute.xlu0 3
        %1091 = vperm.xlu0 %1090, %v457
        %v1092 = vpop.permute.xlu0 %1091
        %1094 = vset.pattern.permute.xlu0 3
        %1095 = vperm.xlu0 %1094, %v458
        %v1096 = vpop.permute.xlu0 %1095
        %1098 = vset.pattern.permute.xlu0 3
        %1099 = vperm.xlu0 %1098, %v459
        %v1100 = vpop.permute.xlu0 %1099
        %1102 = vset.pattern.permute.xlu0 3
        %1103 = vperm.xlu0 %1102, %v460
        %v1104 = vpop.permute.xlu0 %1103
        %1106 = vset.pattern.permute.xlu0 3
        %1107 = vperm.xlu0 %1106, %v461
        %v1108 = vpop.permute.xlu0 %1107
        %1110 = vset.pattern.permute.xlu0 3
        %1111 = vperm.xlu0 %1110, %v462
        %v1112 = vpop.permute.xlu0 %1111
        %1114 = vset.pattern.permute.xlu0 3
        %1115 = vperm.xlu0 %1114, %v463
        %v1116 = vpop.permute.xlu0 %1115
        %1118 = vset.pattern.permute.xlu0 3
        %1119 = vperm.xlu0 %1118, %v464
        %v1120 = vpop.permute.xlu0 %1119
        %1122 = vset.pattern.permute.xlu0 3
        %1123 = vperm.xlu0 %1122, %v465
        %v1124 = vpop.permute.xlu0 %1123
        %1126 = vset.pattern.permute.xlu0 3
        %1127 = vperm.xlu0 %1126, %v466
        %v1128 = vpop.permute.xlu0 %1127
        %1130 = vset.pattern.permute.xlu0 3
        %1131 = vperm.xlu0 %1130, %v467
        %v1132 = vpop.permute.xlu0 %1131
        %1134 = vset.pattern.permute.xlu0 3
        %1135 = vperm.xlu0 %1134, %v468
        %v1136 = vpop.permute.xlu0 %1135
        %1138 = vset.pattern.permute.xlu0 3
        %1139 = vperm.xlu0 %1138, %v469
        %v1140 = vpop.permute.xlu0 %1139
        %1142 = vset.pattern.permute.xlu0 3
        %1143 = vperm.xlu0 %1142, %v470
        %v1144 = vpop.permute.xlu0 %1143
        %1146 = vset.pattern.permute.xlu0 3
        %1147 = vperm.xlu0 %1146, %v471
        %v1148 = vpop.permute.xlu0 %1147
        %1150 = vset.pattern.permute.xlu0 3
        %1151 = vperm.xlu0 %1150, %v472
        %v1152 = vpop.permute.xlu0 %1151
        %1154 = vset.pattern.permute.xlu0 3
        %1155 = vperm.xlu0 %1154, %v473
        %v1156 = vpop.permute.xlu0 %1155
        %1158 = vset.pattern.permute.xlu0 3
        %1159 = vperm.xlu0 %1158, %v474
        %v1160 = vpop.permute.xlu0 %1159
        %1162 = vset.pattern.permute.xlu0 3
        %1163 = vperm.xlu0 %1162, %v475
        %v1164 = vpop.permute.xlu0 %1163
        %1166 = vset.pattern.permute.xlu0 3
        %1167 = vperm.xlu0 %1166, %v476
        %v1168 = vpop.permute.xlu0 %1167
        %1170 = vset.pattern.permute.xlu0 3
        %1171 = vperm.xlu0 %1170, %v477
        %v1172 = vpop.permute.xlu0 %1171
        %1174 = vset.pattern.permute.xlu0 3
        %1175 = vperm.xlu0 %1174, %v478
        %v1176 = vpop.permute.xlu0 %1175
        %1178 = vset.pattern.permute.xlu0 3
        %1179 = vperm.xlu0 %1178, %v479
        %v1180 = vpop.permute.xlu0 %1179
        %1182 = vset.pattern.permute.xlu0 3
        %1183 = vperm.xlu0 %1182, %v480
        %v1184 = vpop.permute.xlu0 %1183
        %1186 = vset.pattern.permute.xlu0 3
        %1187 = vperm.xlu0 %1186, %v481
        %v1188 = vpop.permute.xlu0 %1187
        %1190 = vset.pattern.permute.xlu0 3
        %1191 = vperm.xlu0 %1190, %v482
        %v1192 = vpop.permute.xlu0 %1191
        %1194 = vset.pattern.permute.xlu0 3
        %1195 = vperm.xlu0 %1194, %v483
        %v1196 = vpop.permute.xlu0 %1195
        %1198 = vset.pattern.permute.xlu0 3
        %1199 = vperm.xlu0 %1198, %v484
        %v1200 = vpop.permute.xlu0 %1199
        %v1202 = vlaneseq
        %v1203 = vshrl.u32 %v1202, 7
        %v1204 = vsub.s32 3, %v1203
        %v1205 = vrot.slane %v485, %v1204
        %v1206 = vmul.f32 %v1076, %v1205
        %v1207 = vmul.f32 %v1080, %v1205
        %v1208 = vmul.f32 %v1084, %v1205
        %v1209 = vmul.f32 %v1088, %v1205
        %v1210 = vmul.f32 %v1092, %v1205
        %v1211 = vmul.f32 %v1096, %v1205
        %v1212 = vmul.f32 %v1100, %v1205
        %v1213 = vmul.f32 %v1104, %v1205
        %v1214 = vmul.f32 %v1108, %v1205
        %v1215 = vmul.f32 %v1112, %v1205
        %v1216 = vmul.f32 %v1116, %v1205
        %v1217 = vmul.f32 %v1120, %v1205
        %v1218 = vmul.f32 %v1124, %v1205
        %v1219 = vmul.f32 %v1128, %v1205
        %v1220 = vmul.f32 %v1132, %v1205
        %v1221 = vmul.f32 %v1136, %v1205
        %v1222 = vmul.f32 %v1140, %v1205
        %v1223 = vmul.f32 %v1144, %v1205
        %v1224 = vmul.f32 %v1148, %v1205
        %v1225 = vmul.f32 %v1152, %v1205
        %v1226 = vmul.f32 %v1156, %v1205
        %v1227 = vmul.f32 %v1160, %v1205
        %v1228 = vmul.f32 %v1164, %v1205
        %v1229 = vmul.f32 %v1168, %v1205
        %v1230 = vmul.f32 %v1172, %v1205
        %v1231 = vmul.f32 %v1176, %v1205
        %v1232 = vmul.f32 %v1180, %v1205
        %v1233 = vmul.f32 %v1184, %v1205
        %v1234 = vmul.f32 %v1188, %v1205
        %v1235 = vmul.f32 %v1192, %v1205
        %v1236 = vmul.f32 %v1196, %v1205
        %v1237 = vmul.f32 %v1200, %v1205
        %v1238 = vadd.f32 %v1042, %v1206
        %v1239 = vadd.f32 %v1043, %v1207
        %v1240 = vadd.f32 %v1044, %v1208
        %v1241 = vadd.f32 %v1045, %v1209
        %v1242 = vadd.f32 %v1046, %v1210
        %v1243 = vadd.f32 %v1047, %v1211
        %v1244 = vadd.f32 %v1048, %v1212
        %v1245 = vadd.f32 %v1049, %v1213
        %v1246 = vadd.f32 %v1050, %v1214
        %v1247 = vadd.f32 %v1051, %v1215
        %v1248 = vadd.f32 %v1052, %v1216
        %v1249 = vadd.f32 %v1053, %v1217
        %v1250 = vadd.f32 %v1054, %v1218
        %v1251 = vadd.f32 %v1055, %v1219
        %v1252 = vadd.f32 %v1056, %v1220
        %v1253 = vadd.f32 %v1057, %v1221
        %v1254 = vadd.f32 %v1058, %v1222
        %v1255 = vadd.f32 %v1059, %v1223
        %v1256 = vadd.f32 %v1060, %v1224
        %v1257 = vadd.f32 %v1061, %v1225
        %v1258 = vadd.f32 %v1062, %v1226
        %v1259 = vadd.f32 %v1063, %v1227
        %v1260 = vadd.f32 %v1064, %v1228
        %v1261 = vadd.f32 %v1065, %v1229
        %v1262 = vadd.f32 %v1066, %v1230
        %v1263 = vadd.f32 %v1067, %v1231
        %v1264 = vadd.f32 %v1068, %v1232
        %v1265 = vadd.f32 %v1069, %v1233
        %v1266 = vadd.f32 %v1070, %v1234
        %v1267 = vadd.f32 %v1071, %v1235
        %v1268 = vadd.f32 %v1072, %v1236
        %v1269 = vadd.f32 %v1073, %v1237
        %1270 = vset.pattern.permute.xlu0 4
        %1271 = vperm.xlu0 %1270, %v453
        %v1272 = vpop.permute.xlu0 %1271
        %1274 = vset.pattern.permute.xlu0 4
        %1275 = vperm.xlu0 %1274, %v454
        %v1276 = vpop.permute.xlu0 %1275
        %1278 = vset.pattern.permute.xlu0 4
        %1279 = vperm.xlu0 %1278, %v455
        %v1280 = vpop.permute.xlu0 %1279
        %1282 = vset.pattern.permute.xlu0 4
        %1283 = vperm.xlu0 %1282, %v456
        %v1284 = vpop.permute.xlu0 %1283
        %1286 = vset.pattern.permute.xlu0 4
        %1287 = vperm.xlu0 %1286, %v457
        %v1288 = vpop.permute.xlu0 %1287
        %1290 = vset.pattern.permute.xlu0 4
        %1291 = vperm.xlu0 %1290, %v458
        %v1292 = vpop.permute.xlu0 %1291
        %1294 = vset.pattern.permute.xlu0 4
        %1295 = vperm.xlu0 %1294, %v459
        %v1296 = vpop.permute.xlu0 %1295
        %1298 = vset.pattern.permute.xlu0 4
        %1299 = vperm.xlu0 %1298, %v460
        %v1300 = vpop.permute.xlu0 %1299
        %1302 = vset.pattern.permute.xlu0 4
        %1303 = vperm.xlu0 %1302, %v461
        %v1304 = vpop.permute.xlu0 %1303
        %1306 = vset.pattern.permute.xlu0 4
        %1307 = vperm.xlu0 %1306, %v462
        %v1308 = vpop.permute.xlu0 %1307
        %1310 = vset.pattern.permute.xlu0 4
        %1311 = vperm.xlu0 %1310, %v463
        %v1312 = vpop.permute.xlu0 %1311
        %1314 = vset.pattern.permute.xlu0 4
        %1315 = vperm.xlu0 %1314, %v464
        %v1316 = vpop.permute.xlu0 %1315
        %1318 = vset.pattern.permute.xlu0 4
        %1319 = vperm.xlu0 %1318, %v465
        %v1320 = vpop.permute.xlu0 %1319
        %1322 = vset.pattern.permute.xlu0 4
        %1323 = vperm.xlu0 %1322, %v466
        %v1324 = vpop.permute.xlu0 %1323
        %1326 = vset.pattern.permute.xlu0 4
        %1327 = vperm.xlu0 %1326, %v467
        %v1328 = vpop.permute.xlu0 %1327
        %1330 = vset.pattern.permute.xlu0 4
        %1331 = vperm.xlu0 %1330, %v468
        %v1332 = vpop.permute.xlu0 %1331
        %1334 = vset.pattern.permute.xlu0 4
        %1335 = vperm.xlu0 %1334, %v469
        %v1336 = vpop.permute.xlu0 %1335
        %1338 = vset.pattern.permute.xlu0 4
        %1339 = vperm.xlu0 %1338, %v470
        %v1340 = vpop.permute.xlu0 %1339
        %1342 = vset.pattern.permute.xlu0 4
        %1343 = vperm.xlu0 %1342, %v471
        %v1344 = vpop.permute.xlu0 %1343
        %1346 = vset.pattern.permute.xlu0 4
        %1347 = vperm.xlu0 %1346, %v472
        %v1348 = vpop.permute.xlu0 %1347
        %1350 = vset.pattern.permute.xlu0 4
        %1351 = vperm.xlu0 %1350, %v473
        %v1352 = vpop.permute.xlu0 %1351
        %1354 = vset.pattern.permute.xlu0 4
        %1355 = vperm.xlu0 %1354, %v474
        %v1356 = vpop.permute.xlu0 %1355
        %1358 = vset.pattern.permute.xlu0 4
        %1359 = vperm.xlu0 %1358, %v475
        %v1360 = vpop.permute.xlu0 %1359
        %1362 = vset.pattern.permute.xlu0 4
        %1363 = vperm.xlu0 %1362, %v476
        %v1364 = vpop.permute.xlu0 %1363
        %1366 = vset.pattern.permute.xlu0 4
        %1367 = vperm.xlu0 %1366, %v477
        %v1368 = vpop.permute.xlu0 %1367
        %1370 = vset.pattern.permute.xlu0 4
        %1371 = vperm.xlu0 %1370, %v478
        %v1372 = vpop.permute.xlu0 %1371
        %1374 = vset.pattern.permute.xlu0 4
        %1375 = vperm.xlu0 %1374, %v479
        %v1376 = vpop.permute.xlu0 %1375
        %1378 = vset.pattern.permute.xlu0 4
        %1379 = vperm.xlu0 %1378, %v480
        %v1380 = vpop.permute.xlu0 %1379
        %1382 = vset.pattern.permute.xlu0 4
        %1383 = vperm.xlu0 %1382, %v481
        %v1384 = vpop.permute.xlu0 %1383
        %1386 = vset.pattern.permute.xlu0 4
        %1387 = vperm.xlu0 %1386, %v482
        %v1388 = vpop.permute.xlu0 %1387
        %1390 = vset.pattern.permute.xlu0 4
        %1391 = vperm.xlu0 %1390, %v483
        %v1392 = vpop.permute.xlu0 %1391
        %1394 = vset.pattern.permute.xlu0 4
        %1395 = vperm.xlu0 %1394, %v484
        %v1396 = vpop.permute.xlu0 %1395
        %v1398 = vlaneseq
        %v1399 = vshrl.u32 %v1398, 7
        %v1400 = vsub.s32 4, %v1399
        %v1401 = vrot.slane %v485, %v1400
        %v1402 = vmul.f32 %v1272, %v1401
        %v1403 = vmul.f32 %v1276, %v1401
        %v1404 = vmul.f32 %v1280, %v1401
        %v1405 = vmul.f32 %v1284, %v1401
        %v1406 = vmul.f32 %v1288, %v1401
        %v1407 = vmul.f32 %v1292, %v1401
        %v1408 = vmul.f32 %v1296, %v1401
        %v1409 = vmul.f32 %v1300, %v1401
        %v1410 = vmul.f32 %v1304, %v1401
        %v1411 = vmul.f32 %v1308, %v1401
        %v1412 = vmul.f32 %v1312, %v1401
        %v1413 = vmul.f32 %v1316, %v1401
        %v1414 = vmul.f32 %v1320, %v1401
        %v1415 = vmul.f32 %v1324, %v1401
        %v1416 = vmul.f32 %v1328, %v1401
        %v1417 = vmul.f32 %v1332, %v1401
        %v1418 = vmul.f32 %v1336, %v1401
        %v1419 = vmul.f32 %v1340, %v1401
        %v1420 = vmul.f32 %v1344, %v1401
        %v1421 = vmul.f32 %v1348, %v1401
        %v1422 = vmul.f32 %v1352, %v1401
        %v1423 = vmul.f32 %v1356, %v1401
        %v1424 = vmul.f32 %v1360, %v1401
        %v1425 = vmul.f32 %v1364, %v1401
        %v1426 = vmul.f32 %v1368, %v1401
        %v1427 = vmul.f32 %v1372, %v1401
        %v1428 = vmul.f32 %v1376, %v1401
        %v1429 = vmul.f32 %v1380, %v1401
        %v1430 = vmul.f32 %v1384, %v1401
        %v1431 = vmul.f32 %v1388, %v1401
        %v1432 = vmul.f32 %v1392, %v1401
        %v1433 = vmul.f32 %v1396, %v1401
        %v1434 = vadd.f32 %v1238, %v1402
        %v1435 = vadd.f32 %v1239, %v1403
        %v1436 = vadd.f32 %v1240, %v1404
        %v1437 = vadd.f32 %v1241, %v1405
        %v1438 = vadd.f32 %v1242, %v1406
        %v1439 = vadd.f32 %v1243, %v1407
        %v1440 = vadd.f32 %v1244, %v1408
        %v1441 = vadd.f32 %v1245, %v1409
        %v1442 = vadd.f32 %v1246, %v1410
        %v1443 = vadd.f32 %v1247, %v1411
        %v1444 = vadd.f32 %v1248, %v1412
        %v1445 = vadd.f32 %v1249, %v1413
        %v1446 = vadd.f32 %v1250, %v1414
        %v1447 = vadd.f32 %v1251, %v1415
        %v1448 = vadd.f32 %v1252, %v1416
        %v1449 = vadd.f32 %v1253, %v1417
        %v1450 = vadd.f32 %v1254, %v1418
        %v1451 = vadd.f32 %v1255, %v1419
        %v1452 = vadd.f32 %v1256, %v1420
        %v1453 = vadd.f32 %v1257, %v1421
        %v1454 = vadd.f32 %v1258, %v1422
        %v1455 = vadd.f32 %v1259, %v1423
        %v1456 = vadd.f32 %v1260, %v1424
        %v1457 = vadd.f32 %v1261, %v1425
        %v1458 = vadd.f32 %v1262, %v1426
        %v1459 = vadd.f32 %v1263, %v1427
        %v1460 = vadd.f32 %v1264, %v1428
        %v1461 = vadd.f32 %v1265, %v1429
        %v1462 = vadd.f32 %v1266, %v1430
        %v1463 = vadd.f32 %v1267, %v1431
        %v1464 = vadd.f32 %v1268, %v1432
        %v1465 = vadd.f32 %v1269, %v1433
        %1466 = vset.pattern.permute.xlu0 5
        %1467 = vperm.xlu0 %1466, %v453
        %v1468 = vpop.permute.xlu0 %1467
        %1470 = vset.pattern.permute.xlu0 5
        %1471 = vperm.xlu0 %1470, %v454
        %v1472 = vpop.permute.xlu0 %1471
        %1474 = vset.pattern.permute.xlu0 5
        %1475 = vperm.xlu0 %1474, %v455
        %v1476 = vpop.permute.xlu0 %1475
        %1478 = vset.pattern.permute.xlu0 5
        %1479 = vperm.xlu0 %1478, %v456
        %v1480 = vpop.permute.xlu0 %1479
        %1482 = vset.pattern.permute.xlu0 5
        %1483 = vperm.xlu0 %1482, %v457
        %v1484 = vpop.permute.xlu0 %1483
        %1486 = vset.pattern.permute.xlu0 5
        %1487 = vperm.xlu0 %1486, %v458
        %v1488 = vpop.permute.xlu0 %1487
        %1490 = vset.pattern.permute.xlu0 5
        %1491 = vperm.xlu0 %1490, %v459
        %v1492 = vpop.permute.xlu0 %1491
        %1494 = vset.pattern.permute.xlu0 5
        %1495 = vperm.xlu0 %1494, %v460
        %v1496 = vpop.permute.xlu0 %1495
        %1498 = vset.pattern.permute.xlu0 5
        %1499 = vperm.xlu0 %1498, %v461
        %v1500 = vpop.permute.xlu0 %1499
        %1502 = vset.pattern.permute.xlu0 5
        %1503 = vperm.xlu0 %1502, %v462
        %v1504 = vpop.permute.xlu0 %1503
        %1506 = vset.pattern.permute.xlu0 5
        %1507 = vperm.xlu0 %1506, %v463
        %v1508 = vpop.permute.xlu0 %1507
        %1510 = vset.pattern.permute.xlu0 5
        %1511 = vperm.xlu0 %1510, %v464
        %v1512 = vpop.permute.xlu0 %1511
        %1514 = vset.pattern.permute.xlu0 5
        %1515 = vperm.xlu0 %1514, %v465
        %v1516 = vpop.permute.xlu0 %1515
        %1518 = vset.pattern.permute.xlu0 5
        %1519 = vperm.xlu0 %1518, %v466
        %v1520 = vpop.permute.xlu0 %1519
        %1522 = vset.pattern.permute.xlu0 5
        %1523 = vperm.xlu0 %1522, %v467
        %v1524 = vpop.permute.xlu0 %1523
        %1526 = vset.pattern.permute.xlu0 5
        %1527 = vperm.xlu0 %1526, %v468
        %v1528 = vpop.permute.xlu0 %1527
        %1530 = vset.pattern.permute.xlu0 5
        %1531 = vperm.xlu0 %1530, %v469
        %v1532 = vpop.permute.xlu0 %1531
        %1534 = vset.pattern.permute.xlu0 5
        %1535 = vperm.xlu0 %1534, %v470
        %v1536 = vpop.permute.xlu0 %1535
        %1538 = vset.pattern.permute.xlu0 5
        %1539 = vperm.xlu0 %1538, %v471
        %v1540 = vpop.permute.xlu0 %1539
        %1542 = vset.pattern.permute.xlu0 5
        %1543 = vperm.xlu0 %1542, %v472
        %v1544 = vpop.permute.xlu0 %1543
        %1546 = vset.pattern.permute.xlu0 5
        %1547 = vperm.xlu0 %1546, %v473
        %v1548 = vpop.permute.xlu0 %1547
        %1550 = vset.pattern.permute.xlu0 5
        %1551 = vperm.xlu0 %1550, %v474
        %v1552 = vpop.permute.xlu0 %1551
        %1554 = vset.pattern.permute.xlu0 5
        %1555 = vperm.xlu0 %1554, %v475
        %v1556 = vpop.permute.xlu0 %1555
        %1558 = vset.pattern.permute.xlu0 5
        %1559 = vperm.xlu0 %1558, %v476
        %v1560 = vpop.permute.xlu0 %1559
        %1562 = vset.pattern.permute.xlu0 5
        %1563 = vperm.xlu0 %1562, %v477
        %v1564 = vpop.permute.xlu0 %1563
        %1566 = vset.pattern.permute.xlu0 5
        %1567 = vperm.xlu0 %1566, %v478
        %v1568 = vpop.permute.xlu0 %1567
        %1570 = vset.pattern.permute.xlu0 5
        %1571 = vperm.xlu0 %1570, %v479
        %v1572 = vpop.permute.xlu0 %1571
        %1574 = vset.pattern.permute.xlu0 5
        %1575 = vperm.xlu0 %1574, %v480
        %v1576 = vpop.permute.xlu0 %1575
        %1578 = vset.pattern.permute.xlu0 5
        %1579 = vperm.xlu0 %1578, %v481
        %v1580 = vpop.permute.xlu0 %1579
        %1582 = vset.pattern.permute.xlu0 5
        %1583 = vperm.xlu0 %1582, %v482
        %v1584 = vpop.permute.xlu0 %1583
        %1586 = vset.pattern.permute.xlu0 5
        %1587 = vperm.xlu0 %1586, %v483
        %v1588 = vpop.permute.xlu0 %1587
        %1590 = vset.pattern.permute.xlu0 5
        %1591 = vperm.xlu0 %1590, %v484
        %v1592 = vpop.permute.xlu0 %1591
        %v1594 = vlaneseq
        %v1595 = vshrl.u32 %v1594, 7
        %v1596 = vsub.s32 5, %v1595
        %v1597 = vrot.slane %v485, %v1596
        %v1598 = vmul.f32 %v1468, %v1597
        %v1599 = vmul.f32 %v1472, %v1597
        %v1600 = vmul.f32 %v1476, %v1597
        %v1601 = vmul.f32 %v1480, %v1597
        %v1602 = vmul.f32 %v1484, %v1597
        %v1603 = vmul.f32 %v1488, %v1597
        %v1604 = vmul.f32 %v1492, %v1597
        %v1605 = vmul.f32 %v1496, %v1597
        %v1606 = vmul.f32 %v1500, %v1597
        %v1607 = vmul.f32 %v1504, %v1597
        %v1608 = vmul.f32 %v1508, %v1597
        %v1609 = vmul.f32 %v1512, %v1597
        %v1610 = vmul.f32 %v1516, %v1597
        %v1611 = vmul.f32 %v1520, %v1597
        %v1612 = vmul.f32 %v1524, %v1597
        %v1613 = vmul.f32 %v1528, %v1597
        %v1614 = vmul.f32 %v1532, %v1597
        %v1615 = vmul.f32 %v1536, %v1597
        %v1616 = vmul.f32 %v1540, %v1597
        %v1617 = vmul.f32 %v1544, %v1597
        %v1618 = vmul.f32 %v1548, %v1597
        %v1619 = vmul.f32 %v1552, %v1597
        %v1620 = vmul.f32 %v1556, %v1597
        %v1621 = vmul.f32 %v1560, %v1597
        %v1622 = vmul.f32 %v1564, %v1597
        %v1623 = vmul.f32 %v1568, %v1597
        %v1624 = vmul.f32 %v1572, %v1597
        %v1625 = vmul.f32 %v1576, %v1597
        %v1626 = vmul.f32 %v1580, %v1597
        %v1627 = vmul.f32 %v1584, %v1597
        %v1628 = vmul.f32 %v1588, %v1597
        %v1629 = vmul.f32 %v1592, %v1597
        %v1630 = vadd.f32 %v1434, %v1598
        %v1631 = vadd.f32 %v1435, %v1599
        %v1632 = vadd.f32 %v1436, %v1600
        %v1633 = vadd.f32 %v1437, %v1601
        %v1634 = vadd.f32 %v1438, %v1602
        %v1635 = vadd.f32 %v1439, %v1603
        %v1636 = vadd.f32 %v1440, %v1604
        %v1637 = vadd.f32 %v1441, %v1605
        %v1638 = vadd.f32 %v1442, %v1606
        %v1639 = vadd.f32 %v1443, %v1607
        %v1640 = vadd.f32 %v1444, %v1608
        %v1641 = vadd.f32 %v1445, %v1609
        %v1642 = vadd.f32 %v1446, %v1610
        %v1643 = vadd.f32 %v1447, %v1611
        %v1644 = vadd.f32 %v1448, %v1612
        %v1645 = vadd.f32 %v1449, %v1613
        %v1646 = vadd.f32 %v1450, %v1614
        %v1647 = vadd.f32 %v1451, %v1615
        %v1648 = vadd.f32 %v1452, %v1616
        %v1649 = vadd.f32 %v1453, %v1617
        %v1650 = vadd.f32 %v1454, %v1618
        %v1651 = vadd.f32 %v1455, %v1619
        %v1652 = vadd.f32 %v1456, %v1620
        %v1653 = vadd.f32 %v1457, %v1621
        %v1654 = vadd.f32 %v1458, %v1622
        %v1655 = vadd.f32 %v1459, %v1623
        %v1656 = vadd.f32 %v1460, %v1624
        %v1657 = vadd.f32 %v1461, %v1625
        %v1658 = vadd.f32 %v1462, %v1626
        %v1659 = vadd.f32 %v1463, %v1627
        %v1660 = vadd.f32 %v1464, %v1628
        %v1661 = vadd.f32 %v1465, %v1629
        %1662 = vset.pattern.permute.xlu0 6
        %1663 = vperm.xlu0 %1662, %v453
        %v1664 = vpop.permute.xlu0 %1663
        %1666 = vset.pattern.permute.xlu0 6
        %1667 = vperm.xlu0 %1666, %v454
        %v1668 = vpop.permute.xlu0 %1667
        %1670 = vset.pattern.permute.xlu0 6
        %1671 = vperm.xlu0 %1670, %v455
        %v1672 = vpop.permute.xlu0 %1671
        %1674 = vset.pattern.permute.xlu0 6
        %1675 = vperm.xlu0 %1674, %v456
        %v1676 = vpop.permute.xlu0 %1675
        %1678 = vset.pattern.permute.xlu0 6
        %1679 = vperm.xlu0 %1678, %v457
        %v1680 = vpop.permute.xlu0 %1679
        %1682 = vset.pattern.permute.xlu0 6
        %1683 = vperm.xlu0 %1682, %v458
        %v1684 = vpop.permute.xlu0 %1683
        %1686 = vset.pattern.permute.xlu0 6
        %1687 = vperm.xlu0 %1686, %v459
        %v1688 = vpop.permute.xlu0 %1687
        %1690 = vset.pattern.permute.xlu0 6
        %1691 = vperm.xlu0 %1690, %v460
        %v1692 = vpop.permute.xlu0 %1691
        %1694 = vset.pattern.permute.xlu0 6
        %1695 = vperm.xlu0 %1694, %v461
        %v1696 = vpop.permute.xlu0 %1695
        %1698 = vset.pattern.permute.xlu0 6
        %1699 = vperm.xlu0 %1698, %v462
        %v1700 = vpop.permute.xlu0 %1699
        %1702 = vset.pattern.permute.xlu0 6
        %1703 = vperm.xlu0 %1702, %v463
        %v1704 = vpop.permute.xlu0 %1703
        %1706 = vset.pattern.permute.xlu0 6
        %1707 = vperm.xlu0 %1706, %v464
        %v1708 = vpop.permute.xlu0 %1707
        %1710 = vset.pattern.permute.xlu0 6
        %1711 = vperm.xlu0 %1710, %v465
        %v1712 = vpop.permute.xlu0 %1711
        %1714 = vset.pattern.permute.xlu0 6
        %1715 = vperm.xlu0 %1714, %v466
        %v1716 = vpop.permute.xlu0 %1715
        %1718 = vset.pattern.permute.xlu0 6
        %1719 = vperm.xlu0 %1718, %v467
        %v1720 = vpop.permute.xlu0 %1719
        %1722 = vset.pattern.permute.xlu0 6
        %1723 = vperm.xlu0 %1722, %v468
        %v1724 = vpop.permute.xlu0 %1723
        %1726 = vset.pattern.permute.xlu0 6
        %1727 = vperm.xlu0 %1726, %v469
        %v1728 = vpop.permute.xlu0 %1727
        %1730 = vset.pattern.permute.xlu0 6
        %1731 = vperm.xlu0 %1730, %v470
        %v1732 = vpop.permute.xlu0 %1731
        %1734 = vset.pattern.permute.xlu0 6
        %1735 = vperm.xlu0 %1734, %v471
        %v1736 = vpop.permute.xlu0 %1735
        %1738 = vset.pattern.permute.xlu0 6
        %1739 = vperm.xlu0 %1738, %v472
        %v1740 = vpop.permute.xlu0 %1739
        %1742 = vset.pattern.permute.xlu0 6
        %1743 = vperm.xlu0 %1742, %v473
        %v1744 = vpop.permute.xlu0 %1743
        %1746 = vset.pattern.permute.xlu0 6
        %1747 = vperm.xlu0 %1746, %v474
        %v1748 = vpop.permute.xlu0 %1747
        %1750 = vset.pattern.permute.xlu0 6
        %1751 = vperm.xlu0 %1750, %v475
        %v1752 = vpop.permute.xlu0 %1751
        %1754 = vset.pattern.permute.xlu0 6
        %1755 = vperm.xlu0 %1754, %v476
        %v1756 = vpop.permute.xlu0 %1755
        %1758 = vset.pattern.permute.xlu0 6
        %1759 = vperm.xlu0 %1758, %v477
        %v1760 = vpop.permute.xlu0 %1759
        %1762 = vset.pattern.permute.xlu0 6
        %1763 = vperm.xlu0 %1762, %v478
        %v1764 = vpop.permute.xlu0 %1763
        %1766 = vset.pattern.permute.xlu0 6
        %1767 = vperm.xlu0 %1766, %v479
        %v1768 = vpop.permute.xlu0 %1767
        %1770 = vset.pattern.permute.xlu0 6
        %1771 = vperm.xlu0 %1770, %v480
        %v1772 = vpop.permute.xlu0 %1771
        %1774 = vset.pattern.permute.xlu0 6
        %1775 = vperm.xlu0 %1774, %v481
        %v1776 = vpop.permute.xlu0 %1775
        %1778 = vset.pattern.permute.xlu0 6
        %1779 = vperm.xlu0 %1778, %v482
        %v1780 = vpop.permute.xlu0 %1779
        %1782 = vset.pattern.permute.xlu0 6
        %1783 = vperm.xlu0 %1782, %v483
        %v1784 = vpop.permute.xlu0 %1783
        %1786 = vset.pattern.permute.xlu0 6
        %1787 = vperm.xlu0 %1786, %v484
        %v1788 = vpop.permute.xlu0 %1787
        %v1790 = vlaneseq
        %v1791 = vshrl.u32 %v1790, 7
        %v1792 = vsub.s32 6, %v1791
        %v1793 = vrot.slane %v485, %v1792
        %v1794 = vmul.f32 %v1664, %v1793
        %v1795 = vmul.f32 %v1668, %v1793
        %v1796 = vmul.f32 %v1672, %v1793
        %v1797 = vmul.f32 %v1676, %v1793
        %v1798 = vmul.f32 %v1680, %v1793
        %v1799 = vmul.f32 %v1684, %v1793
        %v1800 = vmul.f32 %v1688, %v1793
        %v1801 = vmul.f32 %v1692, %v1793
        %v1802 = vmul.f32 %v1696, %v1793
        %v1803 = vmul.f32 %v1700, %v1793
        %v1804 = vmul.f32 %v1704, %v1793
        %v1805 = vmul.f32 %v1708, %v1793
        %v1806 = vmul.f32 %v1712, %v1793
        %v1807 = vmul.f32 %v1716, %v1793
        %v1808 = vmul.f32 %v1720, %v1793
        %v1809 = vmul.f32 %v1724, %v1793
        %v1810 = vmul.f32 %v1728, %v1793
        %v1811 = vmul.f32 %v1732, %v1793
        %v1812 = vmul.f32 %v1736, %v1793
        %v1813 = vmul.f32 %v1740, %v1793
        %v1814 = vmul.f32 %v1744, %v1793
        %v1815 = vmul.f32 %v1748, %v1793
        %v1816 = vmul.f32 %v1752, %v1793
        %v1817 = vmul.f32 %v1756, %v1793
        %v1818 = vmul.f32 %v1760, %v1793
        %v1819 = vmul.f32 %v1764, %v1793
        %v1820 = vmul.f32 %v1768, %v1793
        %v1821 = vmul.f32 %v1772, %v1793
        %v1822 = vmul.f32 %v1776, %v1793
        %v1823 = vmul.f32 %v1780, %v1793
        %v1824 = vmul.f32 %v1784, %v1793
        %v1825 = vmul.f32 %v1788, %v1793
        %v1826 = vadd.f32 %v1630, %v1794
        %v1827 = vadd.f32 %v1631, %v1795
        %v1828 = vadd.f32 %v1632, %v1796
        %v1829 = vadd.f32 %v1633, %v1797
        %v1830 = vadd.f32 %v1634, %v1798
        %v1831 = vadd.f32 %v1635, %v1799
        %v1832 = vadd.f32 %v1636, %v1800
        %v1833 = vadd.f32 %v1637, %v1801
        %v1834 = vadd.f32 %v1638, %v1802
        %v1835 = vadd.f32 %v1639, %v1803
        %v1836 = vadd.f32 %v1640, %v1804
        %v1837 = vadd.f32 %v1641, %v1805
        %v1838 = vadd.f32 %v1642, %v1806
        %v1839 = vadd.f32 %v1643, %v1807
        %v1840 = vadd.f32 %v1644, %v1808
        %v1841 = vadd.f32 %v1645, %v1809
        %v1842 = vadd.f32 %v1646, %v1810
        %v1843 = vadd.f32 %v1647, %v1811
        %v1844 = vadd.f32 %v1648, %v1812
        %v1845 = vadd.f32 %v1649, %v1813
        %v1846 = vadd.f32 %v1650, %v1814
        %v1847 = vadd.f32 %v1651, %v1815
        %v1848 = vadd.f32 %v1652, %v1816
        %v1849 = vadd.f32 %v1653, %v1817
        %v1850 = vadd.f32 %v1654, %v1818
        %v1851 = vadd.f32 %v1655, %v1819
        %v1852 = vadd.f32 %v1656, %v1820
        %v1853 = vadd.f32 %v1657, %v1821
        %v1854 = vadd.f32 %v1658, %v1822
        %v1855 = vadd.f32 %v1659, %v1823
        %v1856 = vadd.f32 %v1660, %v1824
        %v1857 = vadd.f32 %v1661, %v1825
        %1858 = vset.pattern.permute.xlu0 7
        %1859 = vperm.xlu0 %1858, %v453
        %v1860 = vpop.permute.xlu0 %1859
        %1862 = vset.pattern.permute.xlu0 7
        %1863 = vperm.xlu0 %1862, %v454
        %v1864 = vpop.permute.xlu0 %1863
        %1866 = vset.pattern.permute.xlu0 7
        %1867 = vperm.xlu0 %1866, %v455
        %v1868 = vpop.permute.xlu0 %1867
        %1870 = vset.pattern.permute.xlu0 7
        %1871 = vperm.xlu0 %1870, %v456
        %v1872 = vpop.permute.xlu0 %1871
        %1874 = vset.pattern.permute.xlu0 7
        %1875 = vperm.xlu0 %1874, %v457
        %v1876 = vpop.permute.xlu0 %1875
        %1878 = vset.pattern.permute.xlu0 7
        %1879 = vperm.xlu0 %1878, %v458
        %v1880 = vpop.permute.xlu0 %1879
        %1882 = vset.pattern.permute.xlu0 7
        %1883 = vperm.xlu0 %1882, %v459
        %v1884 = vpop.permute.xlu0 %1883
        %1886 = vset.pattern.permute.xlu0 7
        %1887 = vperm.xlu0 %1886, %v460
        %v1888 = vpop.permute.xlu0 %1887
        %1890 = vset.pattern.permute.xlu0 7
        %1891 = vperm.xlu0 %1890, %v461
        %v1892 = vpop.permute.xlu0 %1891
        %1894 = vset.pattern.permute.xlu0 7
        %1895 = vperm.xlu0 %1894, %v462
        %v1896 = vpop.permute.xlu0 %1895
        %1898 = vset.pattern.permute.xlu0 7
        %1899 = vperm.xlu0 %1898, %v463
        %v1900 = vpop.permute.xlu0 %1899
        %1902 = vset.pattern.permute.xlu0 7
        %1903 = vperm.xlu0 %1902, %v464
        %v1904 = vpop.permute.xlu0 %1903
        %1906 = vset.pattern.permute.xlu0 7
        %1907 = vperm.xlu0 %1906, %v465
        %v1908 = vpop.permute.xlu0 %1907
        %1910 = vset.pattern.permute.xlu0 7
        %1911 = vperm.xlu0 %1910, %v466
        %v1912 = vpop.permute.xlu0 %1911
        %1914 = vset.pattern.permute.xlu0 7
        %1915 = vperm.xlu0 %1914, %v467
        %v1916 = vpop.permute.xlu0 %1915
        %1918 = vset.pattern.permute.xlu0 7
        %1919 = vperm.xlu0 %1918, %v468
        %v1920 = vpop.permute.xlu0 %1919
        %1922 = vset.pattern.permute.xlu0 7
        %1923 = vperm.xlu0 %1922, %v469
        %v1924 = vpop.permute.xlu0 %1923
        %1926 = vset.pattern.permute.xlu0 7
        %1927 = vperm.xlu0 %1926, %v470
        %v1928 = vpop.permute.xlu0 %1927
        %1930 = vset.pattern.permute.xlu0 7
        %1931 = vperm.xlu0 %1930, %v471
        %v1932 = vpop.permute.xlu0 %1931
        %1934 = vset.pattern.permute.xlu0 7
        %1935 = vperm.xlu0 %1934, %v472
        %v1936 = vpop.permute.xlu0 %1935
        %1938 = vset.pattern.permute.xlu0 7
        %1939 = vperm.xlu0 %1938, %v473
        %v1940 = vpop.permute.xlu0 %1939
        %1942 = vset.pattern.permute.xlu0 7
        %1943 = vperm.xlu0 %1942, %v474
        %v1944 = vpop.permute.xlu0 %1943
        %1946 = vset.pattern.permute.xlu0 7
        %1947 = vperm.xlu0 %1946, %v475
        %v1948 = vpop.permute.xlu0 %1947
        %1950 = vset.pattern.permute.xlu0 7
        %1951 = vperm.xlu0 %1950, %v476
        %v1952 = vpop.permute.xlu0 %1951
        %1954 = vset.pattern.permute.xlu0 7
        %1955 = vperm.xlu0 %1954, %v477
        %v1956 = vpop.permute.xlu0 %1955
        %1958 = vset.pattern.permute.xlu0 7
        %1959 = vperm.xlu0 %1958, %v478
        %v1960 = vpop.permute.xlu0 %1959
        %1962 = vset.pattern.permute.xlu0 7
        %1963 = vperm.xlu0 %1962, %v479
        %v1964 = vpop.permute.xlu0 %1963
        %1966 = vset.pattern.permute.xlu0 7
        %1967 = vperm.xlu0 %1966, %v480
        %v1968 = vpop.permute.xlu0 %1967
        %1970 = vset.pattern.permute.xlu0 7
        %1971 = vperm.xlu0 %1970, %v481
        %v1972 = vpop.permute.xlu0 %1971
        %1974 = vset.pattern.permute.xlu0 7
        %1975 = vperm.xlu0 %1974, %v482
        %v1976 = vpop.permute.xlu0 %1975
        %1978 = vset.pattern.permute.xlu0 7
        %1979 = vperm.xlu0 %1978, %v483
        %v1980 = vpop.permute.xlu0 %1979
        %1982 = vset.pattern.permute.xlu0 7
        %1983 = vperm.xlu0 %1982, %v484
        %v1984 = vpop.permute.xlu0 %1983
        %v1986 = vlaneseq
        %v1987 = vshrl.u32 %v1986, 7
        %v1988 = vsub.s32 7, %v1987
        %v1989 = vrot.slane %v485, %v1988
        %v1990 = vmul.f32 %v1860, %v1989
        %v1991 = vmul.f32 %v1864, %v1989
        %v1992 = vmul.f32 %v1868, %v1989
        %v1993 = vmul.f32 %v1872, %v1989
        %v1994 = vmul.f32 %v1876, %v1989
        %v1995 = vmul.f32 %v1880, %v1989
        %v1996 = vmul.f32 %v1884, %v1989
        %v1997 = vmul.f32 %v1888, %v1989
        %v1998 = vmul.f32 %v1892, %v1989
        %v1999 = vmul.f32 %v1896, %v1989
        %v2000 = vmul.f32 %v1900, %v1989
        %v2001 = vmul.f32 %v1904, %v1989
        %v2002 = vmul.f32 %v1908, %v1989
        %v2003 = vmul.f32 %v1912, %v1989
        %v2004 = vmul.f32 %v1916, %v1989
        %v2005 = vmul.f32 %v1920, %v1989
        %v2006 = vmul.f32 %v1924, %v1989
        %v2007 = vmul.f32 %v1928, %v1989
        %v2008 = vmul.f32 %v1932, %v1989
        %v2009 = vmul.f32 %v1936, %v1989
        %v2010 = vmul.f32 %v1940, %v1989
        %v2011 = vmul.f32 %v1944, %v1989
        %v2012 = vmul.f32 %v1948, %v1989
        %v2013 = vmul.f32 %v1952, %v1989
        %v2014 = vmul.f32 %v1956, %v1989
        %v2015 = vmul.f32 %v1960, %v1989
        %v2016 = vmul.f32 %v1964, %v1989
        %v2017 = vmul.f32 %v1968, %v1989
        %v2018 = vmul.f32 %v1972, %v1989
        %v2019 = vmul.f32 %v1976, %v1989
        %v2020 = vmul.f32 %v1980, %v1989
        %v2021 = vmul.f32 %v1984, %v1989
        %v2022 = vadd.f32 %v1826, %v1990
        %v2023 = vadd.f32 %v1827, %v1991
        %v2024 = vadd.f32 %v1828, %v1992
        %v2025 = vadd.f32 %v1829, %v1993
        %v2026 = vadd.f32 %v1830, %v1994
        %v2027 = vadd.f32 %v1831, %v1995
        %v2028 = vadd.f32 %v1832, %v1996
        %v2029 = vadd.f32 %v1833, %v1997
        %v2030 = vadd.f32 %v1834, %v1998
        %v2031 = vadd.f32 %v1835, %v1999
        %v2032 = vadd.f32 %v1836, %v2000
        %v2033 = vadd.f32 %v1837, %v2001
        %v2034 = vadd.f32 %v1838, %v2002
        %v2035 = vadd.f32 %v1839, %v2003
        %v2036 = vadd.f32 %v1840, %v2004
        %v2037 = vadd.f32 %v1841, %v2005
        %v2038 = vadd.f32 %v1842, %v2006
        %v2039 = vadd.f32 %v1843, %v2007
        %v2040 = vadd.f32 %v1844, %v2008
        %v2041 = vadd.f32 %v1845, %v2009
        %v2042 = vadd.f32 %v1846, %v2010
        %v2043 = vadd.f32 %v1847, %v2011
        %v2044 = vadd.f32 %v1848, %v2012
        %v2045 = vadd.f32 %v1849, %v2013
        %v2046 = vadd.f32 %v1850, %v2014
        %v2047 = vadd.f32 %v1851, %v2015
        %v2048 = vadd.f32 %v1852, %v2016
        %v2049 = vadd.f32 %v1853, %v2017
        %v2050 = vadd.f32 %v1854, %v2018
        %v2051 = vadd.f32 %v1855, %v2019
        %v2052 = vadd.f32 %v1856, %v2020
        %v2053 = vadd.f32 %v1857, %v2021
        %v2054 = vld [vmem:[%s3] sm:$0x1]
        %v2056 = vlaneseq
        %v2057 = vshrl.u32 %v2056, 7
        %v2058 = vsub.s32 0, %v2057
        %v2059 = vrot.slane %v2054, %v2058
        %v2061 = vadd.f32 %v2022, %v2059
        %v2062 = vadd.f32 %v2023, %v2059
        %v2063 = vadd.f32 %v2024, %v2059
        %v2064 = vadd.f32 %v2025, %v2059
        %v2065 = vadd.f32 %v2026, %v2059
        %v2066 = vadd.f32 %v2027, %v2059
        %v2067 = vadd.f32 %v2028, %v2059
        %v2068 = vadd.f32 %v2029, %v2059
        %v2069 = vadd.f32 %v2030, %v2059
        %v2070 = vadd.f32 %v2031, %v2059
        %v2071 = vadd.f32 %v2032, %v2059
        %v2072 = vadd.f32 %v2033, %v2059
        %v2073 = vadd.f32 %v2034, %v2059
        %v2074 = vadd.f32 %v2035, %v2059
        %v2075 = vadd.f32 %v2036, %v2059
        %v2076 = vadd.f32 %v2037, %v2059
        %v2077 = vadd.f32 %v2038, %v2059
        %v2078 = vadd.f32 %v2039, %v2059
        %v2079 = vadd.f32 %v2040, %v2059
        %v2080 = vadd.f32 %v2041, %v2059
        %v2081 = vadd.f32 %v2042, %v2059
        %v2082 = vadd.f32 %v2043, %v2059
        %v2083 = vadd.f32 %v2044, %v2059
        %v2084 = vadd.f32 %v2045, %v2059
        %v2085 = vadd.f32 %v2046, %v2059
        %v2086 = vadd.f32 %v2047, %v2059
        %v2087 = vadd.f32 %v2048, %v2059
        %v2088 = vadd.f32 %v2049, %v2059
        %v2089 = vadd.f32 %v2050, %v2059
        %v2090 = vadd.f32 %v2051, %v2059
        %v2091 = vadd.f32 %v2052, %v2059
        %v2092 = vadd.f32 %v2053, %v2059
        %v2093 = vmax.f32 %v2061, 0.0
        %v2094 = vmax.f32 %v2062, 0.0
        %v2095 = vmax.f32 %v2063, 0.0
        %v2096 = vmax.f32 %v2064, 0.0
        %v2097 = vmax.f32 %v2065, 0.0
        %v2098 = vmax.f32 %v2066, 0.0
        %v2099 = vmax.f32 %v2067, 0.0
        %v2100 = vmax.f32 %v2068, 0.0
        %v2101 = vmax.f32 %v2069, 0.0
        %v2102 = vmax.f32 %v2070, 0.0
        %v2103 = vmax.f32 %v2071, 0.0
        %v2104 = vmax.f32 %v2072, 0.0
        %v2105 = vmax.f32 %v2073, 0.0
        %v2106 = vmax.f32 %v2074, 0.0
        %v2107 = vmax.f32 %v2075, 0.0
        %v2108 = vmax.f32 %v2076, 0.0
        %v2109 = vmax.f32 %v2077, 0.0
        %v2110 = vmax.f32 %v2078, 0.0
        %v2111 = vmax.f32 %v2079, 0.0
        %v2112 = vmax.f32 %v2080, 0.0
        %v2113 = vmax.f32 %v2081, 0.0
        %v2114 = vmax.f32 %v2082, 0.0
        %v2115 = vmax.f32 %v2083, 0.0
        %v2116 = vmax.f32 %v2084, 0.0
        %v2117 = vmax.f32 %v2085, 0.0
        %v2118 = vmax.f32 %v2086, 0.0
        %v2119 = vmax.f32 %v2087, 0.0
        %v2120 = vmax.f32 %v2088, 0.0
        %v2121 = vmax.f32 %v2089, 0.0
        %v2122 = vmax.f32 %v2090, 0.0
        %v2123 = vmax.f32 %v2091, 0.0
        %v2124 = vmax.f32 %v2092, 0.0
        %v2125 = vld [vmem:[%s441] sm:$0xff]
        %v2126 = vld [vmem:[%s441 + $0x8] sm:$0xff]
        %v2127 = vld [vmem:[%s441 + $0x10] sm:$0xff]
        %v2128 = vld [vmem:[%s441 + $0x18] sm:$0xff]
        %v2129 = vld [vmem:[%s441 + $0x20] sm:$0xff]
        %v2130 = vld [vmem:[%s441 + $0x28] sm:$0xff]
        %v2131 = vld [vmem:[%s441 + $0x30] sm:$0xff]
        %v2132 = vld [vmem:[%s441 + $0x38] sm:$0xff]
        %v2133 = vld [vmem:[%s441 + $0x40] sm:$0xff]
        %v2134 = vld [vmem:[%s441 + $0x48] sm:$0xff]
        %v2135 = vld [vmem:[%s441 + $0x50] sm:$0xff]
        %v2136 = vld [vmem:[%s441 + $0x58] sm:$0xff]
        %v2137 = vld [vmem:[%s441 + $0x60] sm:$0xff]
        %v2138 = vld [vmem:[%s441 + $0x68] sm:$0xff]
        %v2139 = vld [vmem:[%s441 + $0x70] sm:$0xff]
        %v2140 = vld [vmem:[%s441 + $0x78] sm:$0xff]
        %v2141 = vld [vmem:[%s441 + $0x80] sm:$0xff]
        %v2142 = vld [vmem:[%s441 + $0x88] sm:$0xff]
        %v2143 = vld [vmem:[%s441 + $0x90] sm:$0xff]
        %v2144 = vld [vmem:[%s441 + $0x98] sm:$0xff]
        %v2145 = vld [vmem:[%s441 + $0xa0] sm:$0xff]
        %v2146 = vld [vmem:[%s441 + $0xa8] sm:$0xff]
        %v2147 = vld [vmem:[%s441 + $0xb0] sm:$0xff]
        %v2148 = vld [vmem:[%s441 + $0xb8] sm:$0xff]
        %v2149 = vld [vmem:[%s441 + $0xc0] sm:$0xff]
        %v2150 = vld [vmem:[%s441 + $0xc8] sm:$0xff]
        %v2151 = vld [vmem:[%s441 + $0xd0] sm:$0xff]
        %v2152 = vld [vmem:[%s441 + $0xd8] sm:$0xff]
        %v2153 = vld [vmem:[%s441 + $0xe0] sm:$0xff]
        %v2154 = vld [vmem:[%s441 + $0xe8] sm:$0xff]
        %v2155 = vld [vmem:[%s441 + $0xf0] sm:$0xff]
        %v2156 = vld [vmem:[%s441 + $0xf8] sm:$0xff]
        %v2157 = vld [vmem:[%s5] sm:$0x3]
        %2159 = vset.pattern.permute.xlu0 0
        %2160 = vperm.xlu0 %2159, %v2125
        %v2161 = vpop.permute.xlu0 %2160
        %2164 = vset.pattern.permute.xlu0 0
        %2165 = vperm.xlu0 %2164, %v2126
        %v2166 = vpop.permute.xlu0 %2165
        %2169 = vset.pattern.permute.xlu0 0
        %2170 = vperm.xlu0 %2169, %v2127
        %v2171 = vpop.permute.xlu0 %2170
        %2174 = vset.pattern.permute.xlu0 0
        %2175 = vperm.xlu0 %2174, %v2128
        %v2176 = vpop.permute.xlu0 %2175
        %2179 = vset.pattern.permute.xlu0 0
        %2180 = vperm.xlu0 %2179, %v2129
        %v2181 = vpop.permute.xlu0 %2180
        %2184 = vset.pattern.permute.xlu0 0
        %2185 = vperm.xlu0 %2184, %v2130
        %v2186 = vpop.permute.xlu0 %2185
        %2189 = vset.pattern.permute.xlu0 0
        %2190 = vperm.xlu0 %2189, %v2131
        %v2191 = vpop.permute.xlu0 %2190
        %2194 = vset.pattern.permute.xlu0 0
        %2195 = vperm.xlu0 %2194, %v2132
        %v2196 = vpop.permute.xlu0 %2195
        %2199 = vset.pattern.permute.xlu0 0
        %2200 = vperm.xlu0 %2199, %v2133
        %v2201 = vpop.permute.xlu0 %2200
        %2204 = vset.pattern.permute.xlu0 0
        %2205 = vperm.xlu0 %2204, %v2134
        %v2206 = vpop.permute.xlu0 %2205
        %2209 = vset.pattern.permute.xlu0 0
        %2210 = vperm.xlu0 %2209, %v2135
        %v2211 = vpop.permute.xlu0 %2210
        %2214 = vset.pattern.permute.xlu0 0
        %2215 = vperm.xlu0 %2214, %v2136
        %v2216 = vpop.permute.xlu0 %2215
        %2219 = vset.pattern.permute.xlu0 0
        %2220 = vperm.xlu0 %2219, %v2137
        %v2221 = vpop.permute.xlu0 %2220
        %2224 = vset.pattern.permute.xlu0 0
        %2225 = vperm.xlu0 %2224, %v2138
        %v2226 = vpop.permute.xlu0 %2225
        %2229 = vset.pattern.permute.xlu0 0
        %2230 = vperm.xlu0 %2229, %v2139
        %v2231 = vpop.permute.xlu0 %2230
        %2234 = vset.pattern.permute.xlu0 0
        %2235 = vperm.xlu0 %2234, %v2140
        %v2236 = vpop.permute.xlu0 %2235
        %2239 = vset.pattern.permute.xlu0 0
        %2240 = vperm.xlu0 %2239, %v2141
        %v2241 = vpop.permute.xlu0 %2240
        %2244 = vset.pattern.permute.xlu0 0
        %2245 = vperm.xlu0 %2244, %v2142
        %v2246 = vpop.permute.xlu0 %2245
        %2249 = vset.pattern.permute.xlu0 0
        %2250 = vperm.xlu0 %2249, %v2143
        %v2251 = vpop.permute.xlu0 %2250
        %2254 = vset.pattern.permute.xlu0 0
        %2255 = vperm.xlu0 %2254, %v2144
        %v2256 = vpop.permute.xlu0 %2255
        %2259 = vset.pattern.permute.xlu0 0
        %2260 = vperm.xlu0 %2259, %v2145
        %v2261 = vpop.permute.xlu0 %2260
        %2264 = vset.pattern.permute.xlu0 0
        %2265 = vperm.xlu0 %2264, %v2146
        %v2266 = vpop.permute.xlu0 %2265
        %2269 = vset.pattern.permute.xlu0 0
        %2270 = vperm.xlu0 %2269, %v2147
        %v2271 = vpop.permute.xlu0 %2270
        %2274 = vset.pattern.permute.xlu0 0
        %2275 = vperm.xlu0 %2274, %v2148
        %v2276 = vpop.permute.xlu0 %2275
        %2279 = vset.pattern.permute.xlu0 0
        %2280 = vperm.xlu0 %2279, %v2149
        %v2281 = vpop.permute.xlu0 %2280
        %2284 = vset.pattern.permute.xlu0 0
        %2285 = vperm.xlu0 %2284, %v2150
        %v2286 = vpop.permute.xlu0 %2285
        %2289 = vset.pattern.permute.xlu0 0
        %2290 = vperm.xlu0 %2289, %v2151
        %v2291 = vpop.permute.xlu0 %2290
        %2294 = vset.pattern.permute.xlu0 0
        %2295 = vperm.xlu0 %2294, %v2152
        %v2296 = vpop.permute.xlu0 %2295
        %2299 = vset.pattern.permute.xlu0 0
        %2300 = vperm.xlu0 %2299, %v2153
        %v2301 = vpop.permute.xlu0 %2300
        %2304 = vset.pattern.permute.xlu0 0
        %2305 = vperm.xlu0 %2304, %v2154
        %v2306 = vpop.permute.xlu0 %2305
        %2309 = vset.pattern.permute.xlu0 0
        %2310 = vperm.xlu0 %2309, %v2155
        %v2311 = vpop.permute.xlu0 %2310
        %2314 = vset.pattern.permute.xlu0 0
        %2315 = vperm.xlu0 %2314, %v2156
        %v2316 = vpop.permute.xlu0 %2315
        %v2318 = vlaneseq
        %v2319 = vshrl.u32 %v2318, 7
        %v2320 = vsub.s32 0, %v2319
        %v2321 = vrot.slane %v2157, %v2320
        %v2322 = vmul.f32 %v2161, %v2321
        %v2323 = vmul.f32 %v2166, %v2321
        %v2324 = vmul.f32 %v2171, %v2321
        %v2325 = vmul.f32 %v2176, %v2321
        %v2326 = vmul.f32 %v2181, %v2321
        %v2327 = vmul.f32 %v2186, %v2321
        %v2328 = vmul.f32 %v2191, %v2321
        %v2329 = vmul.f32 %v2196, %v2321
        %v2330 = vmul.f32 %v2201, %v2321
        %v2331 = vmul.f32 %v2206, %v2321
        %v2332 = vmul.f32 %v2211, %v2321
        %v2333 = vmul.f32 %v2216, %v2321
        %v2334 = vmul.f32 %v2221, %v2321
        %v2335 = vmul.f32 %v2226, %v2321
        %v2336 = vmul.f32 %v2231, %v2321
        %v2337 = vmul.f32 %v2236, %v2321
        %v2338 = vmul.f32 %v2241, %v2321
        %v2339 = vmul.f32 %v2246, %v2321
        %v2340 = vmul.f32 %v2251, %v2321
        %v2341 = vmul.f32 %v2256, %v2321
        %v2342 = vmul.f32 %v2261, %v2321
        %v2343 = vmul.f32 %v2266, %v2321
        %v2344 = vmul.f32 %v2271, %v2321
        %v2345 = vmul.f32 %v2276, %v2321
        %v2346 = vmul.f32 %v2281, %v2321
        %v2347 = vmul.f32 %v2286, %v2321
        %v2348 = vmul.f32 %v2291, %v2321
        %v2349 = vmul.f32 %v2296, %v2321
        %v2350 = vmul.f32 %v2301, %v2321
        %v2351 = vmul.f32 %v2306, %v2321
        %v2352 = vmul.f32 %v2311, %v2321
        %v2353 = vmul.f32 %v2316, %v2321
        %2354 = vset.pattern.permute.xlu0 1
        %2355 = vperm.xlu0 %2354, %v2125
        %v2356 = vpop.permute.xlu0 %2355
        %2358 = vset.pattern.permute.xlu0 1
        %2359 = vperm.xlu0 %2358, %v2126
        %v2360 = vpop.permute.xlu0 %2359
        %2362 = vset.pattern.permute.xlu0 1
        %2363 = vperm.xlu0 %2362, %v2127
        %v2364 = vpop.permute.xlu0 %2363
        %2366 = vset.pattern.permute.xlu0 1
        %2367 = vperm.xlu0 %2366, %v2128
        %v2368 = vpop.permute.xlu0 %2367
        %2370 = vset.pattern.permute.xlu0 1
        %2371 = vperm.xlu0 %2370, %v2129
        %v2372 = vpop.permute.xlu0 %2371
        %2374 = vset.pattern.permute.xlu0 1
        %2375 = vperm.xlu0 %2374, %v2130
        %v2376 = vpop.permute.xlu0 %2375
        %2378 = vset.pattern.permute.xlu0 1
        %2379 = vperm.xlu0 %2378, %v2131
        %v2380 = vpop.permute.xlu0 %2379
        %2382 = vset.pattern.permute.xlu0 1
        %2383 = vperm.xlu0 %2382, %v2132
        %v2384 = vpop.permute.xlu0 %2383
        %2386 = vset.pattern.permute.xlu0 1
        %2387 = vperm.xlu0 %2386, %v2133
        %v2388 = vpop.permute.xlu0 %2387
        %2390 = vset.pattern.permute.xlu0 1
        %2391 = vperm.xlu0 %2390, %v2134
        %v2392 = vpop.permute.xlu0 %2391
        %2394 = vset.pattern.permute.xlu0 1
        %2395 = vperm.xlu0 %2394, %v2135
        %v2396 = vpop.permute.xlu0 %2395
        %2398 = vset.pattern.permute.xlu0 1
        %2399 = vperm.xlu0 %2398, %v2136
        %v2400 = vpop.permute.xlu0 %2399
        %2402 = vset.pattern.permute.xlu0 1
        %2403 = vperm.xlu0 %2402, %v2137
        %v2404 = vpop.permute.xlu0 %2403
        %2406 = vset.pattern.permute.xlu0 1
        %2407 = vperm.xlu0 %2406, %v2138
        %v2408 = vpop.permute.xlu0 %2407
        %2410 = vset.pattern.permute.xlu0 1
        %2411 = vperm.xlu0 %2410, %v2139
        %v2412 = vpop.permute.xlu0 %2411
        %2414 = vset.pattern.permute.xlu0 1
        %2415 = vperm.xlu0 %2414, %v2140
        %v2416 = vpop.permute.xlu0 %2415
        %2418 = vset.pattern.permute.xlu0 1
        %2419 = vperm.xlu0 %2418, %v2141
        %v2420 = vpop.permute.xlu0 %2419
        %2422 = vset.pattern.permute.xlu0 1
        %2423 = vperm.xlu0 %2422, %v2142
        %v2424 = vpop.permute.xlu0 %2423
        %2426 = vset.pattern.permute.xlu0 1
        %2427 = vperm.xlu0 %2426, %v2143
        %v2428 = vpop.permute.xlu0 %2427
        %2430 = vset.pattern.permute.xlu0 1
        %2431 = vperm.xlu0 %2430, %v2144
        %v2432 = vpop.permute.xlu0 %2431
        %2434 = vset.pattern.permute.xlu0 1
        %2435 = vperm.xlu0 %2434, %v2145
        %v2436 = vpop.permute.xlu0 %2435
        %2438 = vset.pattern.permute.xlu0 1
        %2439 = vperm.xlu0 %2438, %v2146
        %v2440 = vpop.permute.xlu0 %2439
        %2442 = vset.pattern.permute.xlu0 1
        %2443 = vperm.xlu0 %2442, %v2147
        %v2444 = vpop.permute.xlu0 %2443
        %2446 = vset.pattern.permute.xlu0 1
        %2447 = vperm.xlu0 %2446, %v2148
        %v2448 = vpop.permute.xlu0 %2447
        %2450 = vset.pattern.permute.xlu0 1
        %2451 = vperm.xlu0 %2450, %v2149
        %v2452 = vpop.permute.xlu0 %2451
        %2454 = vset.pattern.permute.xlu0 1
        %2455 = vperm.xlu0 %2454, %v2150
        %v2456 = vpop.permute.xlu0 %2455
        %2458 = vset.pattern.permute.xlu0 1
        %2459 = vperm.xlu0 %2458, %v2151
        %v2460 = vpop.permute.xlu0 %2459
        %2462 = vset.pattern.permute.xlu0 1
        %2463 = vperm.xlu0 %2462, %v2152
        %v2464 = vpop.permute.xlu0 %2463
        %2466 = vset.pattern.permute.xlu0 1
        %2467 = vperm.xlu0 %2466, %v2153
        %v2468 = vpop.permute.xlu0 %2467
        %2470 = vset.pattern.permute.xlu0 1
        %2471 = vperm.xlu0 %2470, %v2154
        %v2472 = vpop.permute.xlu0 %2471
        %2474 = vset.pattern.permute.xlu0 1
        %2475 = vperm.xlu0 %2474, %v2155
        %v2476 = vpop.permute.xlu0 %2475
        %2478 = vset.pattern.permute.xlu0 1
        %2479 = vperm.xlu0 %2478, %v2156
        %v2480 = vpop.permute.xlu0 %2479
        %v2482 = vlaneseq
        %v2483 = vshrl.u32 %v2482, 7
        %v2484 = vsub.s32 1, %v2483
        %v2485 = vrot.slane %v2157, %v2484
        %v2486 = vmul.f32 %v2356, %v2485
        %v2487 = vmul.f32 %v2360, %v2485
        %v2488 = vmul.f32 %v2364, %v2485
        %v2489 = vmul.f32 %v2368, %v2485
        %v2490 = vmul.f32 %v2372, %v2485
        %v2491 = vmul.f32 %v2376, %v2485
        %v2492 = vmul.f32 %v2380, %v2485
        %v2493 = vmul.f32 %v2384, %v2485
        %v2494 = vmul.f32 %v2388, %v2485
        %v2495 = vmul.f32 %v2392, %v2485
        %v2496 = vmul.f32 %v2396, %v2485
        %v2497 = vmul.f32 %v2400, %v2485
        %v2498 = vmul.f32 %v2404, %v2485
        %v2499 = vmul.f32 %v2408, %v2485
        %v2500 = vmul.f32 %v2412, %v2485
        %v2501 = vmul.f32 %v2416, %v2485
        %v2502 = vmul.f32 %v2420, %v2485
        %v2503 = vmul.f32 %v2424, %v2485
        %v2504 = vmul.f32 %v2428, %v2485
        %v2505 = vmul.f32 %v2432, %v2485
        %v2506 = vmul.f32 %v2436, %v2485
        %v2507 = vmul.f32 %v2440, %v2485
        %v2508 = vmul.f32 %v2444, %v2485
        %v2509 = vmul.f32 %v2448, %v2485
        %v2510 = vmul.f32 %v2452, %v2485
        %v2511 = vmul.f32 %v2456, %v2485
        %v2512 = vmul.f32 %v2460, %v2485
        %v2513 = vmul.f32 %v2464, %v2485
        %v2514 = vmul.f32 %v2468, %v2485
        %v2515 = vmul.f32 %v2472, %v2485
        %v2516 = vmul.f32 %v2476, %v2485
        %v2517 = vmul.f32 %v2480, %v2485
        %v2518 = vadd.f32 %v2322, %v2486
        %v2519 = vadd.f32 %v2323, %v2487
        %v2520 = vadd.f32 %v2324, %v2488
        %v2521 = vadd.f32 %v2325, %v2489
        %v2522 = vadd.f32 %v2326, %v2490
        %v2523 = vadd.f32 %v2327, %v2491
        %v2524 = vadd.f32 %v2328, %v2492
        %v2525 = vadd.f32 %v2329, %v2493
        %v2526 = vadd.f32 %v2330, %v2494
        %v2527 = vadd.f32 %v2331, %v2495
        %v2528 = vadd.f32 %v2332, %v2496
        %v2529 = vadd.f32 %v2333, %v2497
        %v2530 = vadd.f32 %v2334, %v2498
        %v2531 = vadd.f32 %v2335, %v2499
        %v2532 = vadd.f32 %v2336, %v2500
        %v2533 = vadd.f32 %v2337, %v2501
        %v2534 = vadd.f32 %v2338, %v2502
        %v2535 = vadd.f32 %v2339, %v2503
        %v2536 = vadd.f32 %v2340, %v2504
        %v2537 = vadd.f32 %v2341, %v2505
        %v2538 = vadd.f32 %v2342, %v2506
        %v2539 = vadd.f32 %v2343, %v2507
        %v2540 = vadd.f32 %v2344, %v2508
        %v2541 = vadd.f32 %v2345, %v2509
        %v2542 = vadd.f32 %v2346, %v2510
        %v2543 = vadd.f32 %v2347, %v2511
        %v2544 = vadd.f32 %v2348, %v2512
        %v2545 = vadd.f32 %v2349, %v2513
        %v2546 = vadd.f32 %v2350, %v2514
        %v2547 = vadd.f32 %v2351, %v2515
        %v2548 = vadd.f32 %v2352, %v2516
        %v2549 = vadd.f32 %v2353, %v2517
        %v2550 = vpack.c.bf16 %v2094, %v2093
        %v2551 = vpack.c.bf16 %v2096, %v2095
        %v2552 = vpack.c.bf16 %v2098, %v2097
        %v2553 = vpack.c.bf16 %v2100, %v2099
        %v2554 = vpack.c.bf16 %v2102, %v2101
        %v2555 = vpack.c.bf16 %v2104, %v2103
        %v2556 = vpack.c.bf16 %v2106, %v2105
        %v2557 = vpack.c.bf16 %v2108, %v2107
        %v2558 = vpack.c.bf16 %v2110, %v2109
        %v2559 = vpack.c.bf16 %v2112, %v2111
        %v2560 = vpack.c.bf16 %v2114, %v2113
        %v2561 = vpack.c.bf16 %v2116, %v2115
        %v2562 = vpack.c.bf16 %v2118, %v2117
        %v2563 = vpack.c.bf16 %v2120, %v2119
        %v2564 = vpack.c.bf16 %v2122, %v2121
        %v2565 = vpack.c.bf16 %v2124, %v2123
        %v2566 = vld [vmem:[%s4] sm:$0xf]
        %v2567 = vld [vmem:[%s4 + $0x4] sm:$0xf]
        %v2568 = vld [vmem:[%s4 + $0x8] sm:$0xf]
        %v2569 = vld [vmem:[%s4 + $0xc] sm:$0xf]
        %v2570 = vld [vmem:[%s4 + $0x10] sm:$0xf]
        %v2571 = vld [vmem:[%s4 + $0x14] sm:$0xf]
        %v2572 = vld [vmem:[%s4 + $0x18] sm:$0xf]
        %v2573 = vld [vmem:[%s4 + $0x1c] sm:$0xf]
        %v2574 = vld [vmem:[%s4 + $0x20] sm:$0xf]
        %v2575 = vld [vmem:[%s4 + $0x24] sm:$0xf]
        %v2576 = vld [vmem:[%s4 + $0x28] sm:$0xf]
        %v2577 = vld [vmem:[%s4 + $0x2c] sm:$0xf]
        %v2578 = vld [vmem:[%s4 + $0x30] sm:$0xf]
        %v2579 = vld [vmem:[%s4 + $0x34] sm:$0xf]
        %v2580 = vld [vmem:[%s4 + $0x38] sm:$0xf]
        %v2581 = vld [vmem:[%s4 + $0x3c] sm:$0xf]
        %v2598 = vunpack.c.l.b16 %v2566
        %v2599 = vunpack.c.l.b16 %v2567
        %v2600 = vunpack.c.l.b16 %v2568
        %v2601 = vunpack.c.l.b16 %v2569
        %v2602 = vunpack.c.l.b16 %v2570
        %v2603 = vunpack.c.l.b16 %v2571
        %v2604 = vunpack.c.l.b16 %v2572
        %v2605 = vunpack.c.l.b16 %v2573
        %v2606 = vunpack.c.l.b16 %v2574
        %v2607 = vunpack.c.l.b16 %v2575
        %v2608 = vunpack.c.l.b16 %v2576
        %v2609 = vunpack.c.l.b16 %v2577
        %v2610 = vunpack.c.l.b16 %v2578
        %v2611 = vunpack.c.l.b16 %v2579
        %v2612 = vunpack.c.l.b16 %v2580
        %v2613 = vunpack.c.l.b16 %v2581
        %v2614 = vpack.c.b16 %v2599, %v2598
        %v2615 = vpack.c.b16 %v2601, %v2600
        %v2616 = vpack.c.b16 %v2603, %v2602
        %v2617 = vpack.c.b16 %v2605, %v2604
        %v2618 = vpack.c.b16 %v2607, %v2606
        %v2619 = vpack.c.b16 %v2609, %v2608
        %v2620 = vpack.c.b16 %v2611, %v2610
        %v2621 = vpack.c.b16 %v2613, %v2612
        %2630 = vmatprep.subr.bf16.mxu0 0
        %2631 = vmatpush1.bf16.msra.mxu0 %v2621
        %2632 = vmatprep.subr.bf16.mxu0 0
        %2633 = vmatpush1.bf16.msra.mxu0 %v2620
        %2634 = vmatprep.subr.bf16.mxu0 0
        %2635 = vmatpush1.bf16.msra.mxu0 %v2619
        %2636 = vmatprep.subr.bf16.mxu0 0
        %2637 = vmatpush1.bf16.msra.mxu0 %v2618
        %2638 = vmatprep.subr.bf16.mxu0 0
        %2639 = vmatpush1.bf16.msra.mxu0 %v2617
        %2640 = vmatprep.subr.bf16.mxu0 0
        %2641 = vmatpush1.bf16.msra.mxu0 %v2616
        %2642 = vmatprep.subr.bf16.mxu0 0
        %2643 = vmatpush1.bf16.msra.mxu0 %v2615
        %2644 = vmatprep.subr.bf16.mxu0 0
        %2645 = vmatpush1.bf16.msra.mxu0 %v2614
        %2646 = vmatprep.subr.bf16.mxu0 0
        %2647 = vmatpush2.bf16.msra.mxu0 0
        %2648 = vmatprep.subr.bf16.mxu0 0
        %2649 = vmatpush2.bf16.msra.mxu0 0
        %2650 = vmatprep.subr.bf16.mxu0 0
        %2651 = vmatpush2.bf16.msra.mxu0 0
        %2652 = vmatprep.subr.bf16.mxu0 0
        %2653 = vmatpush2.bf16.msra.mxu0 0
        %2654 = vmatprep.subr.bf16.mxu0 0
        %2655 = vmatpush2.bf16.msra.mxu0 0
        %2656 = vmatprep.subr.bf16.mxu0 0
        %2657 = vmatpush2.bf16.msra.mxu0 0
        %2658 = vmatprep.subr.bf16.mxu0 0
        %2659 = vmatpush2.bf16.msra.mxu0 0
        %2660 = vmatprep.subr.bf16.mxu0 0
        %2661 = vmatpush2.bf16.msra.mxu0 0
        %2662 = vmatprep.mubr.bf16.mxu0 0
        %2663 = vmatmul.mubr.bf16.gmra.mxu0 %v2550
        %v2664 = vpop.f32.mrf.mxu0
        %v2665 = vadd.f32 %v2518, %v2664
        %v2666 = vpop.f32.mrf.mxu0
        %v2667 = vpop.f32.mrf.mxu0
        %v2668 = vadd.f32 %v2519, %v2667
        %v2669 = vpop.f32.mrf.mxu0
        %2670 = vmatprep.mubr.bf16.mxu0 0
        %2671 = vmatmul.mubr.bf16.gmra.mxu0 %v2551
        %v2672 = vpop.f32.mrf.mxu0
        %v2673 = vadd.f32 %v2520, %v2672
        %v2674 = vpop.f32.mrf.mxu0
        %v2675 = vpop.f32.mrf.mxu0
        %v2676 = vadd.f32 %v2521, %v2675
        %v2677 = vpop.f32.mrf.mxu0
        %2678 = vmatprep.mubr.bf16.mxu0 0
        %2679 = vmatmul.mubr.bf16.gmra.mxu0 %v2552
        %v2680 = vpop.f32.mrf.mxu0
        %v2681 = vadd.f32 %v2522, %v2680
        %v2682 = vpop.f32.mrf.mxu0
        %v2683 = vpop.f32.mrf.mxu0
        %v2684 = vadd.f32 %v2523, %v2683
        %v2685 = vpop.f32.mrf.mxu0
        %2686 = vmatprep.mubr.bf16.mxu0 0
        %2687 = vmatmul.mubr.bf16.gmra.mxu0 %v2553
        %v2688 = vpop.f32.mrf.mxu0
        %v2689 = vadd.f32 %v2524, %v2688
        %v2690 = vpop.f32.mrf.mxu0
        %v2691 = vpop.f32.mrf.mxu0
        %v2692 = vadd.f32 %v2525, %v2691
        %v2693 = vpop.f32.mrf.mxu0
        %2694 = vmatprep.mubr.bf16.mxu0 0
        %2695 = vmatmul.mubr.bf16.gmra.mxu0 %v2554
        %v2696 = vpop.f32.mrf.mxu0
        %v2697 = vadd.f32 %v2526, %v2696
        %v2698 = vpop.f32.mrf.mxu0
        %v2699 = vpop.f32.mrf.mxu0
        %v2700 = vadd.f32 %v2527, %v2699
        %v2701 = vpop.f32.mrf.mxu0
        %2702 = vmatprep.mubr.bf16.mxu0 0
        %2703 = vmatmul.mubr.bf16.gmra.mxu0 %v2555
        %v2704 = vpop.f32.mrf.mxu0
        %v2705 = vadd.f32 %v2528, %v2704
        %v2706 = vpop.f32.mrf.mxu0
        %v2707 = vpop.f32.mrf.mxu0
        %v2708 = vadd.f32 %v2529, %v2707
        %v2709 = vpop.f32.mrf.mxu0
        %2710 = vmatprep.mubr.bf16.mxu0 0
        %2711 = vmatmul.mubr.bf16.gmra.mxu0 %v2556
        %v2712 = vpop.f32.mrf.mxu0
        %v2713 = vadd.f32 %v2530, %v2712
        %v2714 = vpop.f32.mrf.mxu0
        %v2715 = vpop.f32.mrf.mxu0
        %v2716 = vadd.f32 %v2531, %v2715
        %v2717 = vpop.f32.mrf.mxu0
        %2718 = vmatprep.mubr.bf16.mxu0 0
        %2719 = vmatmul.mubr.bf16.gmra.mxu0 %v2557
        %v2720 = vpop.f32.mrf.mxu0
        %v2721 = vadd.f32 %v2532, %v2720
        %v2722 = vpop.f32.mrf.mxu0
        %v2723 = vpop.f32.mrf.mxu0
        %v2724 = vadd.f32 %v2533, %v2723
        %v2725 = vpop.f32.mrf.mxu0
        %2726 = vmatprep.mubr.bf16.mxu0 0
        %2727 = vmatmul.mubr.bf16.gmra.mxu0 %v2558
        %v2728 = vpop.f32.mrf.mxu0
        %v2729 = vadd.f32 %v2534, %v2728
        %v2730 = vpop.f32.mrf.mxu0
        %v2731 = vpop.f32.mrf.mxu0
        %v2732 = vadd.f32 %v2535, %v2731
        %v2733 = vpop.f32.mrf.mxu0
        %2734 = vmatprep.mubr.bf16.mxu0 0
        %2735 = vmatmul.mubr.bf16.gmra.mxu0 %v2559
        %v2736 = vpop.f32.mrf.mxu0
        %v2737 = vadd.f32 %v2536, %v2736
        %v2738 = vpop.f32.mrf.mxu0
        %v2739 = vpop.f32.mrf.mxu0
        %v2740 = vadd.f32 %v2537, %v2739
        %v2741 = vpop.f32.mrf.mxu0
        %2742 = vmatprep.mubr.bf16.mxu0 0
        %2743 = vmatmul.mubr.bf16.gmra.mxu0 %v2560
        %v2744 = vpop.f32.mrf.mxu0
        %v2745 = vadd.f32 %v2538, %v2744
        %v2746 = vpop.f32.mrf.mxu0
        %v2747 = vpop.f32.mrf.mxu0
        %v2748 = vadd.f32 %v2539, %v2747
        %v2749 = vpop.f32.mrf.mxu0
        %2750 = vmatprep.mubr.bf16.mxu0 0
        %2751 = vmatmul.mubr.bf16.gmra.mxu0 %v2561
        %v2752 = vpop.f32.mrf.mxu0
        %v2753 = vadd.f32 %v2540, %v2752
        %v2754 = vpop.f32.mrf.mxu0
        %v2755 = vpop.f32.mrf.mxu0
        %v2756 = vadd.f32 %v2541, %v2755
        %v2757 = vpop.f32.mrf.mxu0
        %2758 = vmatprep.mubr.bf16.mxu0 0
        %2759 = vmatmul.mubr.bf16.gmra.mxu0 %v2562
        %v2760 = vpop.f32.mrf.mxu0
        %v2761 = vadd.f32 %v2542, %v2760
        %v2762 = vpop.f32.mrf.mxu0
        %v2763 = vpop.f32.mrf.mxu0
        %v2764 = vadd.f32 %v2543, %v2763
        %v2765 = vpop.f32.mrf.mxu0
        %2766 = vmatprep.mubr.bf16.mxu0 0
        %2767 = vmatmul.mubr.bf16.gmra.mxu0 %v2563
        %v2768 = vpop.f32.mrf.mxu0
        %v2769 = vadd.f32 %v2544, %v2768
        %v2770 = vpop.f32.mrf.mxu0
        %v2771 = vpop.f32.mrf.mxu0
        %v2772 = vadd.f32 %v2545, %v2771
        %v2773 = vpop.f32.mrf.mxu0
        %2774 = vmatprep.mubr.bf16.mxu0 0
        %2775 = vmatmul.mubr.bf16.gmra.mxu0 %v2564
        %v2776 = vpop.f32.mrf.mxu0
        %v2777 = vadd.f32 %v2546, %v2776
        %v2778 = vpop.f32.mrf.mxu0
        %v2779 = vpop.f32.mrf.mxu0
        %v2780 = vadd.f32 %v2547, %v2779
        %v2781 = vpop.f32.mrf.mxu0
        %2782 = vmatprep.mubr.bf16.mxu0 0
        %2783 = vmatmul.mubr.bf16.gmra.mxu0 %v2565
        %v2784 = vpop.f32.mrf.mxu0
        %v2785 = vadd.f32 %v2548, %v2784
        %v2786 = vpop.f32.mrf.mxu0
        %v2787 = vpop.f32.mrf.mxu0
        %v2788 = vadd.f32 %v2549, %v2787
        %v2789 = vpop.f32.mrf.mxu0
        %2790 = vdwg.mxu0
        %v2791 = vld [vmem:[%s6] sm:$0x1]
        %v2793 = vlaneseq
        %v2794 = vshrl.u32 %v2793, 7
        %v2795 = vsub.s32 0, %v2794
        %v2796 = vrot.slane %v2791, %v2795
        %v2798 = vadd.f32 %v2665, %v2796
        %v2799 = vadd.f32 %v2668, %v2796
        %v2800 = vadd.f32 %v2673, %v2796
        %v2801 = vadd.f32 %v2676, %v2796
        %v2802 = vadd.f32 %v2681, %v2796
        %v2803 = vadd.f32 %v2684, %v2796
        %v2804 = vadd.f32 %v2689, %v2796
        %v2805 = vadd.f32 %v2692, %v2796
        %v2806 = vadd.f32 %v2697, %v2796
        %v2807 = vadd.f32 %v2700, %v2796
        %v2808 = vadd.f32 %v2705, %v2796
        %v2809 = vadd.f32 %v2708, %v2796
        %v2810 = vadd.f32 %v2713, %v2796
        %v2811 = vadd.f32 %v2716, %v2796
        %v2812 = vadd.f32 %v2721, %v2796
        %v2813 = vadd.f32 %v2724, %v2796
        %v2814 = vadd.f32 %v2729, %v2796
        %v2815 = vadd.f32 %v2732, %v2796
        %v2816 = vadd.f32 %v2737, %v2796
        %v2817 = vadd.f32 %v2740, %v2796
        %v2818 = vadd.f32 %v2745, %v2796
        %v2819 = vadd.f32 %v2748, %v2796
        %v2820 = vadd.f32 %v2753, %v2796
        %v2821 = vadd.f32 %v2756, %v2796
        %v2822 = vadd.f32 %v2761, %v2796
        %v2823 = vadd.f32 %v2764, %v2796
        %v2824 = vadd.f32 %v2769, %v2796
        %v2825 = vadd.f32 %v2772, %v2796
        %v2826 = vadd.f32 %v2777, %v2796
        %v2827 = vadd.f32 %v2780, %v2796
        %v2828 = vadd.f32 %v2785, %v2796
        %v2829 = vadd.f32 %v2788, %v2796
        %v2830 = vmax.f32 %v2798, 0.0
        %v2831 = vmax.f32 %v2799, 0.0
        %v2832 = vmax.f32 %v2800, 0.0
        %v2833 = vmax.f32 %v2801, 0.0
        %v2834 = vmax.f32 %v2802, 0.0
        %v2835 = vmax.f32 %v2803, 0.0
        %v2836 = vmax.f32 %v2804, 0.0
        %v2837 = vmax.f32 %v2805, 0.0
        %v2838 = vmax.f32 %v2806, 0.0
        %v2839 = vmax.f32 %v2807, 0.0
        %v2840 = vmax.f32 %v2808, 0.0
        %v2841 = vmax.f32 %v2809, 0.0
        %v2842 = vmax.f32 %v2810, 0.0
        %v2843 = vmax.f32 %v2811, 0.0
        %v2844 = vmax.f32 %v2812, 0.0
        %v2845 = vmax.f32 %v2813, 0.0
        %v2846 = vmax.f32 %v2814, 0.0
        %v2847 = vmax.f32 %v2815, 0.0
        %v2848 = vmax.f32 %v2816, 0.0
        %v2849 = vmax.f32 %v2817, 0.0
        %v2850 = vmax.f32 %v2818, 0.0
        %v2851 = vmax.f32 %v2819, 0.0
        %v2852 = vmax.f32 %v2820, 0.0
        %v2853 = vmax.f32 %v2821, 0.0
        %v2854 = vmax.f32 %v2822, 0.0
        %v2855 = vmax.f32 %v2823, 0.0
        %v2856 = vmax.f32 %v2824, 0.0
        %v2857 = vmax.f32 %v2825, 0.0
        %v2858 = vmax.f32 %v2826, 0.0
        %v2859 = vmax.f32 %v2827, 0.0
        %v2860 = vmax.f32 %v2828, 0.0
        %v2861 = vmax.f32 %v2829, 0.0
        %v2862 = vpack.c.bf16 %v2831, %v2830
        %v2863 = vpack.c.bf16 %v2833, %v2832
        %v2864 = vpack.c.bf16 %v2835, %v2834
        %v2865 = vpack.c.bf16 %v2837, %v2836
        %v2866 = vpack.c.bf16 %v2839, %v2838
        %v2867 = vpack.c.bf16 %v2841, %v2840
        %v2868 = vpack.c.bf16 %v2843, %v2842
        %v2869 = vpack.c.bf16 %v2845, %v2844
        %v2870 = vpack.c.bf16 %v2847, %v2846
        %v2871 = vpack.c.bf16 %v2849, %v2848
        %v2872 = vpack.c.bf16 %v2851, %v2850
        %v2873 = vpack.c.bf16 %v2853, %v2852
        %v2874 = vpack.c.bf16 %v2855, %v2854
        %v2875 = vpack.c.bf16 %v2857, %v2856
        %v2876 = vpack.c.bf16 %v2859, %v2858
        %v2877 = vpack.c.bf16 %v2861, %v2860
        %v2878 = vld [vmem:[%s7] sm:$0xf]
        %v2879 = vld [vmem:[%s7 + $0x4] sm:$0xf]
        %v2880 = vld [vmem:[%s7 + $0x8] sm:$0xf]
        %v2881 = vld [vmem:[%s7 + $0xc] sm:$0xf]
        %v2882 = vld [vmem:[%s7 + $0x10] sm:$0xf]
        %v2883 = vld [vmem:[%s7 + $0x14] sm:$0xf]
        %v2884 = vld [vmem:[%s7 + $0x18] sm:$0xf]
        %v2885 = vld [vmem:[%s7 + $0x1c] sm:$0xf]
        %v2886 = vld [vmem:[%s7 + $0x20] sm:$0xf]
        %v2887 = vld [vmem:[%s7 + $0x24] sm:$0xf]
        %v2888 = vld [vmem:[%s7 + $0x28] sm:$0xf]
        %v2889 = vld [vmem:[%s7 + $0x2c] sm:$0xf]
        %v2890 = vld [vmem:[%s7 + $0x30] sm:$0xf]
        %v2891 = vld [vmem:[%s7 + $0x34] sm:$0xf]
        %v2892 = vld [vmem:[%s7 + $0x38] sm:$0xf]
        %v2893 = vld [vmem:[%s7 + $0x3c] sm:$0xf]
        %v2894 = vld [vmem:[%s8] sm:$0x1]
        %v2896 = vlaneseq
        %v2897 = vshrl.u32 %v2896, 7
        %v2898 = vsub.s32 0, %v2897
        %v2899 = vrot.slane %v2894, %v2898
        %v2917 = vunpack.c.l.b16 %v2878
        %v2918 = vunpack.c.l.b16 %v2879
        %v2919 = vunpack.c.l.b16 %v2880
        %v2920 = vunpack.c.l.b16 %v2881
        %v2921 = vunpack.c.l.b16 %v2882
        %v2922 = vunpack.c.l.b16 %v2883
        %v2923 = vunpack.c.l.b16 %v2884
        %v2924 = vunpack.c.l.b16 %v2885
        %v2925 = vunpack.c.l.b16 %v2886
        %v2926 = vunpack.c.l.b16 %v2887
        %v2927 = vunpack.c.l.b16 %v2888
        %v2928 = vunpack.c.l.b16 %v2889
        %v2929 = vunpack.c.l.b16 %v2890
        %v2930 = vunpack.c.l.b16 %v2891
        %v2931 = vunpack.c.l.b16 %v2892
        %v2932 = vunpack.c.l.b16 %v2893
        %v2933 = vpack.c.b16 %v2918, %v2917
        %v2934 = vpack.c.b16 %v2920, %v2919
        %v2935 = vpack.c.b16 %v2922, %v2921
        %v2936 = vpack.c.b16 %v2924, %v2923
        %v2937 = vpack.c.b16 %v2926, %v2925
        %v2938 = vpack.c.b16 %v2928, %v2927
        %v2939 = vpack.c.b16 %v2930, %v2929
        %v2940 = vpack.c.b16 %v2932, %v2931
        %2949 = vmatprep.subr.bf16.mxu0 0
        %2950 = vmatpush1.bf16.msra.mxu0 %v2940
        %2951 = vmatprep.subr.bf16.mxu0 0
        %2952 = vmatpush1.bf16.msra.mxu0 %v2939
        %2953 = vmatprep.subr.bf16.mxu0 0
        %2954 = vmatpush1.bf16.msra.mxu0 %v2938
        %2955 = vmatprep.subr.bf16.mxu0 0
        %2956 = vmatpush1.bf16.msra.mxu0 %v2937
        %2957 = vmatprep.subr.bf16.mxu0 0
        %2958 = vmatpush1.bf16.msra.mxu0 %v2936
        %2959 = vmatprep.subr.bf16.mxu0 0
        %2960 = vmatpush1.bf16.msra.mxu0 %v2935
        %2961 = vmatprep.subr.bf16.mxu0 0
        %2962 = vmatpush1.bf16.msra.mxu0 %v2934
        %2963 = vmatprep.subr.bf16.mxu0 0
        %2964 = vmatpush1.bf16.msra.mxu0 %v2933
        %2965 = vmatprep.subr.bf16.mxu0 0
        %2966 = vmatpush2.bf16.msra.mxu0 0
        %2967 = vmatprep.subr.bf16.mxu0 0
        %2968 = vmatpush2.bf16.msra.mxu0 0
        %2969 = vmatprep.subr.bf16.mxu0 0
        %2970 = vmatpush2.bf16.msra.mxu0 0
        %2971 = vmatprep.subr.bf16.mxu0 0
        %2972 = vmatpush2.bf16.msra.mxu0 0
        %2973 = vmatprep.subr.bf16.mxu0 0
        %2974 = vmatpush2.bf16.msra.mxu0 0
        %2975 = vmatprep.subr.bf16.mxu0 0
        %2976 = vmatpush2.bf16.msra.mxu0 0
        %2977 = vmatprep.subr.bf16.mxu0 0
        %2978 = vmatpush2.bf16.msra.mxu0 0
        %2979 = vmatprep.subr.bf16.mxu0 0
        %2980 = vmatpush2.bf16.msra.mxu0 0
        %2981 = vmatprep.mubr.bf16.mxu0 0
        %2982 = vmatmul.mubr.bf16.gmra.mxu0 %v2862
        %v2983 = vpop.f32.mrf.mxu0
        %v2984 = vadd.f32 %v2899, %v2983
        %v2985 = vpop.f32.mrf.mxu0
        %v2986 = vpop.f32.mrf.mxu0
        %v2987 = vadd.f32 %v2899, %v2986
        %v2988 = vpop.f32.mrf.mxu0
        %2989 = vmatprep.mubr.bf16.mxu0 0
        %2990 = vmatmul.mubr.bf16.gmra.mxu0 %v2863
        %v2991 = vpop.f32.mrf.mxu0
        %v2992 = vadd.f32 %v2899, %v2991
        %v2993 = vpop.f32.mrf.mxu0
        %v2994 = vpop.f32.mrf.mxu0
        %v2995 = vadd.f32 %v2899, %v2994
        %v2996 = vpop.f32.mrf.mxu0
        %2997 = vmatprep.mubr.bf16.mxu0 0
        %2998 = vmatmul.mubr.bf16.gmra.mxu0 %v2864
        %v2999 = vpop.f32.mrf.mxu0
        %v3000 = vadd.f32 %v2899, %v2999
        %v3001 = vpop.f32.mrf.mxu0
        %v3002 = vpop.f32.mrf.mxu0
        %v3003 = vadd.f32 %v2899, %v3002
        %v3004 = vpop.f32.mrf.mxu0
        %3005 = vmatprep.mubr.bf16.mxu0 0
        %3006 = vmatmul.mubr.bf16.gmra.mxu0 %v2865
        %v3007 = vpop.f32.mrf.mxu0
        %v3008 = vadd.f32 %v2899, %v3007
        %v3009 = vpop.f32.mrf.mxu0
        %v3010 = vpop.f32.mrf.mxu0
        %v3011 = vadd.f32 %v2899, %v3010
        %v3012 = vpop.f32.mrf.mxu0
        %3013 = vmatprep.mubr.bf16.mxu0 0
        %3014 = vmatmul.mubr.bf16.gmra.mxu0 %v2866
        %v3015 = vpop.f32.mrf.mxu0
        %v3016 = vadd.f32 %v2899, %v3015
        %v3017 = vpop.f32.mrf.mxu0
        %v3018 = vpop.f32.mrf.mxu0
        %v3019 = vadd.f32 %v2899, %v3018
        %v3020 = vpop.f32.mrf.mxu0
        %3021 = vmatprep.mubr.bf16.mxu0 0
        %3022 = vmatmul.mubr.bf16.gmra.mxu0 %v2867
        %v3023 = vpop.f32.mrf.mxu0
        %v3024 = vadd.f32 %v2899, %v3023
        %v3025 = vpop.f32.mrf.mxu0
        %v3026 = vpop.f32.mrf.mxu0
        %v3027 = vadd.f32 %v2899, %v3026
        %v3028 = vpop.f32.mrf.mxu0
        %3029 = vmatprep.mubr.bf16.mxu0 0
        %3030 = vmatmul.mubr.bf16.gmra.mxu0 %v2868
        %v3031 = vpop.f32.mrf.mxu0
        %v3032 = vadd.f32 %v2899, %v3031
        %v3033 = vpop.f32.mrf.mxu0
        %v3034 = vpop.f32.mrf.mxu0
        %v3035 = vadd.f32 %v2899, %v3034
        %v3036 = vpop.f32.mrf.mxu0
        %3037 = vmatprep.mubr.bf16.mxu0 0
        %3038 = vmatmul.mubr.bf16.gmra.mxu0 %v2869
        %v3039 = vpop.f32.mrf.mxu0
        %v3040 = vadd.f32 %v2899, %v3039
        %v3041 = vpop.f32.mrf.mxu0
        %v3042 = vpop.f32.mrf.mxu0
        %v3043 = vadd.f32 %v2899, %v3042
        %v3044 = vpop.f32.mrf.mxu0
        %3045 = vmatprep.mubr.bf16.mxu0 0
        %3046 = vmatmul.mubr.bf16.gmra.mxu0 %v2870
        %v3047 = vpop.f32.mrf.mxu0
        %v3048 = vadd.f32 %v2899, %v3047
        %v3049 = vpop.f32.mrf.mxu0
        %v3050 = vpop.f32.mrf.mxu0
        %v3051 = vadd.f32 %v2899, %v3050
        %v3052 = vpop.f32.mrf.mxu0
        %3053 = vmatprep.mubr.bf16.mxu0 0
        %3054 = vmatmul.mubr.bf16.gmra.mxu0 %v2871
        %v3055 = vpop.f32.mrf.mxu0
        %v3056 = vadd.f32 %v2899, %v3055
        %v3057 = vpop.f32.mrf.mxu0
        %v3058 = vpop.f32.mrf.mxu0
        %v3059 = vadd.f32 %v2899, %v3058
        %v3060 = vpop.f32.mrf.mxu0
        %3061 = vmatprep.mubr.bf16.mxu0 0
        %3062 = vmatmul.mubr.bf16.gmra.mxu0 %v2872
        %v3063 = vpop.f32.mrf.mxu0
        %v3064 = vadd.f32 %v2899, %v3063
        %v3065 = vpop.f32.mrf.mxu0
        %v3066 = vpop.f32.mrf.mxu0
        %v3067 = vadd.f32 %v2899, %v3066
        %v3068 = vpop.f32.mrf.mxu0
        %3069 = vmatprep.mubr.bf16.mxu0 0
        %3070 = vmatmul.mubr.bf16.gmra.mxu0 %v2873
        %v3071 = vpop.f32.mrf.mxu0
        %v3072 = vadd.f32 %v2899, %v3071
        %v3073 = vpop.f32.mrf.mxu0
        %v3074 = vpop.f32.mrf.mxu0
        %v3075 = vadd.f32 %v2899, %v3074
        %v3076 = vpop.f32.mrf.mxu0
        %3077 = vmatprep.mubr.bf16.mxu0 0
        %3078 = vmatmul.mubr.bf16.gmra.mxu0 %v2874
        %v3079 = vpop.f32.mrf.mxu0
        %v3080 = vadd.f32 %v2899, %v3079
        %v3081 = vpop.f32.mrf.mxu0
        %v3082 = vpop.f32.mrf.mxu0
        %v3083 = vadd.f32 %v2899, %v3082
        %v3084 = vpop.f32.mrf.mxu0
        %3085 = vmatprep.mubr.bf16.mxu0 0
        %3086 = vmatmul.mubr.bf16.gmra.mxu0 %v2875
        %v3087 = vpop.f32.mrf.mxu0
        %v3088 = vadd.f32 %v2899, %v3087
        %v3089 = vpop.f32.mrf.mxu0
        %v3090 = vpop.f32.mrf.mxu0
        %v3091 = vadd.f32 %v2899, %v3090
        %v3092 = vpop.f32.mrf.mxu0
        %3093 = vmatprep.mubr.bf16.mxu0 0
        %3094 = vmatmul.mubr.bf16.gmra.mxu0 %v2876
        %v3095 = vpop.f32.mrf.mxu0
        %v3096 = vadd.f32 %v2899, %v3095
        %v3097 = vpop.f32.mrf.mxu0
        %v3098 = vpop.f32.mrf.mxu0
        %v3099 = vadd.f32 %v2899, %v3098
        %v3100 = vpop.f32.mrf.mxu0
        %3101 = vmatprep.mubr.bf16.mxu0 0
        %3102 = vmatmul.mubr.bf16.gmra.mxu0 %v2877
        %v3103 = vpop.f32.mrf.mxu0
        %v3104 = vadd.f32 %v2899, %v3103
        %v3105 = vpop.f32.mrf.mxu0
        %v3106 = vpop.f32.mrf.mxu0
        %v3107 = vadd.f32 %v2899, %v3106
        %v3108 = vpop.f32.mrf.mxu0
        %3109 = vdwg.mxu0
        %v3110 = vmax.f32 %v2984, 0.0
        %v3111 = vmax.f32 %v2987, 0.0
        %v3112 = vmax.f32 %v2992, 0.0
        %v3113 = vmax.f32 %v2995, 0.0
        %v3114 = vmax.f32 %v3000, 0.0
        %v3115 = vmax.f32 %v3003, 0.0
        %v3116 = vmax.f32 %v3008, 0.0
        %v3117 = vmax.f32 %v3011, 0.0
        %v3118 = vmax.f32 %v3016, 0.0
        %v3119 = vmax.f32 %v3019, 0.0
        %v3120 = vmax.f32 %v3024, 0.0
        %v3121 = vmax.f32 %v3027, 0.0
        %v3122 = vmax.f32 %v3032, 0.0
        %v3123 = vmax.f32 %v3035, 0.0
        %v3124 = vmax.f32 %v3040, 0.0
        %v3125 = vmax.f32 %v3043, 0.0
        %v3126 = vmax.f32 %v3048, 0.0
        %v3127 = vmax.f32 %v3051, 0.0
        %v3128 = vmax.f32 %v3056, 0.0
        %v3129 = vmax.f32 %v3059, 0.0
        %v3130 = vmax.f32 %v3064, 0.0
        %v3131 = vmax.f32 %v3067, 0.0
        %v3132 = vmax.f32 %v3072, 0.0
        %v3133 = vmax.f32 %v3075, 0.0
        %v3134 = vmax.f32 %v3080, 0.0
        %v3135 = vmax.f32 %v3083, 0.0
        %v3136 = vmax.f32 %v3088, 0.0
        %v3137 = vmax.f32 %v3091, 0.0
        %v3138 = vmax.f32 %v3096, 0.0
        %v3139 = vmax.f32 %v3099, 0.0
        %v3140 = vmax.f32 %v3104, 0.0
        %v3141 = vmax.f32 %v3107, 0.0
        %v3142 = vld [vmem:[%s9] sm:$0x1]
        %v3144 = vlaneseq
        %v3145 = vshrl.u32 %v3144, 7
        %v3146 = vsub.s32 0, %v3145
        %v3147 = vrot.slane %v3142, %v3146
        %v3149 = vmul.f32 %v3110, %v3147
        %v3150 = vmul.f32 %v3111, %v3147
        %v3151 = vmul.f32 %v3112, %v3147
        %v3152 = vmul.f32 %v3113, %v3147
        %v3153 = vmul.f32 %v3114, %v3147
        %v3154 = vmul.f32 %v3115, %v3147
        %v3155 = vmul.f32 %v3116, %v3147
        %v3156 = vmul.f32 %v3117, %v3147
        %v3157 = vmul.f32 %v3118, %v3147
        %v3158 = vmul.f32 %v3119, %v3147
        %v3159 = vmul.f32 %v3120, %v3147
        %v3160 = vmul.f32 %v3121, %v3147
        %v3161 = vmul.f32 %v3122, %v3147
        %v3162 = vmul.f32 %v3123, %v3147
        %v3163 = vmul.f32 %v3124, %v3147
        %v3164 = vmul.f32 %v3125, %v3147
        %v3165 = vmul.f32 %v3126, %v3147
        %v3166 = vmul.f32 %v3127, %v3147
        %v3167 = vmul.f32 %v3128, %v3147
        %v3168 = vmul.f32 %v3129, %v3147
        %v3169 = vmul.f32 %v3130, %v3147
        %v3170 = vmul.f32 %v3131, %v3147
        %v3171 = vmul.f32 %v3132, %v3147
        %v3172 = vmul.f32 %v3133, %v3147
        %v3173 = vmul.f32 %v3134, %v3147
        %v3174 = vmul.f32 %v3135, %v3147
        %v3175 = vmul.f32 %v3136, %v3147
        %v3176 = vmul.f32 %v3137, %v3147
        %v3177 = vmul.f32 %v3138, %v3147
        %v3178 = vmul.f32 %v3139, %v3147
        %v3179 = vmul.f32 %v3140, %v3147
        %v3180 = vmul.f32 %v3141, %v3147
        %3181 = vadd.xlane.f32.xlu0 %v3149
        %v3182 = vpop.xlane.xlu0 %3181
        %3183 = vadd.xlane.f32.xlu0 %v3150
        %v3184 = vpop.xlane.xlu0 %3183
        %3185 = vadd.xlane.f32.xlu0 %v3151
        %v3186 = vpop.xlane.xlu0 %3185
        %3187 = vadd.xlane.f32.xlu0 %v3152
        %v3188 = vpop.xlane.xlu0 %3187
        %3189 = vadd.xlane.f32.xlu0 %v3153
        %v3190 = vpop.xlane.xlu0 %3189
        %3191 = vadd.xlane.f32.xlu0 %v3154
        %v3192 = vpop.xlane.xlu0 %3191
        %3193 = vadd.xlane.f32.xlu0 %v3155
        %v3194 = vpop.xlane.xlu0 %3193
        %3195 = vadd.xlane.f32.xlu0 %v3156
        %v3196 = vpop.xlane.xlu0 %3195
        %3197 = vadd.xlane.f32.xlu0 %v3157
        %v3198 = vpop.xlane.xlu0 %3197
        %3199 = vadd.xlane.f32.xlu0 %v3158
        %v3200 = vpop.xlane.xlu0 %3199
        %3201 = vadd.xlane.f32.xlu0 %v3159
        %v3202 = vpop.xlane.xlu0 %3201
        %3203 = vadd.xlane.f32.xlu0 %v3160
        %v3204 = vpop.xlane.xlu0 %3203
        %3205 = vadd.xlane.f32.xlu0 %v3161
        %v3206 = vpop.xlane.xlu0 %3205
        %3207 = vadd.xlane.f32.xlu0 %v3162
        %v3208 = vpop.xlane.xlu0 %3207
        %3209 = vadd.xlane.f32.xlu0 %v3163
        %v3210 = vpop.xlane.xlu0 %3209
        %3211 = vadd.xlane.f32.xlu0 %v3164
        %v3212 = vpop.xlane.xlu0 %3211
        %3213 = vadd.xlane.f32.xlu0 %v3165
        %v3214 = vpop.xlane.xlu0 %3213
        %3215 = vadd.xlane.f32.xlu0 %v3166
        %v3216 = vpop.xlane.xlu0 %3215
        %3217 = vadd.xlane.f32.xlu0 %v3167
        %v3218 = vpop.xlane.xlu0 %3217
        %3219 = vadd.xlane.f32.xlu0 %v3168
        %v3220 = vpop.xlane.xlu0 %3219
        %3221 = vadd.xlane.f32.xlu0 %v3169
        %v3222 = vpop.xlane.xlu0 %3221
        %3223 = vadd.xlane.f32.xlu0 %v3170
        %v3224 = vpop.xlane.xlu0 %3223
        %3225 = vadd.xlane.f32.xlu0 %v3171
        %v3226 = vpop.xlane.xlu0 %3225
        %3227 = vadd.xlane.f32.xlu0 %v3172
        %v3228 = vpop.xlane.xlu0 %3227
        %3229 = vadd.xlane.f32.xlu0 %v3173
        %v3230 = vpop.xlane.xlu0 %3229
        %3231 = vadd.xlane.f32.xlu0 %v3174
        %v3232 = vpop.xlane.xlu0 %3231
        %3233 = vadd.xlane.f32.xlu0 %v3175
        %v3234 = vpop.xlane.xlu0 %3233
        %3235 = vadd.xlane.f32.xlu0 %v3176
        %v3236 = vpop.xlane.xlu0 %3235
        %3237 = vadd.xlane.f32.xlu0 %v3177
        %v3238 = vpop.xlane.xlu0 %3237
        %3239 = vadd.xlane.f32.xlu0 %v3178
        %v3240 = vpop.xlane.xlu0 %3239
        %3241 = vadd.xlane.f32.xlu0 %v3179
        %v3242 = vpop.xlane.xlu0 %3241
        %3243 = vadd.xlane.f32.xlu0 %v3180
        %v3244 = vpop.xlane.xlu0 %3243
        %v3245 = vld [vmem:[#allocation2] sm:$0x1]
        %v3247 = vlaneseq
        %v3248 = vshrl.u32 %v3247, 7
        %v3249 = vsub.s32 0, %v3248
        %v3250 = vrot.slane %v3245, %v3249
        %v3252 = vadd.f32 %v3182, %v3250
        %v3253 = vadd.f32 %v3184, %v3250
        %v3254 = vadd.f32 %v3186, %v3250
        %v3255 = vadd.f32 %v3188, %v3250
        %v3256 = vadd.f32 %v3190, %v3250
        %v3257 = vadd.f32 %v3192, %v3250
        %v3258 = vadd.f32 %v3194, %v3250
        %v3259 = vadd.f32 %v3196, %v3250
        %v3260 = vadd.f32 %v3198, %v3250
        %v3261 = vadd.f32 %v3200, %v3250
        %v3262 = vadd.f32 %v3202, %v3250
        %v3263 = vadd.f32 %v3204, %v3250
        %v3264 = vadd.f32 %v3206, %v3250
        %v3265 = vadd.f32 %v3208, %v3250
        %v3266 = vadd.f32 %v3210, %v3250
        %v3267 = vadd.f32 %v3212, %v3250
        %v3268 = vadd.f32 %v3214, %v3250
        %v3269 = vadd.f32 %v3216, %v3250
        %v3270 = vadd.f32 %v3218, %v3250
        %v3271 = vadd.f32 %v3220, %v3250
        %v3272 = vadd.f32 %v3222, %v3250
        %v3273 = vadd.f32 %v3224, %v3250
        %v3274 = vadd.f32 %v3226, %v3250
        %v3275 = vadd.f32 %v3228, %v3250
        %v3276 = vadd.f32 %v3230, %v3250
        %v3277 = vadd.f32 %v3232, %v3250
        %v3278 = vadd.f32 %v3234, %v3250
        %v3279 = vadd.f32 %v3236, %v3250
        %v3280 = vadd.f32 %v3238, %v3250
        %v3281 = vadd.f32 %v3240, %v3250
        %v3282 = vadd.f32 %v3242, %v3250
        %v3283 = vadd.f32 %v3244, %v3250
        %vm3284 = vcmask 7168
        %3285 = vst.msk [vmem:[%s418] sm:$0xff] %vm3284, %v3252
        %3286 = vst.msk [vmem:[%s418 + $0x8] sm:$0xff] %vm3284, %v3253
        %3287 = vst.msk [vmem:[%s418 + $0x10] sm:$0xff] %vm3284, %v3254
        %3288 = vst.msk [vmem:[%s418 + $0x18] sm:$0xff] %vm3284, %v3255
        %3289 = vst.msk [vmem:[%s418 + $0x20] sm:$0xff] %vm3284, %v3256
        %3290 = vst.msk [vmem:[%s418 + $0x28] sm:$0xff] %vm3284, %v3257
        %3291 = vst.msk [vmem:[%s418 + $0x30] sm:$0xff] %vm3284, %v3258
        %3292 = vst.msk [vmem:[%s418 + $0x38] sm:$0xff] %vm3284, %v3259
        %3293 = vst.msk [vmem:[%s418 + $0x40] sm:$0xff] %vm3284, %v3260
        %3294 = vst.msk [vmem:[%s418 + $0x48] sm:$0xff] %vm3284, %v3261
        %3295 = vst.msk [vmem:[%s418 + $0x50] sm:$0xff] %vm3284, %v3262
        %3296 = vst.msk [vmem:[%s418 + $0x58] sm:$0xff] %vm3284, %v3263
        %3297 = vst.msk [vmem:[%s418 + $0x60] sm:$0xff] %vm3284, %v3264
        %3298 = vst.msk [vmem:[%s418 + $0x68] sm:$0xff] %vm3284, %v3265
        %3299 = vst.msk [vmem:[%s418 + $0x70] sm:$0xff] %vm3284, %v3266
        %3300 = vst.msk [vmem:[%s418 + $0x78] sm:$0xff] %vm3284, %v3267
        %3301 = vst.msk [vmem:[%s418 + $0x80] sm:$0xff] %vm3284, %v3268
        %3302 = vst.msk [vmem:[%s418 + $0x88] sm:$0xff] %vm3284, %v3269
        %3303 = vst.msk [vmem:[%s418 + $0x90] sm:$0xff] %vm3284, %v3270
        %3304 = vst.msk [vmem:[%s418 + $0x98] sm:$0xff] %vm3284, %v3271
        %3305 = vst.msk [vmem:[%s418 + $0xa0] sm:$0xff] %vm3284, %v3272
        %3306 = vst.msk [vmem:[%s418 + $0xa8] sm:$0xff] %vm3284, %v3273
        %3307 = vst.msk [vmem:[%s418 + $0xb0] sm:$0xff] %vm3284, %v3274
        %3308 = vst.msk [vmem:[%s418 + $0xb8] sm:$0xff] %vm3284, %v3275
        %3309 = vst.msk [vmem:[%s418 + $0xc0] sm:$0xff] %vm3284, %v3276
        %3310 = vst.msk [vmem:[%s418 + $0xc8] sm:$0xff] %vm3284, %v3277
        %3311 = vst.msk [vmem:[%s418 + $0xd0] sm:$0xff] %vm3284, %v3278
        %3312 = vst.msk [vmem:[%s418 + $0xd8] sm:$0xff] %vm3284, %v3279
        %3313 = vst.msk [vmem:[%s418 + $0xe0] sm:$0xff] %vm3284, %v3280
        %3314 = vst.msk [vmem:[%s418 + $0xe8] sm:$0xff] %vm3284, %v3281
        %3315 = vst.msk [vmem:[%s418 + $0xf0] sm:$0xff] %vm3284, %v3282
        %3316 = vst.msk [vmem:[%s418 + $0xf8] sm:$0xff] %vm3284, %v3283
        %s3317 = sand.u32 %s273, 1
        %s3318 = sand.u32 %s273, 1
        %s3319 = smul.addr %s3318, 256
        %s3320 = scalar_lea.vmem [#allocation3], %s3319
        // Predicated region
        $region65: #{tpu_custom_call.1} parent=63 // pred_check
          %p3321 = pneg %p283
        $region66: #{tpu_custom_call.1} parent=63 // pred_check_branch
          %3323 = sbr.rel (%p3321) target = $region68
        $region67: #{tpu_custom_call.1} parent=63 // pred_region
          %s3324 = smul.u32 32, %s24
          %s3325 = ssub.s32 63, %s3324
          %p3326 = scmp.lt.s32.totalorder %s3325, 32
          %s3327 = scalar_select %p3326, %s3325, 32
          %s3328 = smul.u32 128, %s3327
          %p3329 = scmp.ne.s32.totalorder 0, %s3328
          %s3330 = smul.addr %s3324, 8
          %s3331 = scalar_lea.vmem %s11, %s3330
          // Predicated region
          $region69: #{tpu_custom_call.1} parent=67 // pred_check
            %p3332 = pneg %p3329
          $region70: #{tpu_custom_call.1} parent=67 // pred_check_branch
            %3334 = sbr.rel (%p3332) target = $region72
          $region71: #{tpu_custom_call.1} parent=67 // pred_region
            // Predicated region
            $region73: #{tpu_custom_call.1} parent=71 // pred_check
              _
            $region74: #{tpu_custom_call.1} parent=71 // pred_check_branch
              %3336 = sbr.rel (0) target = $region76
            $region75: #{tpu_custom_call.1} parent=71 // pred_region
              // Predicated region
              $region95: #{tpu_custom_call.1} parent=75 // pred_check
                _
              $region96: #{tpu_custom_call.1} parent=75 // pred_check_branch
                %3448 = sbr.rel (0) target = $region98
              $region97: #{tpu_custom_call.1} parent=75 // pred_region
                %s3449 = sshrl.u32 %s3327, 5
                // While loop
                $region99: #{tpu_custom_call.1} parent=97 // loop_pre_header
                  _
                $region100: #{tpu_custom_call.1} parent=97 // loop_header
                  %s3451 = sphi 0, %s3453
                  %p3452 = scmp.ge.s32.totalorder %s3451, %s3449
                  %s3456 = sphi 0, %s3525
                  %s3457 = sphi %s3320, %s3528
                  %s3458 = sphi %s3331, %s3529
                $region101: #{tpu_custom_call.1} parent=97 // loop_header_branch
                  %3455 = sbr.rel (%p3452) target = $region105
                $region102: #{tpu_custom_call.1} parent=97 // loop_body
                  %v3459 = vld [vmem:[%s3457] sm:$0xff]
                  %3460 = vst [vmem:[%s3458] sm:$0xff] %v3459
                  %v3461 = vld [vmem:[%s3457 + $0x8] sm:$0xff]
                  %3462 = vst [vmem:[%s3458 + $0x8] sm:$0xff] %v3461
                  %v3463 = vld [vmem:[%s3457 + $0x10] sm:$0xff]
                  %3464 = vst [vmem:[%s3458 + $0x10] sm:$0xff] %v3463
                  %v3465 = vld [vmem:[%s3457 + $0x18] sm:$0xff]
                  %3466 = vst [vmem:[%s3458 + $0x18] sm:$0xff] %v3465
                  %v3467 = vld [vmem:[%s3457 + $0x20] sm:$0xff]
                  %3468 = vst [vmem:[%s3458 + $0x20] sm:$0xff] %v3467
                  %v3469 = vld [vmem:[%s3457 + $0x28] sm:$0xff]
                  %3470 = vst [vmem:[%s3458 + $0x28] sm:$0xff] %v3469
                  %v3471 = vld [vmem:[%s3457 + $0x30] sm:$0xff]
                  %3472 = vst [vmem:[%s3458 + $0x30] sm:$0xff] %v3471
                  %v3473 = vld [vmem:[%s3457 + $0x38] sm:$0xff]
                  %3474 = vst [vmem:[%s3458 + $0x38] sm:$0xff] %v3473
                  %v3475 = vld [vmem:[%s3457 + $0x40] sm:$0xff]
                  %3476 = vst [vmem:[%s3458 + $0x40] sm:$0xff] %v3475
                  %v3477 = vld [vmem:[%s3457 + $0x48] sm:$0xff]
                  %3478 = vst [vmem:[%s3458 + $0x48] sm:$0xff] %v3477
                  %v3479 = vld [vmem:[%s3457 + $0x50] sm:$0xff]
                  %3480 = vst [vmem:[%s3458 + $0x50] sm:$0xff] %v3479
                  %v3481 = vld [vmem:[%s3457 + $0x58] sm:$0xff]
                  %3482 = vst [vmem:[%s3458 + $0x58] sm:$0xff] %v3481
                  %v3483 = vld [vmem:[%s3457 + $0x60] sm:$0xff]
                  %3484 = vst [vmem:[%s3458 + $0x60] sm:$0xff] %v3483
                  %v3485 = vld [vmem:[%s3457 + $0x68] sm:$0xff]
                  %3486 = vst [vmem:[%s3458 + $0x68] sm:$0xff] %v3485
                  %v3487 = vld [vmem:[%s3457 + $0x70] sm:$0xff]
                  %3488 = vst [vmem:[%s3458 + $0x70] sm:$0xff] %v3487
                  %v3489 = vld [vmem:[%s3457 + $0x78] sm:$0xff]
                  %3490 = vst [vmem:[%s3458 + $0x78] sm:$0xff] %v3489
                  %v3491 = vld [vmem:[%s3457 + $0x80] sm:$0xff]
                  %3492 = vst [vmem:[%s3458 + $0x80] sm:$0xff] %v3491
                  %v3493 = vld [vmem:[%s3457 + $0x88] sm:$0xff]
                  %3494 = vst [vmem:[%s3458 + $0x88] sm:$0xff] %v3493
                  %v3495 = vld [vmem:[%s3457 + $0x90] sm:$0xff]
                  %3496 = vst [vmem:[%s3458 + $0x90] sm:$0xff] %v3495
                  %v3497 = vld [vmem:[%s3457 + $0x98] sm:$0xff]
                  %3498 = vst [vmem:[%s3458 + $0x98] sm:$0xff] %v3497
                  %v3499 = vld [vmem:[%s3457 + $0xa0] sm:$0xff]
                  %3500 = vst [vmem:[%s3458 + $0xa0] sm:$0xff] %v3499
                  %v3501 = vld [vmem:[%s3457 + $0xa8] sm:$0xff]
                  %3502 = vst [vmem:[%s3458 + $0xa8] sm:$0xff] %v3501
                  %v3503 = vld [vmem:[%s3457 + $0xb0] sm:$0xff]
                  %3504 = vst [vmem:[%s3458 + $0xb0] sm:$0xff] %v3503
                  %v3505 = vld [vmem:[%s3457 + $0xb8] sm:$0xff]
                  %3506 = vst [vmem:[%s3458 + $0xb8] sm:$0xff] %v3505
                  %v3507 = vld [vmem:[%s3457 + $0xc0] sm:$0xff]
                  %3508 = vst [vmem:[%s3458 + $0xc0] sm:$0xff] %v3507
                  %v3509 = vld [vmem:[%s3457 + $0xc8] sm:$0xff]
                  %3510 = vst [vmem:[%s3458 + $0xc8] sm:$0xff] %v3509
                  %v3511 = vld [vmem:[%s3457 + $0xd0] sm:$0xff]
                  %3512 = vst [vmem:[%s3458 + $0xd0] sm:$0xff] %v3511
                  %v3513 = vld [vmem:[%s3457 + $0xd8] sm:$0xff]
                  %3514 = vst [vmem:[%s3458 + $0xd8] sm:$0xff] %v3513
                  %v3515 = vld [vmem:[%s3457 + $0xe0] sm:$0xff]
                  %3516 = vst [vmem:[%s3458 + $0xe0] sm:$0xff] %v3515
                  %v3517 = vld [vmem:[%s3457 + $0xe8] sm:$0xff]
                  %3518 = vst [vmem:[%s3458 + $0xe8] sm:$0xff] %v3517
                  %v3519 = vld [vmem:[%s3457 + $0xf0] sm:$0xff]
                  %3520 = vst [vmem:[%s3458 + $0xf0] sm:$0xff] %v3519
                  %v3521 = vld [vmem:[%s3457 + $0xf8] sm:$0xff]
                  %3522 = vst [vmem:[%s3458 + $0xf8] sm:$0xff] %v3521
                  %s3523 = sadd.s32 1, %s3456
                  %p3524 = scmp.ge.s32.totalorder %s3523, %s3449
                  %s3525 = scalar_select %p3524, 0, %s3523
                  %s3526 = smul.u32 %s3525, 256
                  %s3527 = smul.u32 %s3525, 256
                  %s3528 = scalar_lea.vmem %s3320, %s3526 [#allocation3]
                  %s3529 = scalar_lea.vmem %s3331, %s3527
                $region103: #{tpu_custom_call.1} parent=97 // loop_footer
                  %s3453 = sadd.s32 %s3451, 1
                $region104: #{tpu_custom_call.1} parent=97 // loop_footer_branch
                  %3450 = sbr.rel target = $region100
                $region105: #{tpu_custom_call.1} parent=97 // loop_exit
                  _
                %s3530 = sshrl.u32 %s3327, 5
                %s3531 = sand.u32 %s3327, 31
                %s3532 = smul.u32 %s3530, 32
                %s3533 = smul.u32 8, %s3532
                %s3534 = scalar_lea.vmem %s3320, %s3533 [#allocation3]
                %s3535 = smul.u32 8, %s3532
                %s3536 = scalar_lea.vmem %s3331, %s3535
                // While loop
                $region106: #{tpu_custom_call.1} parent=97 // loop_pre_header
                  _
                $region107: #{tpu_custom_call.1} parent=97 // loop_header
                  %s3538 = sphi 0, %s3540
                  %p3539 = scmp.ge.s32.totalorder %s3538, %s3531
                  %s3543 = sphi 0, %s3550
                  %s3544 = sphi %s3534, %s3553
                  %s3545 = sphi %s3536, %s3554
                $region108: #{tpu_custom_call.1} parent=97 // loop_header_branch
                  %3542 = sbr.rel (%p3539) target = $region112
                $region109: #{tpu_custom_call.1} parent=97 // loop_body
                  %v3546 = vld [vmem:[%s3544] sm:$0xff]
                  %3547 = vst [vmem:[%s3545] sm:$0xff] %v3546
                  %s3548 = sadd.s32 1, %s3543
                  %p3549 = scmp.ge.s32.totalorder %s3548, %s3531
                  %s3550 = scalar_select %p3549, 0, %s3548
                  %s3551 = smul.u32 %s3550, 8
                  %s3552 = smul.u32 %s3550, 8
                  %s3553 = scalar_lea.vmem %s3534, %s3551 [#allocation3]
                  %s3554 = scalar_lea.vmem %s3536, %s3552
                $region110: #{tpu_custom_call.1} parent=97 // loop_footer
                  %s3540 = sadd.s32 %s3538, 1
                $region111: #{tpu_custom_call.1} parent=97 // loop_footer_branch
                  %3537 = sbr.rel target = $region107
                $region112: #{tpu_custom_call.1} parent=97 // loop_exit
                  _
              $region98: #{tpu_custom_call.1} parent=75 // pred_fallthru
                _
              // Predicated region
              $region113: #{tpu_custom_call.1} parent=75 // pred_check
                _
              $region114: #{tpu_custom_call.1} parent=75 // pred_check_branch
                %3556 = sbr.rel target = $region116
              $region115: #{tpu_custom_call.1} parent=75 // pred_region
                _
              $region116: #{tpu_custom_call.1} parent=75 // pred_fallthru
                _
            $region76: #{tpu_custom_call.1} parent=71 // pred_fallthru
              _
            // Predicated region
            $region77: #{tpu_custom_call.1} parent=71 // pred_check
              _
            $region78: #{tpu_custom_call.1} parent=71 // pred_check_branch
              %3338 = sbr.rel target = $region80
            $region79: #{tpu_custom_call.1} parent=71 // pred_region
              %s3340 = ssub.s32 256, 1
              %s3341 = sshrl.u32 %s3327, 5
              // While loop
              $region81: #{tpu_custom_call.1} parent=79 // loop_pre_header
                _
              $region82: #{tpu_custom_call.1} parent=79 // loop_header
                %s3343 = sphi 0, %s3345
                %p3344 = scmp.ge.s32.totalorder %s3343, %s3341
                %s3348 = sphi 0, %s3417
                %s3349 = sphi %s3320, %s3420
                %s3350 = sphi %s3331, %s3421
              $region83: #{tpu_custom_call.1} parent=79 // loop_header_branch
                %3347 = sbr.rel (%p3344) target = $region87
              $region84: #{tpu_custom_call.1} parent=79 // loop_body
                %v3351 = vld [vmem:[%s3349] sm:%s3340]
                %3352 = vst [vmem:[%s3350] sm:%s3340] %v3351
                %v3353 = vld [vmem:[%s3349 + $0x8] sm:%s3340]
                %3354 = vst [vmem:[%s3350 + $0x8] sm:%s3340] %v3353
                %v3355 = vld [vmem:[%s3349 + $0x10] sm:%s3340]
                %3356 = vst [vmem:[%s3350 + $0x10] sm:%s3340] %v3355
                %v3357 = vld [vmem:[%s3349 + $0x18] sm:%s3340]
                %3358 = vst [vmem:[%s3350 + $0x18] sm:%s3340] %v3357
                %v3359 = vld [vmem:[%s3349 + $0x20] sm:%s3340]
                %3360 = vst [vmem:[%s3350 + $0x20] sm:%s3340] %v3359
                %v3361 = vld [vmem:[%s3349 + $0x28] sm:%s3340]
                %3362 = vst [vmem:[%s3350 + $0x28] sm:%s3340] %v3361
                %v3363 = vld [vmem:[%s3349 + $0x30] sm:%s3340]
                %3364 = vst [vmem:[%s3350 + $0x30] sm:%s3340] %v3363
                %v3365 = vld [vmem:[%s3349 + $0x38] sm:%s3340]
                %3366 = vst [vmem:[%s3350 + $0x38] sm:%s3340] %v3365
                %v3367 = vld [vmem:[%s3349 + $0x40] sm:%s3340]
                %3368 = vst [vmem:[%s3350 + $0x40] sm:%s3340] %v3367
                %v3369 = vld [vmem:[%s3349 + $0x48] sm:%s3340]
                %3370 = vst [vmem:[%s3350 + $0x48] sm:%s3340] %v3369
                %v3371 = vld [vmem:[%s3349 + $0x50] sm:%s3340]
                %3372 = vst [vmem:[%s3350 + $0x50] sm:%s3340] %v3371
                %v3373 = vld [vmem:[%s3349 + $0x58] sm:%s3340]
                %3374 = vst [vmem:[%s3350 + $0x58] sm:%s3340] %v3373
                %v3375 = vld [vmem:[%s3349 + $0x60] sm:%s3340]
                %3376 = vst [vmem:[%s3350 + $0x60] sm:%s3340] %v3375
                %v3377 = vld [vmem:[%s3349 + $0x68] sm:%s3340]
                %3378 = vst [vmem:[%s3350 + $0x68] sm:%s3340] %v3377
                %v3379 = vld [vmem:[%s3349 + $0x70] sm:%s3340]
                %3380 = vst [vmem:[%s3350 + $0x70] sm:%s3340] %v3379
                %v3381 = vld [vmem:[%s3349 + $0x78] sm:%s3340]
                %3382 = vst [vmem:[%s3350 + $0x78] sm:%s3340] %v3381
                %v3383 = vld [vmem:[%s3349 + $0x80] sm:%s3340]
                %3384 = vst [vmem:[%s3350 + $0x80] sm:%s3340] %v3383
                %v3385 = vld [vmem:[%s3349 + $0x88] sm:%s3340]
                %3386 = vst [vmem:[%s3350 + $0x88] sm:%s3340] %v3385
                %v3387 = vld [vmem:[%s3349 + $0x90] sm:%s3340]
                %3388 = vst [vmem:[%s3350 + $0x90] sm:%s3340] %v3387
                %v3389 = vld [vmem:[%s3349 + $0x98] sm:%s3340]
                %3390 = vst [vmem:[%s3350 + $0x98] sm:%s3340] %v3389
                %v3391 = vld [vmem:[%s3349 + $0xa0] sm:%s3340]
                %3392 = vst [vmem:[%s3350 + $0xa0] sm:%s3340] %v3391
                %v3393 = vld [vmem:[%s3349 + $0xa8] sm:%s3340]
                %3394 = vst [vmem:[%s3350 + $0xa8] sm:%s3340] %v3393
                %v3395 = vld [vmem:[%s3349 + $0xb0] sm:%s3340]
                %3396 = vst [vmem:[%s3350 + $0xb0] sm:%s3340] %v3395
                %v3397 = vld [vmem:[%s3349 + $0xb8] sm:%s3340]
                %3398 = vst [vmem:[%s3350 + $0xb8] sm:%s3340] %v3397
                %v3399 = vld [vmem:[%s3349 + $0xc0] sm:%s3340]
                %3400 = vst [vmem:[%s3350 + $0xc0] sm:%s3340] %v3399
                %v3401 = vld [vmem:[%s3349 + $0xc8] sm:%s3340]
                %3402 = vst [vmem:[%s3350 + $0xc8] sm:%s3340] %v3401
                %v3403 = vld [vmem:[%s3349 + $0xd0] sm:%s3340]
                %3404 = vst [vmem:[%s3350 + $0xd0] sm:%s3340] %v3403
                %v3405 = vld [vmem:[%s3349 + $0xd8] sm:%s3340]
                %3406 = vst [vmem:[%s3350 + $0xd8] sm:%s3340] %v3405
                %v3407 = vld [vmem:[%s3349 + $0xe0] sm:%s3340]
                %3408 = vst [vmem:[%s3350 + $0xe0] sm:%s3340] %v3407
                %v3409 = vld [vmem:[%s3349 + $0xe8] sm:%s3340]
                %3410 = vst [vmem:[%s3350 + $0xe8] sm:%s3340] %v3409
                %v3411 = vld [vmem:[%s3349 + $0xf0] sm:%s3340]
                %3412 = vst [vmem:[%s3350 + $0xf0] sm:%s3340] %v3411
                %v3413 = vld [vmem:[%s3349 + $0xf8] sm:%s3340]
                %3414 = vst [vmem:[%s3350 + $0xf8] sm:%s3340] %v3413
                %s3415 = sadd.s32 1, %s3348
                %p3416 = scmp.ge.s32.totalorder %s3415, %s3341
                %s3417 = scalar_select %p3416, 0, %s3415
                %s3418 = smul.u32 %s3417, 256
                %s3419 = smul.u32 %s3417, 256
                %s3420 = scalar_lea.vmem %s3320, %s3418 [#allocation3]
                %s3421 = scalar_lea.vmem %s3331, %s3419
              $region85: #{tpu_custom_call.1} parent=79 // loop_footer
                %s3345 = sadd.s32 %s3343, 1
              $region86: #{tpu_custom_call.1} parent=79 // loop_footer_branch
                %3342 = sbr.rel target = $region82
              $region87: #{tpu_custom_call.1} parent=79 // loop_exit
                _
              %s3422 = sshrl.u32 %s3327, 5
              %s3423 = sand.u32 %s3327, 31
              %s3424 = smul.u32 %s3422, 32
              %s3425 = smul.u32 8, %s3424
              %s3426 = scalar_lea.vmem %s3320, %s3425 [#allocation3]
              %s3427 = smul.u32 8, %s3424
              %s3428 = scalar_lea.vmem %s3331, %s3427
              // While loop
              $region88: #{tpu_custom_call.1} parent=79 // loop_pre_header
                _
              $region89: #{tpu_custom_call.1} parent=79 // loop_header
                %s3430 = sphi 0, %s3432
                %p3431 = scmp.ge.s32.totalorder %s3430, %s3423
                %s3435 = sphi 0, %s3442
                %s3436 = sphi %s3426, %s3445
                %s3437 = sphi %s3428, %s3446
              $region90: #{tpu_custom_call.1} parent=79 // loop_header_branch
                %3434 = sbr.rel (%p3431) target = $region94
              $region91: #{tpu_custom_call.1} parent=79 // loop_body
                %v3438 = vld [vmem:[%s3436] sm:%s3340]
                %3439 = vst [vmem:[%s3437] sm:%s3340] %v3438
                %s3440 = sadd.s32 1, %s3435
                %p3441 = scmp.ge.s32.totalorder %s3440, %s3423
                %s3442 = scalar_select %p3441, 0, %s3440
                %s3443 = smul.u32 %s3442, 8
                %s3444 = smul.u32 %s3442, 8
                %s3445 = scalar_lea.vmem %s3426, %s3443 [#allocation3]
                %s3446 = scalar_lea.vmem %s3428, %s3444
              $region92: #{tpu_custom_call.1} parent=79 // loop_footer
                %s3432 = sadd.s32 %s3430, 1
              $region93: #{tpu_custom_call.1} parent=79 // loop_footer_branch
                %3429 = sbr.rel target = $region89
              $region94: #{tpu_custom_call.1} parent=79 // loop_exit
                _
            $region80: #{tpu_custom_call.1} parent=71 // pred_fallthru
              _
          $region72: #{tpu_custom_call.1} parent=67 // pred_fallthru
            _
          %3557 = vnop
        $region68: #{tpu_custom_call.1} parent=63 // pred_fallthru
          _
      $region64: #{tpu_custom_call.1} parent=5 // pred_fallthru
        _
      %p3558 = scmp.le.s32.totalorder 2, %s19
      // Predicated region
      $region117: #{tpu_custom_call.1} parent=5 // pred_check
        %p3559 = pneg %p3558
      $region118: #{tpu_custom_call.1} parent=5 // pred_check_branch
        %3561 = sbr.rel (%p3559) target = $region120
      $region119: #{tpu_custom_call.1} parent=5 // pred_region
        %s3562 = ssub.s32 %s19, 2
        // Predicated region
        $region121: #{tpu_custom_call.1} parent=119 // pred_check
          %p3563 = pneg %p289
        $region122: #{tpu_custom_call.1} parent=119 // pred_check_branch
          %3565 = sbr.rel (%p3563) target = $region124
        $region123: #{tpu_custom_call.1} parent=119 // pred_region
          %s3566 = sand.u32 %s274, 1
          %s3567 = sand.u32 %s274, 1
          %s3568 = smul.addr %s3567, 256
          %s3569 = scalar_lea.vmem [#allocation3], %s3568
        $region124: #{tpu_custom_call.1} parent=119 // pred_fallthru
          _
      $region120: #{tpu_custom_call.1} parent=5 // pred_fallthru
        _
    $region6: #{tpu_custom_call.1} parent=1 // loop_footer
      %s23 = sadd.s32 1, %s19
    $region7: #{tpu_custom_call.1} parent=1 // loop_footer_branch
      %18 = sbr.rel target = $region3
    $region8: #{tpu_custom_call.1} parent=1 // loop_exit
      _

</llo_original>
